<compile_context>
chip_gen: v7x
topology: tpu7x:2x2x1
jax: 0.10.0
libtpu: 0.0.40
codegen_flags: <defaults>
</compile_context>

<pallas_src>
import jax
import jax.numpy as jnp
from jax import lax
from jax.experimental import pallas as pl
from jax.experimental.pallas import tpu as pltpu


# (oy, ox) offsets of the 9 taps of a 3x3 / pad-1 conv, tap index t = dy*3+dx,
# matching a row-major reshape of an HWIO weight to (9*C, Cout).
_TAPS = tuple((dy - 1, dx - 1) for dy in range(3) for dx in range(3))


def _optimized_block_kernel(
    x_ref,     # (H, W, Cin)        f32  one image (batch dim squeezed by BlockSpec)
    w1_ref,    # (9*Cin, Cout)      bf16 packed conv1 weight (tap-major, channel-minor)
    b1_ref,    # (1, Cout)          f32
    w2_ref,    # (9*Cout, Cout)     bf16 packed conv2 weight, pre-scaled by 1/4
    b2_ref,    # (1, Cout)          f32
    wsc_ref,   # (Cin, Cout)        bf16 1x1 shortcut weight, pre-scaled by 1/4
    bsc_ref,   # (1, Cout)          f32
    out_ref,   # (Hh, Wh, Cout)     f32
    h1_ref,    # scratch (H+2, W+2, Cout) f32 : conv1 output with 1-pixel zero halo
):
    H, W, Cin = x_ref.shape
    Hh, Wh, Cout = out_ref.shape

    # Zero only the 1-pixel halo of h1_ref (realises conv2's padding=1); the
    # interior is fully overwritten every step, so no full-buffer zeroing.
    h1_ref[0:1, :, :] = jnp.zeros((1, W + 2, Cout), jnp.float32)
    h1_ref[H + 1:H + 2, :, :] = jnp.zeros((1, W + 2, Cout), jnp.float32)
    h1_ref[1:H + 1, 0:1, :] = jnp.zeros((H, 1, Cout), jnp.float32)
    h1_ref[1:H + 1, W + 1:W + 2, :] = jnp.zeros((H, 1, Cout), jnp.float32)

    # ---- phase 1: conv1 (3x3, pad 1) + bias + ReLU as ONE MXU matmul --------
    def conv1_phase(lhs1_ref):            # lhs1_ref: (H, W, 9*Cin) bf16
        # im2col staging: per tap, copy the shifted interior (cast to bf16 at
        # store time) and zero only the 1-pixel halo stripes it doesn't cover.
        for t, (oy, ox) in enumerate(_TAPS):
            i0, i1 = max(0, -oy), H + min(0, -oy)
            j0, j1 = max(0, -ox), W + min(0, -ox)
            lanes = slice(t * Cin, (t + 1) * Cin)
            if i0 > 0:
                lhs1_ref[0:i0, :, lanes] = jnp.zeros((i0, W, Cin), jnp.bfloat16)
            if i1 < H:
                lhs1_ref[i1:H, :, lanes] = jnp.zeros((H - i1, W, Cin), jnp.bfloat16)
            if j0 > 0:
                lhs1_ref[i0:i1, 0:j0, lanes] = jnp.zeros((i1 - i0, j0, Cin), jnp.bfloat16)
            if j1 < W:
                lhs1_ref[i0:i1, j1:W, lanes] = jnp.zeros((i1 - i0, W - j1, Cin), jnp.bfloat16)
            lhs1_ref[i0:i1, j0:j1, lanes] = (
                x_ref[i0 + oy:i1 + oy, j0 + ox:j1 + ox, :].astype(jnp.bfloat16))

        h1 = jnp.dot(lhs1_ref[...].reshape(H * W, 9 * Cin), w1_ref[...],
                     preferred_element_type=jnp.float32)
        h1 = jnp.maximum(h1 + b1_ref[...], 0.0)                        # f32
        h1_ref[1:H + 1, 1:W + 1, :] = h1.reshape(H, W, Cout)

    pl.run_scoped(conv1_phase, pltpu.VMEM((H, W, 9 * Cin), jnp.bfloat16))

    # ---- phase 2: pooled conv2 + bias, shortcut, output ---------------------
    # avg_pool2d(conv2(h1), 2, 2) == (pooled im2col of h1) @ (w2/4) + b2, so
    # the conv2 matmul runs at pooled resolution (4x fewer FLOPs, output
    # already pooled).  Each pooled tap = 2x2 window sum of the shifted h1,
    # read from the haloed h1_ref with stride-2 loads.
    def conv2_phase(lhs2_ref):             # lhs2_ref: (Hh, Wh, 9*Cout) bf16
        for ox in (-1, 0, 1):
            # acol[i, iw] = h1_pad[i-1, 2*iw+ox] + h1_pad[i-1, 2*iw+ox+1]
            acol = (h1_ref[:, pl.ds(ox + 1, Wh, 2), :]
                    + h1_ref[:, pl.ds(ox + 2, Wh, 2), :])              # (H+2, Wh, C)
            a4 = acol.reshape(Hh + 1, 2, Wh, Cout)
            even, odd = a4[:, 0], a4[:, 1]                             # acol rows 2k / 2k+1
            both = even + odd
            p_by_oy = {
                -1: both[:Hh],               # h1 rows 2ih-1, 2ih   (zero-padded edge)
                0: odd[:Hh] + even[1:],      # h1 rows 2ih,   2ih+1
                1: both[1:],                 # h1 rows 2ih+1, 2ih+2 (zero-padded edge)
            }
            for oy in (-1, 0, 1):
                t = (oy + 1) * 3 + (ox + 1)
                lhs2_ref[:, :, t * Cout:(t + 1) * Cout] = (
                    p_by_oy[oy].astype(jnp.bfloat16))

        h2 = jnp.dot(lhs2_ref[...].reshape(Hh * Wh, 9 * Cout), w2_ref[...],
                     preferred_element_type=jnp.float32)
        h2 = (h2 + b2_ref[...]).reshape(Hh, Wh, Cout)

        # Shortcut: avg_pool2d(x, 2, 2) then 1x1 conv (1/4 folded into wsc).
        xw = x_ref[:, pl.ds(0, Wh, 2), :] + x_ref[:, pl.ds(1, Wh, 2), :]   # (H, Wh, Cin)
        xw = xw.reshape(Hh, 2, Wh, Cin)
        x_pool = xw[:, 0] + xw[:, 1]                                       # (Hh, Wh, Cin)
        skip = jnp.dot(x_pool.reshape(Hh * Wh, Cin).astype(jnp.bfloat16),
                       wsc_ref[...], preferred_element_type=jnp.float32)
        skip = skip.reshape(Hh, Wh, Cout)

        out_ref[...] = h2 + skip + bsc_ref[...]

    pl.run_scoped(conv2_phase, pltpu.VMEM((Hh, Wh, 9 * Cout), jnp.bfloat16))


def _vmem_limit_bytes(block_bytes, scratch_bytes):
    """Per-call VMEM budget: double-buffered pipeline blocks + scratch + headroom,
    capped at 3/4 of the physical VMEM of the local TPU generation."""
    need = int((2 * block_bytes + scratch_bytes) * 1.25) + (8 << 20)
    try:
        cap = pltpu.get_tpu_info().vmem_capacity_bytes   # 128 MiB v5e/v6e, 64 MiB v7x
    except Exception:
        cap = 64 << 20
    return max(16 << 20, min(need, (3 * cap) // 4))


def optimized_block_forward(x_nchw, params):
    """Forward of OptimizedBlock(in_ch, out_ch, downsample=True) with in != out."""
    x = jnp.transpose(x_nchw, (0, 2, 3, 1)).astype(jnp.float32)    # NCHW -> NHWC
    N, H, W, Cin = x.shape
    Cout = params["w1"].shape[-1]
    assert H % 2 == 0 and W % 2 == 0, "avg_pool2d(2, 2) path assumes even H, W"
    Hh, Wh = H // 2, W // 2

    # Pack 3x3 HWIO weights to (9*C, Cout) so each conv is a single MXU matmul.
    # The 2x2-mean factor (1/4, an exact power-of-two scale) is folded into the
    # conv2 / shortcut weights, so the kernel stages plain 2x2 window sums.
    # Matmul operands are bf16 (f32 accumulation); biases stay f32.
    w1p = params["w1"].reshape(9 * Cin, Cout).astype(jnp.bfloat16)
    w2p = (params["w2"] * 0.25).reshape(9 * Cout, Cout).astype(jnp.bfloat16)
    wscp = (params["wsc"] * 0.25).astype(jnp.bfloat16)
    b1 = params["b1"].astype(jnp.float32)
    b2 = params["b2"].astype(jnp.float32)
    bsc = params["bsc"].astype(jnp.float32)

    def batch_block(shape):      # per-image block, batch dim squeezed
        return pl.BlockSpec((None,) + shape, lambda n: (n, 0, 0, 0))

    def const_block(shape):      # same (whole) block for every grid step
        return pl.BlockSpec(shape, lambda n: (0,) * len(shape))

    # Actual per-step VMEM: pipeline blocks (x, out, weights/biases) + the h1
    # halo scratch + the larger of the two run_scoped staging buffers.
    block_bytes = (H * W * Cin + Hh * Wh * Cout) * 4 \
        + (9 * Cin * Cout + 9 * Cout * Cout + Cin * Cout) * 2 + 3 * Cout * 4
    scratch_bytes = (H + 2) * (W + 2) * Cout * 4 \
        + max(H * W * 9 * Cin, Hh * Wh * 9 * Cout) * 2
    vmem_bytes = _vmem_limit_bytes(block_bytes, scratch_bytes)

    # TODO(synk): pre-pack small-Cin inputs lane-dense (e.g. (N, H, W*Cin)) to
    # shrink the x block DMA/VMEM footprint for the canonical Cin=3 first block.
    out_nhwc = pl.pallas_call(
        _optimized_block_kernel,
        out_shape=jax.ShapeDtypeStruct((N, Hh, Wh, Cout), jnp.float32),
        grid=(N,),
        in_specs=[
            batch_block((H, W, Cin)),         # x (unpadded)
            const_block((9 * Cin, Cout)),     # w1 packed
            const_block((1, Cout)),           # b1
            const_block((9 * Cout, Cout)),    # w2 packed (x 1/4)
            const_block((1, Cout)),           # b2
            const_block((Cin, Cout)),         # wsc (x 1/4)
            const_block((1, Cout)),           # bsc
        ],
        out_specs=batch_block((Hh, Wh, Cout)),
        scratch_shapes=[
            pltpu.VMEM((H + 2, W + 2, Cout), jnp.float32),   # h1 with zero halo
        ],
        compiler_params=pltpu.CompilerParams(
            dimension_semantics=("parallel",),
            vmem_limit_bytes=vmem_bytes),
    )(x, w1p, b1, w2p, b2, wscp, bsc)
    return jnp.transpose(out_nhwc, (0, 3, 1, 2))                   # NHWC -> NCHW


# ---------------- parameter setup (plain JAX glue) ----------------

def _spectral_norm(w_hwio, key, n_iter=1, eps=1e-12):
    """One power iteration with a deterministic random u.  (torch keeps u as a
    persistent buffer, so absolute values differ from a torch-initialised
    module, but the computation is self-consistent.)"""
    cout = w_hwio.shape[-1]
    wm = jnp.transpose(w_hwio, (3, 2, 0, 1)).reshape(cout, -1)     # (O, I*kh*kw)
    u = jax.random.normal(key, (cout,), jnp.float32)
    u = u / (jnp.linalg.norm(u) + eps)
    v = None
    for _ in range(n_iter):
        v = wm.T @ u
        v = v / (jnp.linalg.norm(v) + eps)
        u = wm @ v
        u = u / (jnp.linalg.norm(u) + eps)
    sigma = jnp.dot(u, wm @ v)
    return w_hwio / sigma


def init_params(key, cin, cout):
    ks = jax.random.split(key, 9)
    w1 = jax.random.normal(ks[0], (3, 3, cin, cout), jnp.float32) * 0.1
    w2 = jax.random.normal(ks[1], (3, 3, cout, cout), jnp.float32) * 0.1
    wsc = jax.random.normal(ks[2], (1, 1, cin, cout), jnp.float32) * 0.1
    b1 = jax.random.normal(ks[3], (1, cout), jnp.float32) * 0.05
    b2 = jax.random.normal(ks[4], (1, cout), jnp.float32) * 0.05
    bsc = jax.random.normal(ks[5], (1, cout), jnp.float32) * 0.05
    return dict(
        w1=_spectral_norm(w1, ks[6]), b1=b1,
        w2=_spectral_norm(w2, ks[7]), b2=b2,
        wsc=_spectral_norm(wsc, ks[8])[0, 0],   # (Cin, Cout)
        bsc=bsc,
    )


# ---------------- pure-JAX references for correctness ----------------

def ref_forward_exact(x_nchw, params):
    """Pure f32 reference with the exact PyTorch-module semantics."""
    x = jnp.transpose(x_nchw, (0, 2, 3, 1)).astype(jnp.float32)
    dn = ("NHWC", "HWIO", "NHWC")

    def conv(inp, w):
        return lax.conv_general_dilated(
            inp, w, (1, 1), "SAME", dimension_numbers=dn,
            preferred_element_type=jnp.float32)

    h = conv(x, params["w1"]) + params["b1"].reshape(1, 1, 1, -1)
    h = jnp.maximum(h, 0.0)
    h = conv(h, params["w2"]) + params["b2"].reshape(1, 1, 1, -1)
    N, H, W, C = h.shape
    h = h.reshape(N, H // 2, 2, W // 2, 2, C).mean(axis=(2, 4))
    xs = x.reshape(N, H // 2, 2, W // 2, 2, x.shape[-1]).mean(axis=(2, 4))
    skip = jnp.einsum("nhwc,co->nhwo", xs, params["wsc"],
                      preferred_element_type=jnp.float32)
    skip = skip + params["bsc"].reshape(1, 1, 1, -1)
    return jnp.transpose(h + skip, (0, 3, 1, 2))


def ref_forward_matched(x_nchw, params):
    """Mirrors the kernel's algorithm (bf16 MXU operands, pool-then-matmul for
    conv2; the 1/4 scale folding is exact) for a tight numerical comparison."""
    x = jnp.transpose(x_nchw, (0, 2, 3, 1)).astype(jnp.float32)
    N, H, W, Cin = x.shape
    Cout = params["w1"].shape[-1]
    Hh, Wh = H // 2, W // 2
    dn = ("NHWC", "HWIO", "NHWC")

    h1 = lax.conv_general_dilated(
        x.astype(jnp.bfloat16), params["w1"].astype(jnp.bfloat16), (1, 1), "SAME",
        dimension_numbers=dn, preferred_element_type=jnp.float32)
    h1 = jnp.maximum(h1 + params["b1"].reshape(1, 1, 1, -1), 0.0)

    h1p = jnp.pad(h1, ((0, 0), (1, 1), (1, 1), (0, 0)))
    taps = []
    for dy in range(3):
        for dx in range(3):
            t = h1p[:, dy:dy + H, dx:dx + W, :]
            taps.append(t.reshape(N, Hh, 2, Wh, 2, Cout).mean(axis=(2, 4)))
    lhs = jnp.concatenate(taps, axis=-1).astype(jnp.bfloat16)        # (N,Hh,Wh,9C)
    w2p = params["w2"].reshape(9 * Cout, Cout).astype(jnp.bfloat16)
    h2 = jnp.einsum("nhwk,ko->nhwo", lhs, w2p,
                    preferred_element_type=jnp.float32)
    h2 = h2 + params["b2"].reshape(1, 1, 1, -1)

    xs = x.reshape(N, Hh, 2, Wh, 2, Cin).mean(axis=(2, 4))
    skip = jnp.einsum("nhwc,co->nhwo", xs.astype(jnp.bfloat16),
                      params["wsc"].astype(jnp.bfloat16),
                      preferred_element_type=jnp.float32)
    skip = skip + params["bsc"].reshape(1, 1, 1, -1)
    return jnp.transpose(h2 + skip, (0, 3, 1, 2))


if __name__ == "__main__":
    key = jax.random.PRNGKey(0)
    kx, kp = jax.random.split(key)
    N, Cin, Cout, H, W = 2, 4, 8, 16, 16
    x = jax.random.normal(kx, (N, Cin, H, W), jnp.float32)   # NCHW like PyTorch
    params = init_params(kp, Cin, Cout)

    out = jax.block_until_ready(optimized_block_forward(x, params))
    assert out.shape == (N, Cout, H // 2, W // 2), out.shape

    ref_match = ref_forward_matched(x, params)   # same matmul rounding as kernel
    ref_exact = ref_forward_exact(x, params)     # pure f32 module semantics
    err_match = float(jnp.max(jnp.abs(out - ref_match)))
    err_exact = float(jnp.max(jnp.abs(out - ref_exact)))
    assert err_match < 1e-2, f"mismatch vs bf16-matched reference: {err_match}"
    assert err_exact < 5e-2, f"mismatch vs f32 reference: {err_exact}"
    print("KERNEL_OK")
</pallas_src>

<mosaic_0001>
module attributes {stable_mosaic.version = 11 : i64} {
  func.func @_optimized_block_kernel(%arg0: i32, %arg1: memref<1x16x16x4xf32, #tpu.memory_space<vmem>>, %arg2: memref<36x8xbf16, #tpu.memory_space<vmem>>, %arg3: memref<1x8xf32, #tpu.memory_space<vmem>>, %arg4: memref<72x8xbf16, #tpu.memory_space<vmem>>, %arg5: memref<1x8xf32, #tpu.memory_space<vmem>>, %arg6: memref<4x8xbf16, #tpu.memory_space<vmem>>, %arg7: memref<1x8xf32, #tpu.memory_space<vmem>>, %arg8: memref<1x8x8x8xf32, #tpu.memory_space<vmem>>, %arg9: memref<18x18x8xf32, #tpu.memory_space<vmem>>) attributes {dimension_semantics = [#tpu.dimension_semantics<parallel>], iteration_bounds = array<i64: 2>, scalar_prefetch = 0 : i64, scratch_operands = 1 : i64, tpu.core_type = #tpu.core_type<tc>, window_params = [{transform_indices = @transform_0, window_bounds = array<i64: 1, 16, 16, 4>}, {pipeline_mode = #tpu.pipeline_mode<synchronous>, transform_indices = @transform_1, window_bounds = array<i64: 36, 8>}, {pipeline_mode = #tpu.pipeline_mode<synchronous>, transform_indices = @transform_2, window_bounds = array<i64: 1, 8>}, {pipeline_mode = #tpu.pipeline_mode<synchronous>, transform_indices = @transform_3, window_bounds = array<i64: 72, 8>}, {pipeline_mode = #tpu.pipeline_mode<synchronous>, transform_indices = @transform_4, window_bounds = array<i64: 1, 8>}, {pipeline_mode = #tpu.pipeline_mode<synchronous>, transform_indices = @transform_5, window_bounds = array<i64: 4, 8>}, {pipeline_mode = #tpu.pipeline_mode<synchronous>, transform_indices = @transform_6, window_bounds = array<i64: 1, 8>}, {transform_indices = @transform_7, window_bounds = array<i64: 1, 8, 8, 8>}]} {
    %cst = arith.constant 0.000000e+00 : f32
    %0 = vector.broadcast %cst : f32 to vector<1x18x8xf32>
    %c0 = arith.constant 0 : index
    %c0_0 = arith.constant 0 : index
    %c0_1 = arith.constant 0 : index
    %1 = vector.load %arg9[%c0, %c0_0, %c0_1] : memref<18x18x8xf32, #tpu.memory_space<vmem>>, vector<1x18x8xf32>
    tpu.vector_store %arg9[%c0, %c0_0, %c0_1], %0 {strides = array<i32>} : memref<18x18x8xf32, #tpu.memory_space<vmem>>, vector<1x18x8xf32>,
    %cst_2 = arith.constant 0.000000e+00 : f32
    %2 = vector.broadcast %cst_2 : f32 to vector<1x18x8xf32>
    %c17 = arith.constant 17 : index
    %c0_3 = arith.constant 0 : index
    %c0_4 = arith.constant 0 : index
    %3 = vector.load %arg9[%c17, %c0_3, %c0_4] : memref<18x18x8xf32, #tpu.memory_space<vmem>>, vector<1x18x8xf32>
    tpu.vector_store %arg9[%c17, %c0_3, %c0_4], %2 {strides = array<i32>} : memref<18x18x8xf32, #tpu.memory_space<vmem>>, vector<1x18x8xf32>,
    %cst_5 = arith.constant 0.000000e+00 : f32
    %4 = vector.broadcast %cst_5 : f32 to vector<16x1x8xf32>
    %c1 = arith.constant 1 : index
    %c0_6 = arith.constant 0 : index
    %c0_7 = arith.constant 0 : index
    %5 = vector.load %arg9[%c1, %c0_6, %c0_7] : memref<18x18x8xf32, #tpu.memory_space<vmem>>, vector<16x1x8xf32>
    tpu.vector_store %arg9[%c1, %c0_6, %c0_7], %4 {strides = array<i32>} : memref<18x18x8xf32, #tpu.memory_space<vmem>>, vector<16x1x8xf32>,
    %cst_8 = arith.constant 0.000000e+00 : f32
    %6 = vector.broadcast %cst_8 : f32 to vector<16x1x8xf32>
    %c1_9 = arith.constant 1 : index
    %c17_10 = arith.constant 17 : index
    %c0_11 = arith.constant 0 : index
    %7 = vector.load %arg9[%c1_9, %c17_10, %c0_11] : memref<18x18x8xf32, #tpu.memory_space<vmem>>, vector<16x1x8xf32>
    tpu.vector_store %arg9[%c1_9, %c17_10, %c0_11], %6 {strides = array<i32>} : memref<18x18x8xf32, #tpu.memory_space<vmem>>, vector<16x1x8xf32>,
    "tpu.region"() ({
      %alloca = memref.alloca() : memref<16x16x36xbf16, #tpu.memory_space<vmem>>
      %cst_12 = arith.constant 0.000000e+00 : bf16
      %8 = vector.broadcast %cst_12 : bf16 to vector<1x16x4xbf16>
      %c0_13 = arith.constant 0 : index
      %c0_14 = arith.constant 0 : index
      %c0_15 = arith.constant 0 : index
      %9 = vector.load %alloca[%c0_13, %c0_14, %c0_15] : memref<16x16x36xbf16, #tpu.memory_space<vmem>>, vector<1x16x4xbf16>
      tpu.vector_store %alloca[%c0_13, %c0_14, %c0_15], %8 {strides = array<i32>} : memref<16x16x36xbf16, #tpu.memory_space<vmem>>, vector<1x16x4xbf16>,
      %cst_16 = arith.constant 0.000000e+00 : bf16
      %10 = vector.broadcast %cst_16 : bf16 to vector<15x1x4xbf16>
      %c1_17 = arith.constant 1 : index
      %c0_18 = arith.constant 0 : index
      %c0_19 = arith.constant 0 : index
      %11 = vector.load %alloca[%c1_17, %c0_18, %c0_19] : memref<16x16x36xbf16, #tpu.memory_space<vmem>>, vector<15x1x4xbf16>
      tpu.vector_store %alloca[%c1_17, %c0_18, %c0_19], %10 {strides = array<i32>} : memref<16x16x36xbf16, #tpu.memory_space<vmem>>, vector<15x1x4xbf16>,
      %c0_20 = arith.constant 0 : index
      %c0_21 = arith.constant 0 : index
      %c0_22 = arith.constant 0 : index
      %c0_23 = arith.constant 0 : index
      %12 = vector.load %arg1[%c0_20, %c0_21, %c0_22, %c0_23] : memref<1x16x16x4xf32, #tpu.memory_space<vmem>>, vector<1x15x15x4xf32>
      %13 = vector.shape_cast %12 : vector<1x15x15x4xf32> to vector<15x15x4xf32>
      %14 = arith.truncf %13 : vector<15x15x4xf32> to vector<15x15x4xbf16>
      %c1_24 = arith.constant 1 : index
      %c1_25 = arith.constant 1 : index
      %c0_26 = arith.constant 0 : index
      %15 = vector.load %alloca[%c1_24, %c1_25, %c0_26] : memref<16x16x36xbf16, #tpu.memory_space<vmem>>, vector<15x15x4xbf16>
      tpu.vector_store %alloca[%c1_24, %c1_25, %c0_26], %14 {strides = array<i32>} : memref<16x16x36xbf16, #tpu.memory_space<vmem>>, vector<15x15x4xbf16>,
      %cst_27 = arith.constant 0.000000e+00 : bf16
      %16 = vector.broadcast %cst_27 : bf16 to vector<1x16x4xbf16>
      %c0_28 = arith.constant 0 : index
      %c0_29 = arith.constant 0 : index
      %c4 = arith.constant 4 : index
      %17 = vector.load %alloca[%c0_28, %c0_29, %c4] : memref<16x16x36xbf16, #tpu.memory_space<vmem>>, vector<1x16x4xbf16>
      tpu.vector_store %alloca[%c0_28, %c0_29, %c4], %16 {strides = array<i32>} : memref<16x16x36xbf16, #tpu.memory_space<vmem>>, vector<1x16x4xbf16>,
      %c0_30 = arith.constant 0 : index
      %c0_31 = arith.constant 0 : index
      %c0_32 = arith.constant 0 : index
      %c0_33 = arith.constant 0 : index
      %18 = vector.load %arg1[%c0_30, %c0_31, %c0_32, %c0_33] : memref<1x16x16x4xf32, #tpu.memory_space<vmem>>, vector<1x15x16x4xf32>
      %19 = vector.shape_cast %18 : vector<1x15x16x4xf32> to vector<15x16x4xf32>
      %20 = arith.truncf %19 : vector<15x16x4xf32> to vector<15x16x4xbf16>
      %c1_34 = arith.constant 1 : index
      %c0_35 = arith.constant 0 : index
      %c4_36 = arith.constant 4 : index
      %21 = vector.load %alloca[%c1_34, %c0_35, %c4_36] : memref<16x16x36xbf16, #tpu.memory_space<vmem>>, vector<15x16x4xbf16>
      tpu.vector_store %alloca[%c1_34, %c0_35, %c4_36], %20 {strides = array<i32>} : memref<16x16x36xbf16, #tpu.memory_space<vmem>>, vector<15x16x4xbf16>,
      %cst_37 = arith.constant 0.000000e+00 : bf16
      %22 = vector.broadcast %cst_37 : bf16 to vector<1x16x4xbf16>
      %c0_38 = arith.constant 0 : index
      %c0_39 = arith.constant 0 : index
      %c8 = arith.constant 8 : index
      %23 = vector.load %alloca[%c0_38, %c0_39, %c8] : memref<16x16x36xbf16, #tpu.memory_space<vmem>>, vector<1x16x4xbf16>
      tpu.vector_store %alloca[%c0_38, %c0_39, %c8], %22 {strides = array<i32>} : memref<16x16x36xbf16, #tpu.memory_space<vmem>>, vector<1x16x4xbf16>,
      %cst_40 = arith.constant 0.000000e+00 : bf16
      %24 = vector.broadcast %cst_40 : bf16 to vector<15x1x4xbf16>
      %c1_41 = arith.constant 1 : index
      %c15 = arith.constant 15 : index
      %c8_42 = arith.constant 8 : index
      %25 = vector.load %alloca[%c1_41, %c15, %c8_42] : memref<16x16x36xbf16, #tpu.memory_space<vmem>>, vector<15x1x4xbf16>
      tpu.vector_store %alloca[%c1_41, %c15, %c8_42], %24 {strides = array<i32>} : memref<16x16x36xbf16, #tpu.memory_space<vmem>>, vector<15x1x4xbf16>,
      %c0_43 = arith.constant 0 : index
      %c0_44 = arith.constant 0 : index
      %c1_45 = arith.constant 1 : index
      %c0_46 = arith.constant 0 : index
      %26 = vector.load %arg1[%c0_43, %c0_44, %c1_45, %c0_46] : memref<1x16x16x4xf32, #tpu.memory_space<vmem>>, vector<1x15x15x4xf32>
      %27 = vector.shape_cast %26 : vector<1x15x15x4xf32> to vector<15x15x4xf32>
      %28 = arith.truncf %27 : vector<15x15x4xf32> to vector<15x15x4xbf16>
      %c1_47 = arith.constant 1 : index
      %c0_48 = arith.constant 0 : index
      %c8_49 = arith.constant 8 : index
      %29 = vector.load %alloca[%c1_47, %c0_48, %c8_49] : memref<16x16x36xbf16, #tpu.memory_space<vmem>>, vector<15x15x4xbf16>
      tpu.vector_store %alloca[%c1_47, %c0_48, %c8_49], %28 {strides = array<i32>} : memref<16x16x36xbf16, #tpu.memory_space<vmem>>, vector<15x15x4xbf16>,
      %cst_50 = arith.constant 0.000000e+00 : bf16
      %30 = vector.broadcast %cst_50 : bf16 to vector<16x1x4xbf16>
      %c0_51 = arith.constant 0 : index
      %c0_52 = arith.constant 0 : index
      %c12 = arith.constant 12 : index
      %31 = vector.load %alloca[%c0_51, %c0_52, %c12] : memref<16x16x36xbf16, #tpu.memory_space<vmem>>, vector<16x1x4xbf16>
      tpu.vector_store %alloca[%c0_51, %c0_52, %c12], %30 {strides = array<i32>} : memref<16x16x36xbf16, #tpu.memory_space<vmem>>, vector<16x1x4xbf16>,
      %c0_53 = arith.constant 0 : index
      %c0_54 = arith.constant 0 : index
      %c0_55 = arith.constant 0 : index
      %c0_56 = arith.constant 0 : index
      %32 = vector.load %arg1[%c0_53, %c0_54, %c0_55, %c0_56] : memref<1x16x16x4xf32, #tpu.memory_space<vmem>>, vector<1x16x15x4xf32>
      %33 = vector.shape_cast %32 : vector<1x16x15x4xf32> to vector<16x15x4xf32>
      %34 = arith.truncf %33 : vector<16x15x4xf32> to vector<16x15x4xbf16>
      %c0_57 = arith.constant 0 : index
      %c1_58 = arith.constant 1 : index
      %c12_59 = arith.constant 12 : index
      %35 = vector.load %alloca[%c0_57, %c1_58, %c12_59] : memref<16x16x36xbf16, #tpu.memory_space<vmem>>, vector<16x15x4xbf16>
      tpu.vector_store %alloca[%c0_57, %c1_58, %c12_59], %34 {strides = array<i32>} : memref<16x16x36xbf16, #tpu.memory_space<vmem>>, vector<16x15x4xbf16>,
      %c0_60 = arith.constant 0 : index
      %c0_61 = arith.constant 0 : index
      %c0_62 = arith.constant 0 : index
      %c0_63 = arith.constant 0 : index
      %36 = vector.load %arg1[%c0_60, %c0_61, %c0_62, %c0_63] : memref<1x16x16x4xf32, #tpu.memory_space<vmem>>, vector<1x16x16x4xf32>
      %37 = vector.shape_cast %36 : vector<1x16x16x4xf32> to vector<16x16x4xf32>
      %38 = arith.truncf %37 : vector<16x16x4xf32> to vector<16x16x4xbf16>
      %c0_64 = arith.constant 0 : index
      %c0_65 = arith.constant 0 : index
      %c16 = arith.constant 16 : index
      %39 = vector.load %alloca[%c0_64, %c0_65, %c16] : memref<16x16x36xbf16, #tpu.memory_space<vmem>>, vector<16x16x4xbf16>
      tpu.vector_store %alloca[%c0_64, %c0_65, %c16], %38 {strides = array<i32>} : memref<16x16x36xbf16, #tpu.memory_space<vmem>>, vector<16x16x4xbf16>,
      %cst_66 = arith.constant 0.000000e+00 : bf16
      %40 = vector.broadcast %cst_66 : bf16 to vector<16x1x4xbf16>
      %c0_67 = arith.constant 0 : index
      %c15_68 = arith.constant 15 : index
      %c20 = arith.constant 20 : index
      %41 = vector.load %alloca[%c0_67, %c15_68, %c20] : memref<16x16x36xbf16, #tpu.memory_space<vmem>>, vector<16x1x4xbf16>
      tpu.vector_store %alloca[%c0_67, %c15_68, %c20], %40 {strides = array<i32>} : memref<16x16x36xbf16, #tpu.memory_space<vmem>>, vector<16x1x4xbf16>,
      %c0_69 = arith.constant 0 : index
      %c0_70 = arith.constant 0 : index
      %c1_71 = arith.constant 1 : index
      %c0_72 = arith.constant 0 : index
      %42 = vector.load %arg1[%c0_69, %c0_70, %c1_71, %c0_72] : memref<1x16x16x4xf32, #tpu.memory_space<vmem>>, vector<1x16x15x4xf32>
      %43 = vector.shape_cast %42 : vector<1x16x15x4xf32> to vector<16x15x4xf32>
      %44 = arith.truncf %43 : vector<16x15x4xf32> to vector<16x15x4xbf16>
      %c0_73 = arith.constant 0 : index
      %c0_74 = arith.constant 0 : index
      %c20_75 = arith.constant 20 : index
      %45 = vector.load %alloca[%c0_73, %c0_74, %c20_75] : memref<16x16x36xbf16, #tpu.memory_space<vmem>>, vector<16x15x4xbf16>
      tpu.vector_store %alloca[%c0_73, %c0_74, %c20_75], %44 {strides = array<i32>} : memref<16x16x36xbf16, #tpu.memory_space<vmem>>, vector<16x15x4xbf16>,
      %cst_76 = arith.constant 0.000000e+00 : bf16
      %46 = vector.broadcast %cst_76 : bf16 to vector<1x16x4xbf16>
      %c15_77 = arith.constant 15 : index
      %c0_78 = arith.constant 0 : index
      %c24 = arith.constant 24 : index
      %47 = vector.load %alloca[%c15_77, %c0_78, %c24] : memref<16x16x36xbf16, #tpu.memory_space<vmem>>, vector<1x16x4xbf16>
      tpu.vector_store %alloca[%c15_77, %c0_78, %c24], %46 {strides = array<i32>} : memref<16x16x36xbf16, #tpu.memory_space<vmem>>, vector<1x16x4xbf16>,
      %cst_79 = arith.constant 0.000000e+00 : bf16
      %48 = vector.broadcast %cst_79 : bf16 to vector<15x1x4xbf16>
      %c0_80 = arith.constant 0 : index
      %c0_81 = arith.constant 0 : index
      %c24_82 = arith.constant 24 : index
      %49 = vector.load %alloca[%c0_80, %c0_81, %c24_82] : memref<16x16x36xbf16, #tpu.memory_space<vmem>>, vector<15x1x4xbf16>
      tpu.vector_store %alloca[%c0_80, %c0_81, %c24_82], %48 {strides = array<i32>} : memref<16x16x36xbf16, #tpu.memory_space<vmem>>, vector<15x1x4xbf16>,
      %c0_83 = arith.constant 0 : index
      %c1_84 = arith.constant 1 : index
      %c0_85 = arith.constant 0 : index
      %c0_86 = arith.constant 0 : index
      %50 = vector.load %arg1[%c0_83, %c1_84, %c0_85, %c0_86] : memref<1x16x16x4xf32, #tpu.memory_space<vmem>>, vector<1x15x15x4xf32>
      %51 = vector.shape_cast %50 : vector<1x15x15x4xf32> to vector<15x15x4xf32>
      %52 = arith.truncf %51 : vector<15x15x4xf32> to vector<15x15x4xbf16>
      %c0_87 = arith.constant 0 : index
      %c1_88 = arith.constant 1 : index
      %c24_89 = arith.constant 24 : index
      %53 = vector.load %alloca[%c0_87, %c1_88, %c24_89] : memref<16x16x36xbf16, #tpu.memory_space<vmem>>, vector<15x15x4xbf16>
      tpu.vector_store %alloca[%c0_87, %c1_88, %c24_89], %52 {strides = array<i32>} : memref<16x16x36xbf16, #tpu.memory_space<vmem>>, vector<15x15x4xbf16>,
      %cst_90 = arith.constant 0.000000e+00 : bf16
      %54 = vector.broadcast %cst_90 : bf16 to vector<1x16x4xbf16>
      %c15_91 = arith.constant 15 : index
      %c0_92 = arith.constant 0 : index
      %c28 = arith.constant 28 : index
      %55 = vector.load %alloca[%c15_91, %c0_92, %c28] : memref<16x16x36xbf16, #tpu.memory_space<vmem>>, vector<1x16x4xbf16>
      tpu.vector_store %alloca[%c15_91, %c0_92, %c28], %54 {strides = array<i32>} : memref<16x16x36xbf16, #tpu.memory_space<vmem>>, vector<1x16x4xbf16>,
      %c0_93 = arith.constant 0 : index
      %c1_94 = arith.constant 1 : index
      %c0_95 = arith.constant 0 : index
      %c0_96 = arith.constant 0 : index
      %56 = vector.load %arg1[%c0_93, %c1_94, %c0_95, %c0_96] : memref<1x16x16x4xf32, #tpu.memory_space<vmem>>, vector<1x15x16x4xf32>
      %57 = vector.shape_cast %56 : vector<1x15x16x4xf32> to vector<15x16x4xf32>
      %58 = arith.truncf %57 : vector<15x16x4xf32> to vector<15x16x4xbf16>
      %c0_97 = arith.constant 0 : index
      %c0_98 = arith.constant 0 : index
      %c28_99 = arith.constant 28 : index
      %59 = vector.load %alloca[%c0_97, %c0_98, %c28_99] : memref<16x16x36xbf16, #tpu.memory_space<vmem>>, vector<15x16x4xbf16>
      tpu.vector_store %alloca[%c0_97, %c0_98, %c28_99], %58 {strides = array<i32>} : memref<16x16x36xbf16, #tpu.memory_space<vmem>>, vector<15x16x4xbf16>,
      %cst_100 = arith.constant 0.000000e+00 : bf16
      %60 = vector.broadcast %cst_100 : bf16 to vector<1x16x4xbf16>
      %c15_101 = arith.constant 15 : index
      %c0_102 = arith.constant 0 : index
      %c32 = arith.constant 32 : index
      %61 = vector.load %alloca[%c15_101, %c0_102, %c32] : memref<16x16x36xbf16, #tpu.memory_space<vmem>>, vector<1x16x4xbf16>
      tpu.vector_store %alloca[%c15_101, %c0_102, %c32], %60 {strides = array<i32>} : memref<16x16x36xbf16, #tpu.memory_space<vmem>>, vector<1x16x4xbf16>,
      %cst_103 = arith.constant 0.000000e+00 : bf16
      %62 = vector.broadcast %cst_103 : bf16 to vector<15x1x4xbf16>
      %c0_104 = arith.constant 0 : index
      %c15_105 = arith.constant 15 : index
      %c32_106 = arith.constant 32 : index
      %63 = vector.load %alloca[%c0_104, %c15_105, %c32_106] : memref<16x16x36xbf16, #tpu.memory_space<vmem>>, vector<15x1x4xbf16>
      tpu.vector_store %alloca[%c0_104, %c15_105, %c32_106], %62 {strides = array<i32>} : memref<16x16x36xbf16, #tpu.memory_space<vmem>>, vector<15x1x4xbf16>,
      %c0_107 = arith.constant 0 : index
      %c1_108 = arith.constant 1 : index
      %c1_109 = arith.constant 1 : index
      %c0_110 = arith.constant 0 : index
      %64 = vector.load %arg1[%c0_107, %c1_108, %c1_109, %c0_110] : memref<1x16x16x4xf32, #tpu.memory_space<vmem>>, vector<1x15x15x4xf32>
      %65 = vector.shape_cast %64 : vector<1x15x15x4xf32> to vector<15x15x4xf32>
      %66 = arith.truncf %65 : vector<15x15x4xf32> to vector<15x15x4xbf16>
      %c0_111 = arith.constant 0 : index
      %c0_112 = arith.constant 0 : index
      %c32_113 = arith.constant 32 : index
      %67 = vector.load %alloca[%c0_111, %c0_112, %c32_113] : memref<16x16x36xbf16, #tpu.memory_space<vmem>>, vector<15x15x4xbf16>
      tpu.vector_store %alloca[%c0_111, %c0_112, %c32_113], %66 {strides = array<i32>} : memref<16x16x36xbf16, #tpu.memory_space<vmem>>, vector<15x15x4xbf16>,
      %c0_114 = arith.constant 0 : index
      %c0_115 = arith.constant 0 : index
      %c0_116 = arith.constant 0 : index
      %68 = vector.load %alloca[%c0_114, %c0_115, %c0_116] : memref<16x16x36xbf16, #tpu.memory_space<vmem>>, vector<16x16x36xbf16>
      %69 = vector.shape_cast %68 : vector<16x16x36xbf16> to vector<256x36xbf16>
      %c0_117 = arith.constant 0 : index
      %c0_118 = arith.constant 0 : index
      %70 = vector.load %arg2[%c0_117, %c0_118] : memref<36x8xbf16, #tpu.memory_space<vmem>>, vector<36x8xbf16>
      %cst_119 = arith.constant dense<0.000000e+00> : vector<256x8xf32>
      %71 = tpu.matmul %69, %70, %cst_119 {dimension_numbers = #tpu.dot_dimension_numbers<[1], [0], [0], [1], [0, 0, 1, 1], [], []>} : vector<256x36xbf16>, vector<36x8xbf16>, vector<256x8xf32> -> vector<256x8xf32>
      %c0_120 = arith.constant 0 : index
      %c0_121 = arith.constant 0 : index
      %72 = vector.load %arg3[%c0_120, %c0_121] : memref<1x8xf32, #tpu.memory_space<vmem>>, vector<1x8xf32>
      %73 = vector.broadcast %72 : vector<1x8xf32> to vector<256x8xf32>
      %74 = arith.addf %71, %73 : vector<256x8xf32>
      %cst_122 = arith.constant 0.000000e+00 : f32
      %75 = vector.broadcast %cst_122 : f32 to vector<256x8xf32>
      %76 = arith.maximumf %74, %75 : vector<256x8xf32>
      %77 = vector.shape_cast %76 : vector<256x8xf32> to vector<16x16x8xf32>
      %c1_123 = arith.constant 1 : index
      %c1_124 = arith.constant 1 : index
      %c0_125 = arith.constant 0 : index
      %78 = vector.load %arg9[%c1_123, %c1_124, %c0_125] : memref<18x18x8xf32, #tpu.memory_space<vmem>>, vector<16x16x8xf32>
      tpu.vector_store %arg9[%c1_123, %c1_124, %c0_125], %77 {strides = array<i32>} : memref<18x18x8xf32, #tpu.memory_space<vmem>>, vector<16x16x8xf32>,
      tpu.yield
    }) : () -> ()
    "tpu.region"() ({
      %alloca = memref.alloca() : memref<8x8x72xbf16, #tpu.memory_space<vmem>>
      %c0_12 = arith.constant 0 : index
      %c0_13 = arith.constant 0 : index
      %c0_14 = arith.constant 0 : index
      %8 = tpu.strided_load %arg9[%c0_12, %c0_13, %c0_14] {strides = array<i32: 1, 2, 1>} : memref<18x18x8xf32, #tpu.memory_space<vmem>>, vector<18x8x8xf32>
      %c0_15 = arith.constant 0 : index
      %c1_16 = arith.constant 1 : index
      %c0_17 = arith.constant 0 : index
      %9 = tpu.strided_load %arg9[%c0_15, %c1_16, %c0_17] {strides = array<i32: 1, 2, 1>} : memref<18x18x8xf32, #tpu.memory_space<vmem>>, vector<18x8x8xf32>
      %10 = arith.addf %8, %9 : vector<18x8x8xf32>
      %11 = vector.shape_cast %10 : vector<18x8x8xf32> to vector<9x2x8x8xf32>
      %12 = vector.extract_strided_slice %11 {offsets = [0, 0, 0, 0], sizes = [9, 1, 8, 8], strides = [1, 1, 1, 1]} : vector<9x2x8x8xf32> to vector<9x1x8x8xf32>
      %13 = vector.shape_cast %12 : vector<9x1x8x8xf32> to vector<9x8x8xf32>
      %14 = vector.extract_strided_slice %11 {offsets = [0, 1, 0, 0], sizes = [9, 1, 8, 8], strides = [1, 1, 1, 1]} : vector<9x2x8x8xf32> to vector<9x1x8x8xf32>
      %15 = vector.shape_cast %14 : vector<9x1x8x8xf32> to vector<9x8x8xf32>
      %16 = arith.addf %13, %15 : vector<9x8x8xf32>
      %17 = vector.extract_strided_slice %16 {offsets = [0, 0, 0], sizes = [8, 8, 8], strides = [1, 1, 1]} : vector<9x8x8xf32> to vector<8x8x8xf32>
      %18 = vector.extract_strided_slice %15 {offsets = [0, 0, 0], sizes = [8, 8, 8], strides = [1, 1, 1]} : vector<9x8x8xf32> to vector<8x8x8xf32>
      %19 = vector.extract_strided_slice %13 {offsets = [1, 0, 0], sizes = [8, 8, 8], strides = [1, 1, 1]} : vector<9x8x8xf32> to vector<8x8x8xf32>
      %20 = arith.addf %18, %19 : vector<8x8x8xf32>
      %21 = vector.extract_strided_slice %16 {offsets = [1, 0, 0], sizes = [8, 8, 8], strides = [1, 1, 1]} : vector<9x8x8xf32> to vector<8x8x8xf32>
      %22 = arith.truncf %17 : vector<8x8x8xf32> to vector<8x8x8xbf16>
      %c0_18 = arith.constant 0 : index
      %c0_19 = arith.constant 0 : index
      %c0_20 = arith.constant 0 : index
      %23 = vector.load %alloca[%c0_18, %c0_19, %c0_20] : memref<8x8x72xbf16, #tpu.memory_space<vmem>>, vector<8x8x8xbf16>
      tpu.vector_store %alloca[%c0_18, %c0_19, %c0_20], %22 {strides = array<i32>} : memref<8x8x72xbf16, #tpu.memory_space<vmem>>, vector<8x8x8xbf16>,
      %24 = arith.truncf %20 : vector<8x8x8xf32> to vector<8x8x8xbf16>
      %c0_21 = arith.constant 0 : index
      %c0_22 = arith.constant 0 : index
      %c24 = arith.constant 24 : index
      %25 = vector.load %alloca[%c0_21, %c0_22, %c24] : memref<8x8x72xbf16, #tpu.memory_space<vmem>>, vector<8x8x8xbf16>
      tpu.vector_store %alloca[%c0_21, %c0_22, %c24], %24 {strides = array<i32>} : memref<8x8x72xbf16, #tpu.memory_space<vmem>>, vector<8x8x8xbf16>,
      %26 = arith.truncf %21 : vector<8x8x8xf32> to vector<8x8x8xbf16>
      %c0_23 = arith.constant 0 : index
      %c0_24 = arith.constant 0 : index
      %c48 = arith.constant 48 : index
      %27 = vector.load %alloca[%c0_23, %c0_24, %c48] : memref<8x8x72xbf16, #tpu.memory_space<vmem>>, vector<8x8x8xbf16>
      tpu.vector_store %alloca[%c0_23, %c0_24, %c48], %26 {strides = array<i32>} : memref<8x8x72xbf16, #tpu.memory_space<vmem>>, vector<8x8x8xbf16>,
      %c0_25 = arith.constant 0 : index
      %c1_26 = arith.constant 1 : index
      %c0_27 = arith.constant 0 : index
      %28 = tpu.strided_load %arg9[%c0_25, %c1_26, %c0_27] {strides = array<i32: 1, 2, 1>} : memref<18x18x8xf32, #tpu.memory_space<vmem>>, vector<18x8x8xf32>
      %c0_28 = arith.constant 0 : index
      %c2 = arith.constant 2 : index
      %c0_29 = arith.constant 0 : index
      %29 = tpu.strided_load %arg9[%c0_28, %c2, %c0_29] {strides = array<i32: 1, 2, 1>} : memref<18x18x8xf32, #tpu.memory_space<vmem>>, vector<18x8x8xf32>
      %30 = arith.addf %28, %29 : vector<18x8x8xf32>
      %31 = vector.shape_cast %30 : vector<18x8x8xf32> to vector<9x2x8x8xf32>
      %32 = vector.extract_strided_slice %31 {offsets = [0, 0, 0, 0], sizes = [9, 1, 8, 8], strides = [1, 1, 1, 1]} : vector<9x2x8x8xf32> to vector<9x1x8x8xf32>
      %33 = vector.shape_cast %32 : vector<9x1x8x8xf32> to vector<9x8x8xf32>
      %34 = vector.extract_strided_slice %31 {offsets = [0, 1, 0, 0], sizes = [9, 1, 8, 8], strides = [1, 1, 1, 1]} : vector<9x2x8x8xf32> to vector<9x1x8x8xf32>
      %35 = vector.shape_cast %34 : vector<9x1x8x8xf32> to vector<9x8x8xf32>
      %36 = arith.addf %33, %35 : vector<9x8x8xf32>
      %37 = vector.extract_strided_slice %36 {offsets = [0, 0, 0], sizes = [8, 8, 8], strides = [1, 1, 1]} : vector<9x8x8xf32> to vector<8x8x8xf32>
      %38 = vector.extract_strided_slice %35 {offsets = [0, 0, 0], sizes = [8, 8, 8], strides = [1, 1, 1]} : vector<9x8x8xf32> to vector<8x8x8xf32>
      %39 = vector.extract_strided_slice %33 {offsets = [1, 0, 0], sizes = [8, 8, 8], strides = [1, 1, 1]} : vector<9x8x8xf32> to vector<8x8x8xf32>
      %40 = arith.addf %38, %39 : vector<8x8x8xf32>
      %41 = vector.extract_strided_slice %36 {offsets = [1, 0, 0], sizes = [8, 8, 8], strides = [1, 1, 1]} : vector<9x8x8xf32> to vector<8x8x8xf32>
      %42 = arith.truncf %37 : vector<8x8x8xf32> to vector<8x8x8xbf16>
      %c0_30 = arith.constant 0 : index
      %c0_31 = arith.constant 0 : index
      %c8 = arith.constant 8 : index
      %43 = vector.load %alloca[%c0_30, %c0_31, %c8] : memref<8x8x72xbf16, #tpu.memory_space<vmem>>, vector<8x8x8xbf16>
      tpu.vector_store %alloca[%c0_30, %c0_31, %c8], %42 {strides = array<i32>} : memref<8x8x72xbf16, #tpu.memory_space<vmem>>, vector<8x8x8xbf16>,
      %44 = arith.truncf %40 : vector<8x8x8xf32> to vector<8x8x8xbf16>
      %c0_32 = arith.constant 0 : index
      %c0_33 = arith.constant 0 : index
      %c32 = arith.constant 32 : index
      %45 = vector.load %alloca[%c0_32, %c0_33, %c32] : memref<8x8x72xbf16, #tpu.memory_space<vmem>>, vector<8x8x8xbf16>
      tpu.vector_store %alloca[%c0_32, %c0_33, %c32], %44 {strides = array<i32>} : memref<8x8x72xbf16, #tpu.memory_space<vmem>>, vector<8x8x8xbf16>,
      %46 = arith.truncf %41 : vector<8x8x8xf32> to vector<8x8x8xbf16>
      %c0_34 = arith.constant 0 : index
      %c0_35 = arith.constant 0 : index
      %c56 = arith.constant 56 : index
      %47 = vector.load %alloca[%c0_34, %c0_35, %c56] : memref<8x8x72xbf16, #tpu.memory_space<vmem>>, vector<8x8x8xbf16>
      tpu.vector_store %alloca[%c0_34, %c0_35, %c56], %46 {strides = array<i32>} : memref<8x8x72xbf16, #tpu.memory_space<vmem>>, vector<8x8x8xbf16>,
      %c0_36 = arith.constant 0 : index
      %c2_37 = arith.constant 2 : index
      %c0_38 = arith.constant 0 : index
      %48 = tpu.strided_load %arg9[%c0_36, %c2_37, %c0_38] {strides = array<i32: 1, 2, 1>} : memref<18x18x8xf32, #tpu.memory_space<vmem>>, vector<18x8x8xf32>
      %c0_39 = arith.constant 0 : index
      %c3 = arith.constant 3 : index
      %c0_40 = arith.constant 0 : index
      %49 = tpu.strided_load %arg9[%c0_39, %c3, %c0_40] {strides = array<i32: 1, 2, 1>} : memref<18x18x8xf32, #tpu.memory_space<vmem>>, vector<18x8x8xf32>
      %50 = arith.addf %48, %49 : vector<18x8x8xf32>
      %51 = vector.shape_cast %50 : vector<18x8x8xf32> to vector<9x2x8x8xf32>
      %52 = vector.extract_strided_slice %51 {offsets = [0, 0, 0, 0], sizes = [9, 1, 8, 8], strides = [1, 1, 1, 1]} : vector<9x2x8x8xf32> to vector<9x1x8x8xf32>
      %53 = vector.shape_cast %52 : vector<9x1x8x8xf32> to vector<9x8x8xf32>
      %54 = vector.extract_strided_slice %51 {offsets = [0, 1, 0, 0], sizes = [9, 1, 8, 8], strides = [1, 1, 1, 1]} : vector<9x2x8x8xf32> to vector<9x1x8x8xf32>
      %55 = vector.shape_cast %54 : vector<9x1x8x8xf32> to vector<9x8x8xf32>
      %56 = arith.addf %53, %55 : vector<9x8x8xf32>
      %57 = vector.extract_strided_slice %56 {offsets = [0, 0, 0], sizes = [8, 8, 8], strides = [1, 1, 1]} : vector<9x8x8xf32> to vector<8x8x8xf32>
      %58 = vector.extract_strided_slice %55 {offsets = [0, 0, 0], sizes = [8, 8, 8], strides = [1, 1, 1]} : vector<9x8x8xf32> to vector<8x8x8xf32>
      %59 = vector.extract_strided_slice %53 {offsets = [1, 0, 0], sizes = [8, 8, 8], strides = [1, 1, 1]} : vector<9x8x8xf32> to vector<8x8x8xf32>
      %60 = arith.addf %58, %59 : vector<8x8x8xf32>
      %61 = vector.extract_strided_slice %56 {offsets = [1, 0, 0], sizes = [8, 8, 8], strides = [1, 1, 1]} : vector<9x8x8xf32> to vector<8x8x8xf32>
      %62 = arith.truncf %57 : vector<8x8x8xf32> to vector<8x8x8xbf16>
      %c0_41 = arith.constant 0 : index
      %c0_42 = arith.constant 0 : index
      %c16 = arith.constant 16 : index
      %63 = vector.load %alloca[%c0_41, %c0_42, %c16] : memref<8x8x72xbf16, #tpu.memory_space<vmem>>, vector<8x8x8xbf16>
      tpu.vector_store %alloca[%c0_41, %c0_42, %c16], %62 {strides = array<i32>} : memref<8x8x72xbf16, #tpu.memory_space<vmem>>, vector<8x8x8xbf16>,
      %64 = arith.truncf %60 : vector<8x8x8xf32> to vector<8x8x8xbf16>
      %c0_43 = arith.constant 0 : index
      %c0_44 = arith.constant 0 : index
      %c40 = arith.constant 40 : index
      %65 = vector.load %alloca[%c0_43, %c0_44, %c40] : memref<8x8x72xbf16, #tpu.memory_space<vmem>>, vector<8x8x8xbf16>
      tpu.vector_store %alloca[%c0_43, %c0_44, %c40], %64 {strides = array<i32>} : memref<8x8x72xbf16, #tpu.memory_space<vmem>>, vector<8x8x8xbf16>,
      %66 = arith.truncf %61 : vector<8x8x8xf32> to vector<8x8x8xbf16>
      %c0_45 = arith.constant 0 : index
      %c0_46 = arith.constant 0 : index
      %c64 = arith.constant 64 : index
      %67 = vector.load %alloca[%c0_45, %c0_46, %c64] : memref<8x8x72xbf16, #tpu.memory_space<vmem>>, vector<8x8x8xbf16>
      tpu.vector_store %alloca[%c0_45, %c0_46, %c64], %66 {strides = array<i32>} : memref<8x8x72xbf16, #tpu.memory_space<vmem>>, vector<8x8x8xbf16>,
      %c0_47 = arith.constant 0 : index
      %c0_48 = arith.constant 0 : index
      %c0_49 = arith.constant 0 : index
      %68 = vector.load %alloca[%c0_47, %c0_48, %c0_49] : memref<8x8x72xbf16, #tpu.memory_space<vmem>>, vector<8x8x72xbf16>
      %69 = vector.shape_cast %68 : vector<8x8x72xbf16> to vector<64x72xbf16>
      %c0_50 = arith.constant 0 : index
      %c0_51 = arith.constant 0 : index
      %70 = vector.load %arg4[%c0_50, %c0_51] : memref<72x8xbf16, #tpu.memory_space<vmem>>, vector<72x8xbf16>
      %cst_52 = arith.constant dense<0.000000e+00> : vector<64x8xf32>
      %71 = tpu.matmul %69, %70, %cst_52 {dimension_numbers = #tpu.dot_dimension_numbers<[1], [0], [0], [1], [0, 0, 1, 1], [], []>} : vector<64x72xbf16>, vector<72x8xbf16>, vector<64x8xf32> -> vector<64x8xf32>
      %c0_53 = arith.constant 0 : index
      %c0_54 = arith.constant 0 : index
      %72 = vector.load %arg5[%c0_53, %c0_54] : memref<1x8xf32, #tpu.memory_space<vmem>>, vector<1x8xf32>
      %73 = vector.broadcast %72 : vector<1x8xf32> to vector<64x8xf32>
      %74 = arith.addf %71, %73 : vector<64x8xf32>
      %75 = vector.shape_cast %74 : vector<64x8xf32> to vector<8x8x8xf32>
      %c0_55 = arith.constant 0 : index
      %c0_56 = arith.constant 0 : index
      %c0_57 = arith.constant 0 : index
      %c0_58 = arith.constant 0 : index
      %76 = tpu.strided_load %arg1[%c0_55, %c0_56, %c0_57, %c0_58] {strides = array<i32: 1, 1, 2, 1>} : memref<1x16x16x4xf32, #tpu.memory_space<vmem>>, vector<1x16x8x4xf32>
      %77 = vector.shape_cast %76 : vector<1x16x8x4xf32> to vector<16x8x4xf32>
      %c0_59 = arith.constant 0 : index
      %c0_60 = arith.constant 0 : index
      %c1_61 = arith.constant 1 : index
      %c0_62 = arith.constant 0 : index
      %78 = tpu.strided_load %arg1[%c0_59, %c0_60, %c1_61, %c0_62] {strides = array<i32: 1, 1, 2, 1>} : memref<1x16x16x4xf32, #tpu.memory_space<vmem>>, vector<1x16x8x4xf32>
      %79 = vector.shape_cast %78 : vector<1x16x8x4xf32> to vector<16x8x4xf32>
      %80 = arith.addf %77, %79 : vector<16x8x4xf32>
      %81 = vector.shape_cast %80 : vector<16x8x4xf32> to vector<8x2x8x4xf32>
      %82 = vector.extract_strided_slice %81 {offsets = [0, 0, 0, 0], sizes = [8, 1, 8, 4], strides = [1, 1, 1, 1]} : vector<8x2x8x4xf32> to vector<8x1x8x4xf32>
      %83 = vector.shape_cast %82 : vector<8x1x8x4xf32> to vector<8x8x4xf32>
      %84 = vector.extract_strided_slice %81 {offsets = [0, 1, 0, 0], sizes = [8, 1, 8, 4], strides = [1, 1, 1, 1]} : vector<8x2x8x4xf32> to vector<8x1x8x4xf32>
      %85 = vector.shape_cast %84 : vector<8x1x8x4xf32> to vector<8x8x4xf32>
      %86 = arith.addf %83, %85 : vector<8x8x4xf32>
      %87 = vector.shape_cast %86 : vector<8x8x4xf32> to vector<64x4xf32>
      %88 = arith.truncf %87 : vector<64x4xf32> to vector<64x4xbf16>
      %c0_63 = arith.constant 0 : index
      %c0_64 = arith.constant 0 : index
      %89 = vector.load %arg6[%c0_63, %c0_64] : memref<4x8xbf16, #tpu.memory_space<vmem>>, vector<4x8xbf16>
      %cst_65 = arith.constant dense<0.000000e+00> : vector<64x8xf32>
      %90 = tpu.matmul %88, %89, %cst_65 {dimension_numbers = #tpu.dot_dimension_numbers<[1], [0], [0], [1], [0, 0, 1, 1], [], []>} : vector<64x4xbf16>, vector<4x8xbf16>, vector<64x8xf32> -> vector<64x8xf32>
      %91 = vector.shape_cast %90 : vector<64x8xf32> to vector<8x8x8xf32>
      %92 = arith.addf %75, %91 : vector<8x8x8xf32>
      %c0_66 = arith.constant 0 : index
      %c0_67 = arith.constant 0 : index
      %93 = vector.load %arg7[%c0_66, %c0_67] : memref<1x8xf32, #tpu.memory_space<vmem>>, vector<1x8xf32>
      %94 = vector.shape_cast %93 : vector<1x8xf32> to vector<1x1x8xf32>
      %95 = vector.broadcast %94 : vector<1x1x8xf32> to vector<8x8x8xf32>
      %96 = arith.addf %92, %95 : vector<8x8x8xf32>
      %c0_68 = arith.constant 0 : index
      %c0_69 = arith.constant 0 : index
      %c0_70 = arith.constant 0 : index
      %c0_71 = arith.constant 0 : index
      %97 = vector.load %arg8[%c0_68, %c0_69, %c0_70, %c0_71] : memref<1x8x8x8xf32, #tpu.memory_space<vmem>>, vector<1x8x8x8xf32>
      %98 = vector.shape_cast %97 : vector<1x8x8x8xf32> to vector<8x8x8xf32>
      %99 = vector.shape_cast %96 : vector<8x8x8xf32> to vector<1x8x8x8xf32>
      tpu.vector_store %arg8[%c0_68, %c0_69, %c0_70, %c0_71], %99 {strides = array<i32>} : memref<1x8x8x8xf32, #tpu.memory_space<vmem>>, vector<1x8x8x8xf32>,
      tpu.yield
    }) : () -> ()
    return
  }
  func.func @transform_0(%arg0: i32) -> (i32, i32, i32, i32) {
    %c0_i32 = arith.constant 0 : i32
    %c0_i32_0 = arith.constant 0 : i32
    %c0_i32_1 = arith.constant 0 : i32
    %c0_i32_2 = arith.constant 0 : i32
    return %arg0, %c0_i32, %c0_i32_0, %c0_i32_1 : i32, i32, i32, i32
  }
  func.func @transform_1(%arg0: i32) -> (i32, i32) {
    %c0_i32 = arith.constant 0 : i32
    %c0_i32_0 = arith.constant 0 : i32
    %c0_i32_1 = arith.constant 0 : i32
    return %c0_i32, %c0_i32_0 : i32, i32
  }
  func.func @transform_2(%arg0: i32) -> (i32, i32) {
    %c0_i32 = arith.constant 0 : i32
    %c0_i32_0 = arith.constant 0 : i32
    %c0_i32_1 = arith.constant 0 : i32
    return %c0_i32, %c0_i32_0 : i32, i32
  }
  func.func @transform_3(%arg0: i32) -> (i32, i32) {
    %c0_i32 = arith.constant 0 : i32
    %c0_i32_0 = arith.constant 0 : i32
    %c0_i32_1 = arith.constant 0 : i32
    return %c0_i32, %c0_i32_0 : i32, i32
  }
  func.func @transform_4(%arg0: i32) -> (i32, i32) {
    %c0_i32 = arith.constant 0 : i32
    %c0_i32_0 = arith.constant 0 : i32
    %c0_i32_1 = arith.constant 0 : i32
    return %c0_i32, %c0_i32_0 : i32, i32
  }
  func.func @transform_5(%arg0: i32) -> (i32, i32) {
    %c0_i32 = arith.constant 0 : i32
    %c0_i32_0 = arith.constant 0 : i32
    %c0_i32_1 = arith.constant 0 : i32
    return %c0_i32, %c0_i32_0 : i32, i32
  }
  func.func @transform_6(%arg0: i32) -> (i32, i32) {
    %c0_i32 = arith.constant 0 : i32
    %c0_i32_0 = arith.constant 0 : i32
    %c0_i32_1 = arith.constant 0 : i32
    return %c0_i32, %c0_i32_0 : i32, i32
  }
  func.func @transform_7(%arg0: i32) -> (i32, i32, i32, i32) {
    %c0_i32 = arith.constant 0 : i32
    %c0_i32_0 = arith.constant 0 : i32
    %c0_i32_1 = arith.constant 0 : i32
    %c0_i32_2 = arith.constant 0 : i32
    return %arg0, %c0_i32, %c0_i32_0, %c0_i32_1 : i32, i32, i32, i32
  }
}

</mosaic_0001>

<llo_original>
// kernel: tpu_custom_call.1
$region0: #{tpu_custom_call.1}
  #allocation0 [shape = 'u32[]', space=smem, size = 0x4, offset = 0x4, fixed_abs, tag = 'smem constant byte address 0x4 - core index']
  #allocation1 [shape = 'u32[144,128]{1,0:T(1,128)}', space=vmem, size = 0x12000, scoped, tag = 'internal scratch']
  #allocation2 [shape = 'f32[18,18,8]{2,1,0:T(8,128)}', space=vmem, size = 0x36000, scoped, tag = 'scratch operand']
  %s0 = inlined_call_operand.vmem [shape: f32[2,16,16,4], index: 0, kind: input, shape index: {}]
  %s1 = inlined_call_operand.vmem [shape: bf16[36,8], index: 1, kind: input, shape index: {}]
  %s2 = inlined_call_operand.vmem [shape: f32[1,8], index: 2, kind: input, shape index: {}]
  %s3 = inlined_call_operand.vmem [shape: bf16[72,8], index: 3, kind: input, shape index: {}]
  %s4 = inlined_call_operand.vmem [shape: f32[1,8], index: 4, kind: input, shape index: {}]
  %s5 = inlined_call_operand.vmem [shape: bf16[4,8], index: 5, kind: input, shape index: {}]
  %s6 = inlined_call_operand.vmem [shape: f32[1,8], index: 6, kind: input, shape index: {}]
  %s7 = inlined_call_operand.hbm [shape: f32[2,8,8,8], index: 7, kind: output, shape index: {}]
  %s8 = sld [smem:[#allocation0]]
  $region63: #{tpu_custom_call.1} parent=0
    _
  %s10 = ssub.s32 1, %s8
  %s11 = scalar_select 0, %s10, %s8
  $region1: #{tpu_custom_call.1} parent=0
    #allocation3 [shape = 'u8[65536]{0}', space=vmem, size = 0x10000, scoped, tag = 'output window, operand 0']
    #allocation4 [shape = 's32[2]{0}', space=sflag, size = 0x8, scoped, tag = 'scoped memory for tpu_custom_call.1']
    %12 = vsyncpa [#allocation4], 0
    %s13 = scalar_lea.sflag [#allocation4], 1
    %14 = vsyncpa %s13, 0
    loop: start=0, step=1, limit=4
    $region2: #{tpu_custom_call.1} parent=1 // loop_pre_header
      _
    $region3: #{tpu_custom_call.1} parent=1 // loop_header
      %s16 = sphi 0, %s20
      %p17 = scmp.ge.s32.totalorder %s16, 4
      %s26 = sphi 0, %s28
      %s29 = sphi 0, %s26
      %s30 = sphi 0, %s29
      %s46 = sphi 0, %s30
      %s50 = sphi 0, %s50
      %s52 = sphi 0, %s50
      %s53 = sphi 0, %s52
      %s67 = sphi 0, %s53
      %s71 = sphi 0, %s71
      %s73 = sphi 0, %s71
      %s74 = sphi 0, %s73
      %s88 = sphi 0, %s74
      %s92 = sphi 0, %s92
      %s94 = sphi 0, %s92
      %s95 = sphi 0, %s94
      %s109 = sphi 0, %s95
      %s113 = sphi 0, %s113
      %s115 = sphi 0, %s113
      %s116 = sphi 0, %s115
      %s130 = sphi 0, %s116
      %s134 = sphi 0, %s134
      %s136 = sphi 0, %s134
      %s137 = sphi 0, %s136
      %s151 = sphi 0, %s137
      %s155 = sphi 0, %s155
      %s157 = sphi 0, %s155
      %s158 = sphi 0, %s157
      %s172 = sphi 0, %s158
      %s178 = sphi 0, %s180
      %s181 = sphi 0, %s178
      %s182 = sphi 0, %s181
      %s198 = sphi 0, %s182
    $region4: #{tpu_custom_call.1} parent=1 // loop_header_branch
      %19 = sbr.rel (%p17) target = $region8
    $region5: #{tpu_custom_call.1} parent=1 // loop_body
      %s21 = ssub.s32 %s16, 1
      %s22 = ssub.s32 %s16, 2
      %s23 = sadd.s32 %s16, 1
      %s24 = ssub.s32 %s16, %s23
      %p25 = scmp.eq.s32.totalorder %s24, 0
      %s27 = sadd.s32 %s26, 1
      %s28 = scalar_select %p25, %s26, %s27
      %p31 = pneg %p25
      %p32 = scmp.eq.s32.totalorder %s16, 1
      %p33 = por %p31, %p32
      %p34 = scmp.ne.s32.totalorder %s26, %s29
      %p35 = scmp.eq.s32.totalorder %s16, 0
      %p36 = por %p34, %p35
      %p37 = scmp.ne.s32.totalorder %s26, %s29
      %p38 = scmp.eq.s32.totalorder %s21, 1
      %p39 = por %p37, %p38
      %p40 = scmp.ne.s32.totalorder %s29, %s30
      %p41 = scmp.eq.s32.totalorder %s21, 0
      %p42 = por %p40, %p41
      %p43 = scmp.ne.s32.totalorder %s29, %s30
      %p44 = scmp.eq.s32.totalorder %s22, 1
      %p45 = por %p43, %p44
      %p47 = scmp.ne.s32.totalorder %s30, %s46
      %p48 = scmp.eq.s32.totalorder %s22, 0
      %p49 = por %p47, %p48
      %s51 = sadd.s32 %s50, 1
      %p54 = scmp.eq.s32.totalorder %s16, 1
      %p55 = scmp.ne.s32.totalorder %s50, %s52
      %p56 = scmp.eq.s32.totalorder %s16, 0
      %p57 = por %p55, %p56
      %p58 = scmp.ne.s32.totalorder %s50, %s52
      %p59 = scmp.eq.s32.totalorder %s21, 1
      %p60 = por %p58, %p59
      %p61 = scmp.ne.s32.totalorder %s52, %s53
      %p62 = scmp.eq.s32.totalorder %s21, 0
      %p63 = por %p61, %p62
      %p64 = scmp.ne.s32.totalorder %s52, %s53
      %p65 = scmp.eq.s32.totalorder %s22, 1
      %p66 = por %p64, %p65
      %p68 = scmp.ne.s32.totalorder %s53, %s67
      %p69 = scmp.eq.s32.totalorder %s22, 0
      %p70 = por %p68, %p69
      %s72 = sadd.s32 %s71, 1
      %p75 = scmp.eq.s32.totalorder %s16, 1
      %p76 = scmp.ne.s32.totalorder %s71, %s73
      %p77 = scmp.eq.s32.totalorder %s16, 0
      %p78 = por %p76, %p77
      %p79 = scmp.ne.s32.totalorder %s71, %s73
      %p80 = scmp.eq.s32.totalorder %s21, 1
      %p81 = por %p79, %p80
      %p82 = scmp.ne.s32.totalorder %s73, %s74
      %p83 = scmp.eq.s32.totalorder %s21, 0
      %p84 = por %p82, %p83
      %p85 = scmp.ne.s32.totalorder %s73, %s74
      %p86 = scmp.eq.s32.totalorder %s22, 1
      %p87 = por %p85, %p86
      %p89 = scmp.ne.s32.totalorder %s74, %s88
      %p90 = scmp.eq.s32.totalorder %s22, 0
      %p91 = por %p89, %p90
      %s93 = sadd.s32 %s92, 1
      %p96 = scmp.eq.s32.totalorder %s16, 1
      %p97 = scmp.ne.s32.totalorder %s92, %s94
      %p98 = scmp.eq.s32.totalorder %s16, 0
      %p99 = por %p97, %p98
      %p100 = scmp.ne.s32.totalorder %s92, %s94
      %p101 = scmp.eq.s32.totalorder %s21, 1
      %p102 = por %p100, %p101
      %p103 = scmp.ne.s32.totalorder %s94, %s95
      %p104 = scmp.eq.s32.totalorder %s21, 0
      %p105 = por %p103, %p104
      %p106 = scmp.ne.s32.totalorder %s94, %s95
      %p107 = scmp.eq.s32.totalorder %s22, 1
      %p108 = por %p106, %p107
      %p110 = scmp.ne.s32.totalorder %s95, %s109
      %p111 = scmp.eq.s32.totalorder %s22, 0
      %p112 = por %p110, %p111
      %s114 = sadd.s32 %s113, 1
      %p117 = scmp.eq.s32.totalorder %s16, 1
      %p118 = scmp.ne.s32.totalorder %s113, %s115
      %p119 = scmp.eq.s32.totalorder %s16, 0
      %p120 = por %p118, %p119
      %p121 = scmp.ne.s32.totalorder %s113, %s115
      %p122 = scmp.eq.s32.totalorder %s21, 1
      %p123 = por %p121, %p122
      %p124 = scmp.ne.s32.totalorder %s115, %s116
      %p125 = scmp.eq.s32.totalorder %s21, 0
      %p126 = por %p124, %p125
      %p127 = scmp.ne.s32.totalorder %s115, %s116
      %p128 = scmp.eq.s32.totalorder %s22, 1
      %p129 = por %p127, %p128
      %p131 = scmp.ne.s32.totalorder %s116, %s130
      %p132 = scmp.eq.s32.totalorder %s22, 0
      %p133 = por %p131, %p132
      %s135 = sadd.s32 %s134, 1
      %p138 = scmp.eq.s32.totalorder %s16, 1
      %p139 = scmp.ne.s32.totalorder %s134, %s136
      %p140 = scmp.eq.s32.totalorder %s16, 0
      %p141 = por %p139, %p140
      %p142 = scmp.ne.s32.totalorder %s134, %s136
      %p143 = scmp.eq.s32.totalorder %s21, 1
      %p144 = por %p142, %p143
      %p145 = scmp.ne.s32.totalorder %s136, %s137
      %p146 = scmp.eq.s32.totalorder %s21, 0
      %p147 = por %p145, %p146
      %p148 = scmp.ne.s32.totalorder %s136, %s137
      %p149 = scmp.eq.s32.totalorder %s22, 1
      %p150 = por %p148, %p149
      %p152 = scmp.ne.s32.totalorder %s137, %s151
      %p153 = scmp.eq.s32.totalorder %s22, 0
      %p154 = por %p152, %p153
      %s156 = sadd.s32 %s155, 1
      %p159 = scmp.eq.s32.totalorder %s16, 1
      %p160 = scmp.ne.s32.totalorder %s155, %s157
      %p161 = scmp.eq.s32.totalorder %s16, 0
      %p162 = por %p160, %p161
      %p163 = scmp.ne.s32.totalorder %s155, %s157
      %p164 = scmp.eq.s32.totalorder %s21, 1
      %p165 = por %p163, %p164
      %p166 = scmp.ne.s32.totalorder %s157, %s158
      %p167 = scmp.eq.s32.totalorder %s21, 0
      %p168 = por %p166, %p167
      %p169 = scmp.ne.s32.totalorder %s157, %s158
      %p170 = scmp.eq.s32.totalorder %s22, 1
      %p171 = por %p169, %p170
      %p173 = scmp.ne.s32.totalorder %s158, %s172
      %p174 = scmp.eq.s32.totalorder %s22, 0
      %p175 = por %p173, %p174
      %s176 = ssub.s32 %s16, %s23
      %p177 = scmp.eq.s32.totalorder %s176, 0
      %s179 = sadd.s32 %s178, 1
      %s180 = scalar_select %p177, %s178, %s179
      %p183 = pneg %p177
      %p184 = scmp.eq.s32.totalorder %s16, 1
      %p185 = por %p183, %p184
      %p186 = scmp.ne.s32.totalorder %s178, %s181
      %p187 = scmp.eq.s32.totalorder %s16, 0
      %p188 = por %p186, %p187
      %p189 = scmp.ne.s32.totalorder %s178, %s181
      %p190 = scmp.eq.s32.totalorder %s21, 1
      %p191 = por %p189, %p190
      %p192 = scmp.ne.s32.totalorder %s181, %s182
      %p193 = scmp.eq.s32.totalorder %s21, 0
      %p194 = por %p192, %p193
      %p195 = scmp.ne.s32.totalorder %s181, %s182
      %p196 = scmp.eq.s32.totalorder %s22, 1
      %p197 = por %p195, %p196
      %p199 = scmp.ne.s32.totalorder %s182, %s198
      %p200 = scmp.eq.s32.totalorder %s22, 0
      %p201 = por %p199, %p200
      %p202 = scmp.le.s32.totalorder 1, %s16
      %p203 = scmp.lt.s32.totalorder %s16, 3
      %p204 = pnand %p202, %p203
      %p205 = pneg %p204
      // Predicated region
      $region9: #{tpu_custom_call.1} parent=5 // pred_check
        _
      $region10: #{tpu_custom_call.1} parent=5 // pred_check_branch
        %207 = sbr.rel (%p204) target = $region12
      $region11: #{tpu_custom_call.1} parent=5 // pred_region
        %s208 = ssub.s32 %s16, 1
        // Predicated region
        $region13: #{tpu_custom_call.1} parent=11 // pred_check
          %p209 = pneg %p63
        $region14: #{tpu_custom_call.1} parent=11 // pred_check_branch
          %211 = sbr.rel (%p209) target = $region16
        $region15: #{tpu_custom_call.1} parent=11 // pred_region
          _
        $region16: #{tpu_custom_call.1} parent=11 // pred_fallthru
          _
        // Predicated region
        $region17: #{tpu_custom_call.1} parent=11 // pred_check
          %p212 = pneg %p84
        $region18: #{tpu_custom_call.1} parent=11 // pred_check_branch
          %214 = sbr.rel (%p212) target = $region20
        $region19: #{tpu_custom_call.1} parent=11 // pred_region
          _
        $region20: #{tpu_custom_call.1} parent=11 // pred_fallthru
          _
        // Predicated region
        $region21: #{tpu_custom_call.1} parent=11 // pred_check
          %p215 = pneg %p105
        $region22: #{tpu_custom_call.1} parent=11 // pred_check_branch
          %217 = sbr.rel (%p215) target = $region24
        $region23: #{tpu_custom_call.1} parent=11 // pred_region
          _
        $region24: #{tpu_custom_call.1} parent=11 // pred_fallthru
          _
        // Predicated region
        $region25: #{tpu_custom_call.1} parent=11 // pred_check
          %p218 = pneg %p126
        $region26: #{tpu_custom_call.1} parent=11 // pred_check_branch
          %220 = sbr.rel (%p218) target = $region28
        $region27: #{tpu_custom_call.1} parent=11 // pred_region
          _
        $region28: #{tpu_custom_call.1} parent=11 // pred_fallthru
          _
        // Predicated region
        $region29: #{tpu_custom_call.1} parent=11 // pred_check
          %p221 = pneg %p147
        $region30: #{tpu_custom_call.1} parent=11 // pred_check_branch
          %223 = sbr.rel (%p221) target = $region32
        $region31: #{tpu_custom_call.1} parent=11 // pred_region
          _
        $region32: #{tpu_custom_call.1} parent=11 // pred_fallthru
          _
        // Predicated region
        $region33: #{tpu_custom_call.1} parent=11 // pred_check
          %p224 = pneg %p168
        $region34: #{tpu_custom_call.1} parent=11 // pred_check_branch
          %226 = sbr.rel (%p224) target = $region36
        $region35: #{tpu_custom_call.1} parent=11 // pred_region
          _
        $region36: #{tpu_custom_call.1} parent=11 // pred_fallthru
          _
      $region12: #{tpu_custom_call.1} parent=5 // pred_fallthru
        _
      %p227 = scmp.lt.s32.totalorder %s16, 2
      // Predicated region
      $region37: #{tpu_custom_call.1} parent=5 // pred_check
        %p228 = pneg %p227
      $region38: #{tpu_custom_call.1} parent=5 // pred_check_branch
        %230 = sbr.rel (%p228) target = $region40
      $region39: #{tpu_custom_call.1} parent=5 // pred_region
        // Predicated region
        $region41: #{tpu_custom_call.1} parent=39 // pred_check
          %p231 = pneg %p36
        $region42: #{tpu_custom_call.1} parent=39 // pred_check_branch
          %233 = sbr.rel (%p231) target = $region44
        $region43: #{tpu_custom_call.1} parent=39 // pred_region
          %p234 = scmp.lt.s32.totalorder %s16, 1
          %s235 = scalar_select %p234, %s16, 1
          %s236 = smul.addr %s235, 32
          %s237 = smul.addr %s236, 8
          %s238 = scalar_lea.vmem %s0, %s237
        $region44: #{tpu_custom_call.1} parent=39 // pred_fallthru
          _
      $region40: #{tpu_custom_call.1} parent=5 // pred_fallthru
        _
      %p239 = scmp.le.s32.totalorder 1, %s16
      %p240 = scmp.lt.s32.totalorder %s16, 3
      %p241 = pnand %p239, %p240
      %p242 = pneg %p241
      // Predicated region
      $region45: #{tpu_custom_call.1} parent=5 // pred_check
        _
      $region46: #{tpu_custom_call.1} parent=5 // pred_check_branch
        %244 = sbr.rel (%p241) target = $region48
      $region47: #{tpu_custom_call.1} parent=5 // pred_region
        %s245 = ssub.s32 %s16, 1
        %p246 = scmp.lt.s32.totalorder %s21, 1
        %s247 = scalar_select %p246, %s21, 1
        %s248 = smul.addr %s247, 32
        %s249 = smul.addr %s248, 8
        %s250 = scalar_lea.vmem %s0, %s249
        %p251 = pneg %p42
        %p252 = pneg %p39
        %p253 = pneg %p63
        %p254 = pneg %p60
        %p255 = pneg %p84
        %p256 = pneg %p81
        %p257 = pneg %p105
        %p258 = pneg %p102
        %p259 = pneg %p126
        %p260 = pneg %p123
        %p261 = pneg %p147
        %p262 = pneg %p144
        %p263 = pneg %p168
        %p264 = pneg %p165
        %p265 = pneg %p194
        %p266 = pneg %p191
        %s267 = sand.u32 %s181, 1
        %s268 = scalar_lea.sflag [#allocation4], %s267
        %s269 = sand.u32 %s181, 1
        %s270 = smul.addr %s269, 64
        %s271 = scalar_lea.vmem [#allocation3], %s270
        %p272 = scmp.lt.s32.totalorder %s21, 1
        %s273 = scalar_select %p272, %s21, 1
        %s274 = smul.addr %s273, 32
        %s275 = smul.addr %s274, 8
        %s276 = scalar_lea.vmem %s0, %s275
        %vm278 = vcmask 64512
        %279 = vst.msk [vmem:[#allocation2] sm:$0xff] %vm278, 0.0
        %280 = vst.msk [vmem:[#allocation2 + $0x8] sm:$0xff] %vm278, 0.0
        %vm281 = vcmask 58368
        %282 = vst.msk [vmem:[#allocation2 + $0x10] sm:$0x3] %vm281, 0.0
        %s283 = scalar_lea.vmem [#allocation2], 408
        %284 = vst.msk [vmem:[%s283] sm:$0xff] %vm278, 0.0
        %285 = vst.msk [vmem:[%s283 + $0x8] sm:$0xff] %vm278, 0.0
        %286 = vst.msk [vmem:[%s283 + $0x10] sm:$0x3] %vm281, 0.0
        %s287 = scalar_lea.vmem [#allocation2], 24
        %vm288 = vcmask 57344
        %289 = vst.msk [vmem:[%s287] sm:$0x1] %vm288, 0.0
        %290 = vst.msk [vmem:[%s287 + $0x18] sm:$0x1] %vm288, 0.0
        %291 = vst.msk [vmem:[%s287 + $0x30] sm:$0x1] %vm288, 0.0
        %292 = vst.msk [vmem:[%s287 + $0x48] sm:$0x1] %vm288, 0.0
        %293 = vst.msk [vmem:[%s287 + $0x60] sm:$0x1] %vm288, 0.0
        %294 = vst.msk [vmem:[%s287 + $0x78] sm:$0x1] %vm288, 0.0
        %295 = vst.msk [vmem:[%s287 + $0x90] sm:$0x1] %vm288, 0.0
        %296 = vst.msk [vmem:[%s287 + $0xa8] sm:$0x1] %vm288, 0.0
        %297 = vst.msk [vmem:[%s287 + $0xc0] sm:$0x1] %vm288, 0.0
        %298 = vst.msk [vmem:[%s287 + $0xd8] sm:$0x1] %vm288, 0.0
        %299 = vst.msk [vmem:[%s287 + $0xf0] sm:$0x1] %vm288, 0.0
        %300 = vst.msk [vmem:[%s287 + $0x108] sm:$0x1] %vm288, 0.0
        %301 = vst.msk [vmem:[%s287 + $0x120] sm:$0x1] %vm288, 0.0
        %302 = vst.msk [vmem:[%s287 + $0x138] sm:$0x1] %vm288, 0.0
        %303 = vst.msk [vmem:[%s287 + $0x150] sm:$0x1] %vm288, 0.0
        %304 = vst.msk [vmem:[%s287 + $0x168] sm:$0x1] %vm288, 0.0
        %305 = vst.msk [vmem:[%s287 + $0x11] sm:$0x1] %vm288, 0.0
        %306 = vst.msk [vmem:[%s287 + $0x29] sm:$0x1] %vm288, 0.0
        %307 = vst.msk [vmem:[%s287 + $0x41] sm:$0x1] %vm288, 0.0
        %308 = vst.msk [vmem:[%s287 + $0x59] sm:$0x1] %vm288, 0.0
        %309 = vst.msk [vmem:[%s287 + $0x71] sm:$0x1] %vm288, 0.0
        %310 = vst.msk [vmem:[%s287 + $0x89] sm:$0x1] %vm288, 0.0
        %311 = vst.msk [vmem:[%s287 + $0xa1] sm:$0x1] %vm288, 0.0
        %312 = vst.msk [vmem:[%s287 + $0xb9] sm:$0x1] %vm288, 0.0
        %313 = vst.msk [vmem:[%s287 + $0xd1] sm:$0x1] %vm288, 0.0
        %314 = vst.msk [vmem:[%s287 + $0xe9] sm:$0x1] %vm288, 0.0
        %315 = vst.msk [vmem:[%s287 + $0x101] sm:$0x1] %vm288, 0.0
        %316 = vst.msk [vmem:[%s287 + $0x119] sm:$0x1] %vm288, 0.0
        %317 = vst.msk [vmem:[%s287 + $0x131] sm:$0x1] %vm288, 0.0
        %318 = vst.msk [vmem:[%s287 + $0x149] sm:$0x1] %vm288, 0.0
        %319 = vst.msk [vmem:[%s287 + $0x161] sm:$0x1] %vm288, 0.0
        %320 = vst.msk [vmem:[%s287 + $0x179] sm:$0x1] %vm288, 0.0
        $region49: #{tpu_custom_call.1} parent=47
          #allocation5 [shape = 'u8[65536]{0}', space=vmem, size = 0x10000, scoped, tag = 'scoped memory for tpu_custom_call.1']
          %vm321 = vcmask 31744
          %322 = vst.msk [vmem:[#allocation5] sm:$0xff] %vm321, 0
          %s323 = scalar_lea.vmem [#allocation5], 8
          %vm324 = vcmask 24576
          %vm325 = vsmask.f32 256
          %vm326 = vmand %vm324, %vm325
          %v327 = vld [vmem:[%s323] sm:$0x1]
          %v328 = vsel %vm326, 0, %v327
          %329 = vst [vmem:[%s323] sm:$0x1] %v328
          %v330 = vld [vmem:[%s323 + $0x8] sm:$0x1]
          %v331 = vsel %vm326, 0, %v330
          %332 = vst [vmem:[%s323 + $0x8] sm:$0x1] %v331
          %v333 = vld [vmem:[%s323 + $0x10] sm:$0x1]
          %v334 = vsel %vm326, 0, %v333
          %335 = vst [vmem:[%s323 + $0x10] sm:$0x1] %v334
          %v336 = vld [vmem:[%s323 + $0x18] sm:$0x1]
          %v337 = vsel %vm326, 0, %v336
          %338 = vst [vmem:[%s323 + $0x18] sm:$0x1] %v337
          %v339 = vld [vmem:[%s323 + $0x20] sm:$0x1]
          %v340 = vsel %vm326, 0, %v339
          %341 = vst [vmem:[%s323 + $0x20] sm:$0x1] %v340
          %v342 = vld [vmem:[%s323 + $0x28] sm:$0x1]
          %v343 = vsel %vm326, 0, %v342
          %344 = vst [vmem:[%s323 + $0x28] sm:$0x1] %v343
          %v345 = vld [vmem:[%s323 + $0x30] sm:$0x1]
          %v346 = vsel %vm326, 0, %v345
          %347 = vst [vmem:[%s323 + $0x30] sm:$0x1] %v346
          %v348 = vld [vmem:[%s323 + $0x38] sm:$0x1]
          %v349 = vsel %vm326, 0, %v348
          %350 = vst [vmem:[%s323 + $0x38] sm:$0x1] %v349
          %v351 = vld [vmem:[%s323 + $0x40] sm:$0x1]
          %v352 = vsel %vm326, 0, %v351
          %353 = vst [vmem:[%s323 + $0x40] sm:$0x1] %v352
          %v354 = vld [vmem:[%s323 + $0x48] sm:$0x1]
          %v355 = vsel %vm326, 0, %v354
          %356 = vst [vmem:[%s323 + $0x48] sm:$0x1] %v355
          %v357 = vld [vmem:[%s323 + $0x50] sm:$0x1]
          %v358 = vsel %vm326, 0, %v357
          %359 = vst [vmem:[%s323 + $0x50] sm:$0x1] %v358
          %v360 = vld [vmem:[%s323 + $0x58] sm:$0x1]
          %v361 = vsel %vm326, 0, %v360
          %362 = vst [vmem:[%s323 + $0x58] sm:$0x1] %v361
          %v363 = vld [vmem:[%s323 + $0x60] sm:$0x1]
          %v364 = vsel %vm326, 0, %v363
          %365 = vst [vmem:[%s323 + $0x60] sm:$0x1] %v364
          %v366 = vld [vmem:[%s323 + $0x68] sm:$0x1]
          %v367 = vsel %vm326, 0, %v366
          %368 = vst [vmem:[%s323 + $0x68] sm:$0x1] %v367
          %v369 = vld [vmem:[%s323 + $0x70] sm:$0x1]
          %v370 = vsel %vm326, 0, %v369
          %371 = vst [vmem:[%s323 + $0x70] sm:$0x1] %v370
          %v372 = vld [vmem:[%s276] sm:$0xff]
          %v373 = vld [vmem:[%s276 + $0x8] sm:$0x7f]
          %v374 = vld [vmem:[%s276 + $0x10] sm:$0xff]
          %v375 = vld [vmem:[%s276 + $0x18] sm:$0x7f]
          %v376 = vld [vmem:[%s276 + $0x20] sm:$0xff]
          %v377 = vld [vmem:[%s276 + $0x28] sm:$0x7f]
          %v378 = vld [vmem:[%s276 + $0x30] sm:$0xff]
          %v379 = vld [vmem:[%s276 + $0x38] sm:$0x7f]
          %v380 = vld [vmem:[%s276 + $0x40] sm:$0xff]
          %v381 = vld [vmem:[%s276 + $0x48] sm:$0x7f]
          %v382 = vld [vmem:[%s276 + $0x50] sm:$0xff]
          %v383 = vld [vmem:[%s276 + $0x58] sm:$0x7f]
          %v384 = vld [vmem:[%s276 + $0x60] sm:$0xff]
          %v385 = vld [vmem:[%s276 + $0x68] sm:$0x7f]
          %v386 = vld [vmem:[%s276 + $0x70] sm:$0xff]
          %v387 = vld [vmem:[%s276 + $0x78] sm:$0x7f]
          %v388 = vld [vmem:[%s276 + $0x80] sm:$0xff]
          %v389 = vld [vmem:[%s276 + $0x88] sm:$0x7f]
          %v390 = vld [vmem:[%s276 + $0x90] sm:$0xff]
          %v391 = vld [vmem:[%s276 + $0x98] sm:$0x7f]
          %v392 = vld [vmem:[%s276 + $0xa0] sm:$0xff]
          %v393 = vld [vmem:[%s276 + $0xa8] sm:$0x7f]
          %v394 = vld [vmem:[%s276 + $0xb0] sm:$0xff]
          %v395 = vld [vmem:[%s276 + $0xb8] sm:$0x7f]
          %v396 = vld [vmem:[%s276 + $0xc0] sm:$0xff]
          %v397 = vld [vmem:[%s276 + $0xc8] sm:$0x7f]
          %v398 = vld [vmem:[%s276 + $0xd0] sm:$0xff]
          %v399 = vld [vmem:[%s276 + $0xd8] sm:$0x7f]
          %v400 = vld [vmem:[%s276 + $0xe0] sm:$0xff]
          %v401 = vld [vmem:[%s276 + $0xe8] sm:$0x7f]
          %v402 = vpack.c.bf16 %v373, %v372
          %v403 = vpack.c.bf16 %v375, %v374
          %v404 = vpack.c.bf16 %v377, %v376
          %v405 = vpack.c.bf16 %v379, %v378
          %v406 = vpack.c.bf16 %v381, %v380
          %v407 = vpack.c.bf16 %v383, %v382
          %v408 = vpack.c.bf16 %v385, %v384
          %v409 = vpack.c.bf16 %v387, %v386
          %v410 = vpack.c.bf16 %v389, %v388
          %v411 = vpack.c.bf16 %v391, %v390
          %v412 = vpack.c.bf16 %v393, %v392
          %v413 = vpack.c.bf16 %v395, %v394
          %v414 = vpack.c.bf16 %v397, %v396
          %v415 = vpack.c.bf16 %v399, %v398
          %v416 = vpack.c.bf16 %v401, %v400
          %v418 = vshrl.u32 %v402, 16
          %v420 = vrot.slane %v418, 7
          %v421 = vshll.u32 %v402, 16
          %v423 = vor.u32 %v420, %v421
          %v425 = vshrl.u32 %v403, 16
          %v427 = vrot.slane %v425, 7
          %v428 = vshll.u32 %v403, 16
          %v430 = vor.u32 %v427, %v428
          %v432 = vshrl.u32 %v404, 16
          %v434 = vrot.slane %v432, 7
          %v435 = vshll.u32 %v404, 16
          %v437 = vor.u32 %v434, %v435
          %v439 = vshrl.u32 %v405, 16
          %v441 = vrot.slane %v439, 7
          %v442 = vshll.u32 %v405, 16
          %v444 = vor.u32 %v441, %v442
          %v446 = vshrl.u32 %v406, 16
          %v448 = vrot.slane %v446, 7
          %v449 = vshll.u32 %v406, 16
          %v451 = vor.u32 %v448, %v449
          %v453 = vshrl.u32 %v407, 16
          %v455 = vrot.slane %v453, 7
          %v456 = vshll.u32 %v407, 16
          %v458 = vor.u32 %v455, %v456
          %v460 = vshrl.u32 %v408, 16
          %v462 = vrot.slane %v460, 7
          %v463 = vshll.u32 %v408, 16
          %v465 = vor.u32 %v462, %v463
          %v467 = vshrl.u32 %v409, 16
          %v469 = vrot.slane %v467, 7
          %v470 = vshll.u32 %v409, 16
          %v472 = vor.u32 %v469, %v470
          %v474 = vshrl.u32 %v410, 16
          %v476 = vrot.slane %v474, 7
          %v477 = vshll.u32 %v410, 16
          %v479 = vor.u32 %v476, %v477
          %v481 = vshrl.u32 %v411, 16
          %v483 = vrot.slane %v481, 7
          %v484 = vshll.u32 %v411, 16
          %v486 = vor.u32 %v483, %v484
          %v488 = vshrl.u32 %v412, 16
          %v490 = vrot.slane %v488, 7
          %v491 = vshll.u32 %v412, 16
          %v493 = vor.u32 %v490, %v491
          %v495 = vshrl.u32 %v413, 16
          %v497 = vrot.slane %v495, 7
          %v498 = vshll.u32 %v413, 16
          %v500 = vor.u32 %v497, %v498
          %v502 = vshrl.u32 %v414, 16
          %v504 = vrot.slane %v502, 7
          %v505 = vshll.u32 %v414, 16
          %v507 = vor.u32 %v504, %v505
          %v509 = vshrl.u32 %v415, 16
          %v511 = vrot.slane %v509, 7
          %v512 = vshll.u32 %v415, 16
          %v514 = vor.u32 %v511, %v512
          %v516 = vshrl.u32 %v416, 16
          %v518 = vrot.slane %v516, 7
          %v519 = vshll.u32 %v416, 16
          %v521 = vor.u32 %v518, %v519
          %vm537 = vcmask 31744
          %vm538 = vsmask.f32 7938
          %vm539 = vmand %vm537, %vm538
          %v540 = vld [vmem:[%s323] sm:$0xff]
          %v541 = vsel %vm539, %v423, %v540
          %542 = vst [vmem:[%s323] sm:$0xff] %v541
          %v543 = vld [vmem:[%s323 + $0x8] sm:$0xff]
          %v544 = vsel %vm539, %v430, %v543
          %545 = vst [vmem:[%s323 + $0x8] sm:$0xff] %v544
          %v546 = vld [vmem:[%s323 + $0x10] sm:$0xff]
          %v547 = vsel %vm539, %v437, %v546
          %548 = vst [vmem:[%s323 + $0x10] sm:$0xff] %v547
          %v549 = vld [vmem:[%s323 + $0x18] sm:$0xff]
          %v550 = vsel %vm539, %v444, %v549
          %551 = vst [vmem:[%s323 + $0x18] sm:$0xff] %v550
          %v552 = vld [vmem:[%s323 + $0x20] sm:$0xff]
          %v553 = vsel %vm539, %v451, %v552
          %554 = vst [vmem:[%s323 + $0x20] sm:$0xff] %v553
          %v555 = vld [vmem:[%s323 + $0x28] sm:$0xff]
          %v556 = vsel %vm539, %v458, %v555
          %557 = vst [vmem:[%s323 + $0x28] sm:$0xff] %v556
          %v558 = vld [vmem:[%s323 + $0x30] sm:$0xff]
          %v559 = vsel %vm539, %v465, %v558
          %560 = vst [vmem:[%s323 + $0x30] sm:$0xff] %v559
          %v561 = vld [vmem:[%s323 + $0x38] sm:$0xff]
          %v562 = vsel %vm539, %v472, %v561
          %563 = vst [vmem:[%s323 + $0x38] sm:$0xff] %v562
          %v564 = vld [vmem:[%s323 + $0x40] sm:$0xff]
          %v565 = vsel %vm539, %v479, %v564
          %566 = vst [vmem:[%s323 + $0x40] sm:$0xff] %v565
          %v567 = vld [vmem:[%s323 + $0x48] sm:$0xff]
          %v568 = vsel %vm539, %v486, %v567
          %569 = vst [vmem:[%s323 + $0x48] sm:$0xff] %v568
          %v570 = vld [vmem:[%s323 + $0x50] sm:$0xff]
          %v571 = vsel %vm539, %v493, %v570
          %572 = vst [vmem:[%s323 + $0x50] sm:$0xff] %v571
          %v573 = vld [vmem:[%s323 + $0x58] sm:$0xff]
          %v574 = vsel %vm539, %v500, %v573
          %575 = vst [vmem:[%s323 + $0x58] sm:$0xff] %v574
          %v576 = vld [vmem:[%s323 + $0x60] sm:$0xff]
          %v577 = vsel %vm539, %v507, %v576
          %578 = vst [vmem:[%s323 + $0x60] sm:$0xff] %v577
          %v579 = vld [vmem:[%s323 + $0x68] sm:$0xff]
          %v580 = vsel %vm539, %v514, %v579
          %581 = vst [vmem:[%s323 + $0x68] sm:$0xff] %v580
          %v582 = vld [vmem:[%s323 + $0x70] sm:$0xff]
          %v583 = vsel %vm539, %v521, %v582
          %584 = vst [vmem:[%s323 + $0x70] sm:$0xff] %v583
          %vm585 = vcmask 64544
          %586 = vst.msk [vmem:[#allocation5] sm:$0xff] %vm585, 0
          %v587 = vld [vmem:[%s276] sm:$0xff]
          %v588 = vld [vmem:[%s276 + $0x8] sm:$0xff]
          %v589 = vld [vmem:[%s276 + $0x10] sm:$0xff]
          %v590 = vld [vmem:[%s276 + $0x18] sm:$0xff]
          %v591 = vld [vmem:[%s276 + $0x20] sm:$0xff]
          %v592 = vld [vmem:[%s276 + $0x28] sm:$0xff]
          %v593 = vld [vmem:[%s276 + $0x30] sm:$0xff]
          %v594 = vld [vmem:[%s276 + $0x38] sm:$0xff]
          %v595 = vld [vmem:[%s276 + $0x40] sm:$0xff]
          %v596 = vld [vmem:[%s276 + $0x48] sm:$0xff]
          %v597 = vld [vmem:[%s276 + $0x50] sm:$0xff]
          %v598 = vld [vmem:[%s276 + $0x58] sm:$0xff]
          %v599 = vld [vmem:[%s276 + $0x60] sm:$0xff]
          %v600 = vld [vmem:[%s276 + $0x68] sm:$0xff]
          %v601 = vld [vmem:[%s276 + $0x70] sm:$0xff]
          %v602 = vld [vmem:[%s276 + $0x78] sm:$0xff]
          %v603 = vld [vmem:[%s276 + $0x80] sm:$0xff]
          %v604 = vld [vmem:[%s276 + $0x88] sm:$0xff]
          %v605 = vld [vmem:[%s276 + $0x90] sm:$0xff]
          %v606 = vld [vmem:[%s276 + $0x98] sm:$0xff]
          %v607 = vld [vmem:[%s276 + $0xa0] sm:$0xff]
          %v608 = vld [vmem:[%s276 + $0xa8] sm:$0xff]
          %v609 = vld [vmem:[%s276 + $0xb0] sm:$0xff]
          %v610 = vld [vmem:[%s276 + $0xb8] sm:$0xff]
          %v611 = vld [vmem:[%s276 + $0xc0] sm:$0xff]
          %v612 = vld [vmem:[%s276 + $0xc8] sm:$0xff]
          %v613 = vld [vmem:[%s276 + $0xd0] sm:$0xff]
          %v614 = vld [vmem:[%s276 + $0xd8] sm:$0xff]
          %v615 = vld [vmem:[%s276 + $0xe0] sm:$0xff]
          %v616 = vld [vmem:[%s276 + $0xe8] sm:$0xff]
          %v617 = vpack.c.bf16 %v588, %v587
          %v618 = vpack.c.bf16 %v590, %v589
          %v619 = vpack.c.bf16 %v592, %v591
          %v620 = vpack.c.bf16 %v594, %v593
          %v621 = vpack.c.bf16 %v596, %v595
          %v622 = vpack.c.bf16 %v598, %v597
          %v623 = vpack.c.bf16 %v600, %v599
          %v624 = vpack.c.bf16 %v602, %v601
          %v625 = vpack.c.bf16 %v604, %v603
          %v626 = vpack.c.bf16 %v606, %v605
          %v627 = vpack.c.bf16 %v608, %v607
          %v628 = vpack.c.bf16 %v610, %v609
          %v629 = vpack.c.bf16 %v612, %v611
          %v630 = vpack.c.bf16 %v614, %v613
          %v631 = vpack.c.bf16 %v616, %v615
          %647 = vrot.lane.b32.xlu0 %v617, 4
          %v648 = vpop.permute.xlu0 %647
          %649 = vrot.lane.b32.xlu0 %v618, 4
          %v650 = vpop.permute.xlu0 %649
          %651 = vrot.lane.b32.xlu0 %v619, 4
          %v652 = vpop.permute.xlu0 %651
          %653 = vrot.lane.b32.xlu0 %v620, 4
          %v654 = vpop.permute.xlu0 %653
          %655 = vrot.lane.b32.xlu0 %v621, 4
          %v656 = vpop.permute.xlu0 %655
          %657 = vrot.lane.b32.xlu0 %v622, 4
          %v658 = vpop.permute.xlu0 %657
          %659 = vrot.lane.b32.xlu0 %v623, 4
          %v660 = vpop.permute.xlu0 %659
          %661 = vrot.lane.b32.xlu0 %v624, 4
          %v662 = vpop.permute.xlu0 %661
          %663 = vrot.lane.b32.xlu0 %v625, 4
          %v664 = vpop.permute.xlu0 %663
          %665 = vrot.lane.b32.xlu0 %v626, 4
          %v666 = vpop.permute.xlu0 %665
          %667 = vrot.lane.b32.xlu0 %v627, 4
          %v668 = vpop.permute.xlu0 %667
          %669 = vrot.lane.b32.xlu0 %v628, 4
          %v670 = vpop.permute.xlu0 %669
          %671 = vrot.lane.b32.xlu0 %v629, 4
          %v672 = vpop.permute.xlu0 %671
          %673 = vrot.lane.b32.xlu0 %v630, 4
          %v674 = vpop.permute.xlu0 %673
          %675 = vrot.lane.b32.xlu0 %v631, 4
          %v676 = vpop.permute.xlu0 %675
          %692 = vst.msk [vmem:[%s323] sm:$0xff] %vm585, %v648
          %693 = vst.msk [vmem:[%s323 + $0x8] sm:$0xff] %vm585, %v650
          %694 = vst.msk [vmem:[%s323 + $0x10] sm:$0xff] %vm585, %v652
          %695 = vst.msk [vmem:[%s323 + $0x18] sm:$0xff] %vm585, %v654
          %696 = vst.msk [vmem:[%s323 + $0x20] sm:$0xff] %vm585, %v656
          %697 = vst.msk [vmem:[%s323 + $0x28] sm:$0xff] %vm585, %v658
          %698 = vst.msk [vmem:[%s323 + $0x30] sm:$0xff] %vm585, %v660
          %699 = vst.msk [vmem:[%s323 + $0x38] sm:$0xff] %vm585, %v662
          %700 = vst.msk [vmem:[%s323 + $0x40] sm:$0xff] %vm585, %v664
          %701 = vst.msk [vmem:[%s323 + $0x48] sm:$0xff] %vm585, %v666
          %702 = vst.msk [vmem:[%s323 + $0x50] sm:$0xff] %vm585, %v668
          %703 = vst.msk [vmem:[%s323 + $0x58] sm:$0xff] %vm585, %v670
          %704 = vst.msk [vmem:[%s323 + $0x60] sm:$0xff] %vm585, %v672
          %705 = vst.msk [vmem:[%s323 + $0x68] sm:$0xff] %vm585, %v674
          %706 = vst.msk [vmem:[%s323 + $0x70] sm:$0xff] %vm585, %v676
          %vm707 = vcmask 97344
          %708 = vst.msk [vmem:[#allocation5] sm:$0xff] %vm707, 0
          %vm709 = vcmask 97351
          %vm710 = vsmask.f32 7966
          %vm711 = vmand %vm709, %vm710
          %v712 = vld [vmem:[%s323] sm:$0x80]
          %v713 = vsel %vm711, 0, %v712
          %714 = vst [vmem:[%s323] sm:$0x80] %v713
          %v715 = vld [vmem:[%s323 + $0x8] sm:$0x80]
          %v716 = vsel %vm711, 0, %v715
          %717 = vst [vmem:[%s323 + $0x8] sm:$0x80] %v716
          %v718 = vld [vmem:[%s323 + $0x10] sm:$0x80]
          %v719 = vsel %vm711, 0, %v718
          %720 = vst [vmem:[%s323 + $0x10] sm:$0x80] %v719
          %v721 = vld [vmem:[%s323 + $0x18] sm:$0x80]
          %v722 = vsel %vm711, 0, %v721
          %723 = vst [vmem:[%s323 + $0x18] sm:$0x80] %v722
          %v724 = vld [vmem:[%s323 + $0x20] sm:$0x80]
          %v725 = vsel %vm711, 0, %v724
          %726 = vst [vmem:[%s323 + $0x20] sm:$0x80] %v725
          %v727 = vld [vmem:[%s323 + $0x28] sm:$0x80]
          %v728 = vsel %vm711, 0, %v727
          %729 = vst [vmem:[%s323 + $0x28] sm:$0x80] %v728
          %v730 = vld [vmem:[%s323 + $0x30] sm:$0x80]
          %v731 = vsel %vm711, 0, %v730
          %732 = vst [vmem:[%s323 + $0x30] sm:$0x80] %v731
          %v733 = vld [vmem:[%s323 + $0x38] sm:$0x80]
          %v734 = vsel %vm711, 0, %v733
          %735 = vst [vmem:[%s323 + $0x38] sm:$0x80] %v734
          %v736 = vld [vmem:[%s323 + $0x40] sm:$0x80]
          %v737 = vsel %vm711, 0, %v736
          %738 = vst [vmem:[%s323 + $0x40] sm:$0x80] %v737
          %v739 = vld [vmem:[%s323 + $0x48] sm:$0x80]
          %v740 = vsel %vm711, 0, %v739
          %741 = vst [vmem:[%s323 + $0x48] sm:$0x80] %v740
          %v742 = vld [vmem:[%s323 + $0x50] sm:$0x80]
          %v743 = vsel %vm711, 0, %v742
          %744 = vst [vmem:[%s323 + $0x50] sm:$0x80] %v743
          %v745 = vld [vmem:[%s323 + $0x58] sm:$0x80]
          %v746 = vsel %vm711, 0, %v745
          %747 = vst [vmem:[%s323 + $0x58] sm:$0x80] %v746
          %v748 = vld [vmem:[%s323 + $0x60] sm:$0x80]
          %v749 = vsel %vm711, 0, %v748
          %750 = vst [vmem:[%s323 + $0x60] sm:$0x80] %v749
          %v751 = vld [vmem:[%s323 + $0x68] sm:$0x80]
          %v752 = vsel %vm711, 0, %v751
          %753 = vst [vmem:[%s323 + $0x68] sm:$0x80] %v752
          %v754 = vld [vmem:[%s323 + $0x70] sm:$0x80]
          %v755 = vsel %vm711, 0, %v754
          %756 = vst [vmem:[%s323 + $0x70] sm:$0x80] %v755
          %v757 = vld [vmem:[%s276 + $0x1] sm:$0xff]
          %v758 = vld [vmem:[%s276 + $0x9] sm:$0x7f]
          %v759 = vld [vmem:[%s276 + $0x11] sm:$0xff]
          %v760 = vld [vmem:[%s276 + $0x19] sm:$0x7f]
          %v761 = vld [vmem:[%s276 + $0x21] sm:$0xff]
          %v762 = vld [vmem:[%s276 + $0x29] sm:$0x7f]
          %v763 = vld [vmem:[%s276 + $0x31] sm:$0xff]
          %v764 = vld [vmem:[%s276 + $0x39] sm:$0x7f]
          %v765 = vld [vmem:[%s276 + $0x41] sm:$0xff]
          %v766 = vld [vmem:[%s276 + $0x49] sm:$0x7f]
          %v767 = vld [vmem:[%s276 + $0x51] sm:$0xff]
          %v768 = vld [vmem:[%s276 + $0x59] sm:$0x7f]
          %v769 = vld [vmem:[%s276 + $0x61] sm:$0xff]
          %v770 = vld [vmem:[%s276 + $0x69] sm:$0x7f]
          %v771 = vld [vmem:[%s276 + $0x71] sm:$0xff]
          %v772 = vld [vmem:[%s276 + $0x79] sm:$0x7f]
          %v773 = vld [vmem:[%s276 + $0x81] sm:$0xff]
          %v774 = vld [vmem:[%s276 + $0x89] sm:$0x7f]
          %v775 = vld [vmem:[%s276 + $0x91] sm:$0xff]
          %v776 = vld [vmem:[%s276 + $0x99] sm:$0x7f]
          %v777 = vld [vmem:[%s276 + $0xa1] sm:$0xff]
          %v778 = vld [vmem:[%s276 + $0xa9] sm:$0x7f]
          %v779 = vld [vmem:[%s276 + $0xb1] sm:$0xff]
          %v780 = vld [vmem:[%s276 + $0xb9] sm:$0x7f]
          %v781 = vld [vmem:[%s276 + $0xc1] sm:$0xff]
          %v782 = vld [vmem:[%s276 + $0xc9] sm:$0x7f]
          %v783 = vld [vmem:[%s276 + $0xd1] sm:$0xff]
          %v784 = vld [vmem:[%s276 + $0xd9] sm:$0x7f]
          %v785 = vld [vmem:[%s276 + $0xe1] sm:$0xff]
          %v786 = vld [vmem:[%s276 + $0xe9] sm:$0x7f]
          %v787 = vpack.c.bf16 %v758, %v757
          %v788 = vpack.c.bf16 %v760, %v759
          %v789 = vpack.c.bf16 %v762, %v761
          %v790 = vpack.c.bf16 %v764, %v763
          %v791 = vpack.c.bf16 %v766, %v765
          %v792 = vpack.c.bf16 %v768, %v767
          %v793 = vpack.c.bf16 %v770, %v769
          %v794 = vpack.c.bf16 %v772, %v771
          %v795 = vpack.c.bf16 %v774, %v773
          %v796 = vpack.c.bf16 %v776, %v775
          %v797 = vpack.c.bf16 %v778, %v777
          %v798 = vpack.c.bf16 %v780, %v779
          %v799 = vpack.c.bf16 %v782, %v781
          %v800 = vpack.c.bf16 %v784, %v783
          %v801 = vpack.c.bf16 %v786, %v785
          %817 = vrot.lane.b32.xlu0 %v787, 8
          %v818 = vpop.permute.xlu0 %817
          %819 = vrot.lane.b32.xlu0 %v788, 8
          %v820 = vpop.permute.xlu0 %819
          %821 = vrot.lane.b32.xlu0 %v789, 8
          %v822 = vpop.permute.xlu0 %821
          %823 = vrot.lane.b32.xlu0 %v790, 8
          %v824 = vpop.permute.xlu0 %823
          %825 = vrot.lane.b32.xlu0 %v791, 8
          %v826 = vpop.permute.xlu0 %825
          %827 = vrot.lane.b32.xlu0 %v792, 8
          %v828 = vpop.permute.xlu0 %827
          %829 = vrot.lane.b32.xlu0 %v793, 8
          %v830 = vpop.permute.xlu0 %829
          %831 = vrot.lane.b32.xlu0 %v794, 8
          %v832 = vpop.permute.xlu0 %831
          %833 = vrot.lane.b32.xlu0 %v795, 8
          %v834 = vpop.permute.xlu0 %833
          %835 = vrot.lane.b32.xlu0 %v796, 8
          %v836 = vpop.permute.xlu0 %835
          %837 = vrot.lane.b32.xlu0 %v797, 8
          %v838 = vpop.permute.xlu0 %837
          %839 = vrot.lane.b32.xlu0 %v798, 8
          %v840 = vpop.permute.xlu0 %839
          %841 = vrot.lane.b32.xlu0 %v799, 8
          %v842 = vpop.permute.xlu0 %841
          %843 = vrot.lane.b32.xlu0 %v800, 8
          %v844 = vpop.permute.xlu0 %843
          %845 = vrot.lane.b32.xlu0 %v801, 8
          %v846 = vpop.permute.xlu0 %845
          %vm862 = vcmask 97344
          %vm863 = vsmask.f32 7424
          %vm864 = vmand %vm862, %vm863
          %v865 = vld [vmem:[%s323] sm:$0xff]
          %v866 = vsel %vm864, %v818, %v865
          %867 = vst [vmem:[%s323] sm:$0xff] %v866
          %v868 = vld [vmem:[%s323 + $0x8] sm:$0xff]
          %v869 = vsel %vm864, %v820, %v868
          %870 = vst [vmem:[%s323 + $0x8] sm:$0xff] %v869
          %v871 = vld [vmem:[%s323 + $0x10] sm:$0xff]
          %v872 = vsel %vm864, %v822, %v871
          %873 = vst [vmem:[%s323 + $0x10] sm:$0xff] %v872
          %v874 = vld [vmem:[%s323 + $0x18] sm:$0xff]
          %v875 = vsel %vm864, %v824, %v874
          %876 = vst [vmem:[%s323 + $0x18] sm:$0xff] %v875
          %v877 = vld [vmem:[%s323 + $0x20] sm:$0xff]
          %v878 = vsel %vm864, %v826, %v877
          %879 = vst [vmem:[%s323 + $0x20] sm:$0xff] %v878
          %v880 = vld [vmem:[%s323 + $0x28] sm:$0xff]
          %v881 = vsel %vm864, %v828, %v880
          %882 = vst [vmem:[%s323 + $0x28] sm:$0xff] %v881
          %v883 = vld [vmem:[%s323 + $0x30] sm:$0xff]
          %v884 = vsel %vm864, %v830, %v883
          %885 = vst [vmem:[%s323 + $0x30] sm:$0xff] %v884
          %v886 = vld [vmem:[%s323 + $0x38] sm:$0xff]
          %v887 = vsel %vm864, %v832, %v886
          %888 = vst [vmem:[%s323 + $0x38] sm:$0xff] %v887
          %v889 = vld [vmem:[%s323 + $0x40] sm:$0xff]
          %v890 = vsel %vm864, %v834, %v889
          %891 = vst [vmem:[%s323 + $0x40] sm:$0xff] %v890
          %v892 = vld [vmem:[%s323 + $0x48] sm:$0xff]
          %v893 = vsel %vm864, %v836, %v892
          %894 = vst [vmem:[%s323 + $0x48] sm:$0xff] %v893
          %v895 = vld [vmem:[%s323 + $0x50] sm:$0xff]
          %v896 = vsel %vm864, %v838, %v895
          %897 = vst [vmem:[%s323 + $0x50] sm:$0xff] %v896
          %v898 = vld [vmem:[%s323 + $0x58] sm:$0xff]
          %v899 = vsel %vm864, %v840, %v898
          %900 = vst [vmem:[%s323 + $0x58] sm:$0xff] %v899
          %v901 = vld [vmem:[%s323 + $0x60] sm:$0xff]
          %v902 = vsel %vm864, %v842, %v901
          %903 = vst [vmem:[%s323 + $0x60] sm:$0xff] %v902
          %v904 = vld [vmem:[%s323 + $0x68] sm:$0xff]
          %v905 = vsel %vm864, %v844, %v904
          %906 = vst [vmem:[%s323 + $0x68] sm:$0xff] %v905
          %v907 = vld [vmem:[%s323 + $0x70] sm:$0xff]
          %v908 = vsel %vm864, %v846, %v907
          %909 = vst [vmem:[%s323 + $0x70] sm:$0xff] %v908
          %vm910 = vcmask 122976
          %vm911 = vmand %vm910, %vm325
          %v912 = vld [vmem:[#allocation5] sm:$0x1]
          %v913 = vsel %vm911, 0, %v912
          %914 = vst [vmem:[#allocation5] sm:$0x1] %v913
          %v915 = vld [vmem:[#allocation5 + $0x8] sm:$0x1]
          %v916 = vsel %vm911, 0, %v915
          %917 = vst [vmem:[#allocation5 + $0x8] sm:$0x1] %v916
          %v918 = vld [vmem:[#allocation5 + $0x10] sm:$0x1]
          %v919 = vsel %vm911, 0, %v918
          %920 = vst [vmem:[#allocation5 + $0x10] sm:$0x1] %v919
          %v921 = vld [vmem:[#allocation5 + $0x18] sm:$0x1]
          %v922 = vsel %vm911, 0, %v921
          %923 = vst [vmem:[#allocation5 + $0x18] sm:$0x1] %v922
          %v924 = vld [vmem:[#allocation5 + $0x20] sm:$0x1]
          %v925 = vsel %vm911, 0, %v924
          %926 = vst [vmem:[#allocation5 + $0x20] sm:$0x1] %v925
          %v927 = vld [vmem:[#allocation5 + $0x28] sm:$0x1]
          %v928 = vsel %vm911, 0, %v927
          %929 = vst [vmem:[#allocation5 + $0x28] sm:$0x1] %v928
          %v930 = vld [vmem:[#allocation5 + $0x30] sm:$0x1]
          %v931 = vsel %vm911, 0, %v930
          %932 = vst [vmem:[#allocation5 + $0x30] sm:$0x1] %v931
          %v933 = vld [vmem:[#allocation5 + $0x38] sm:$0x1]
          %v934 = vsel %vm911, 0, %v933
          %935 = vst [vmem:[#allocation5 + $0x38] sm:$0x1] %v934
          %v936 = vld [vmem:[#allocation5 + $0x40] sm:$0x1]
          %v937 = vsel %vm911, 0, %v936
          %938 = vst [vmem:[#allocation5 + $0x40] sm:$0x1] %v937
          %v939 = vld [vmem:[#allocation5 + $0x48] sm:$0x1]
          %v940 = vsel %vm911, 0, %v939
          %941 = vst [vmem:[#allocation5 + $0x48] sm:$0x1] %v940
          %v942 = vld [vmem:[#allocation5 + $0x50] sm:$0x1]
          %v943 = vsel %vm911, 0, %v942
          %944 = vst [vmem:[#allocation5 + $0x50] sm:$0x1] %v943
          %v945 = vld [vmem:[#allocation5 + $0x58] sm:$0x1]
          %v946 = vsel %vm911, 0, %v945
          %947 = vst [vmem:[#allocation5 + $0x58] sm:$0x1] %v946
          %v948 = vld [vmem:[#allocation5 + $0x60] sm:$0x1]
          %v949 = vsel %vm911, 0, %v948
          %950 = vst [vmem:[#allocation5 + $0x60] sm:$0x1] %v949
          %v951 = vld [vmem:[#allocation5 + $0x68] sm:$0x1]
          %v952 = vsel %vm911, 0, %v951
          %953 = vst [vmem:[#allocation5 + $0x68] sm:$0x1] %v952
          %v954 = vld [vmem:[#allocation5 + $0x70] sm:$0x1]
          %v955 = vsel %vm911, 0, %v954
          %956 = vst [vmem:[#allocation5 + $0x70] sm:$0x1] %v955
          %v957 = vld [vmem:[#allocation5 + $0x78] sm:$0x1]
          %v958 = vsel %vm911, 0, %v957
          %959 = vst [vmem:[#allocation5 + $0x78] sm:$0x1] %v958
          %v960 = vld [vmem:[%s276] sm:$0xff]
          %v961 = vld [vmem:[%s276 + $0x8] sm:$0x7f]
          %v962 = vld [vmem:[%s276 + $0x10] sm:$0xff]
          %v963 = vld [vmem:[%s276 + $0x18] sm:$0x7f]
          %v964 = vld [vmem:[%s276 + $0x20] sm:$0xff]
          %v965 = vld [vmem:[%s276 + $0x28] sm:$0x7f]
          %v966 = vld [vmem:[%s276 + $0x30] sm:$0xff]
          %v967 = vld [vmem:[%s276 + $0x38] sm:$0x7f]
          %v968 = vld [vmem:[%s276 + $0x40] sm:$0xff]
          %v969 = vld [vmem:[%s276 + $0x48] sm:$0x7f]
          %v970 = vld [vmem:[%s276 + $0x50] sm:$0xff]
          %v971 = vld [vmem:[%s276 + $0x58] sm:$0x7f]
          %v972 = vld [vmem:[%s276 + $0x60] sm:$0xff]
          %v973 = vld [vmem:[%s276 + $0x68] sm:$0x7f]
          %v974 = vld [vmem:[%s276 + $0x70] sm:$0xff]
          %v975 = vld [vmem:[%s276 + $0x78] sm:$0x7f]
          %v976 = vld [vmem:[%s276 + $0x80] sm:$0xff]
          %v977 = vld [vmem:[%s276 + $0x88] sm:$0x7f]
          %v978 = vld [vmem:[%s276 + $0x90] sm:$0xff]
          %v979 = vld [vmem:[%s276 + $0x98] sm:$0x7f]
          %v980 = vld [vmem:[%s276 + $0xa0] sm:$0xff]
          %v981 = vld [vmem:[%s276 + $0xa8] sm:$0x7f]
          %v982 = vld [vmem:[%s276 + $0xb0] sm:$0xff]
          %v983 = vld [vmem:[%s276 + $0xb8] sm:$0x7f]
          %v984 = vld [vmem:[%s276 + $0xc0] sm:$0xff]
          %v985 = vld [vmem:[%s276 + $0xc8] sm:$0x7f]
          %v986 = vld [vmem:[%s276 + $0xd0] sm:$0xff]
          %v987 = vld [vmem:[%s276 + $0xd8] sm:$0x7f]
          %v988 = vld [vmem:[%s276 + $0xe0] sm:$0xff]
          %v989 = vld [vmem:[%s276 + $0xe8] sm:$0x7f]
          %v990 = vld [vmem:[%s276 + $0xf0] sm:$0xff]
          %v991 = vld [vmem:[%s276 + $0xf8] sm:$0x7f]
          %v992 = vpack.c.bf16 %v961, %v960
          %v993 = vpack.c.bf16 %v963, %v962
          %v994 = vpack.c.bf16 %v965, %v964
          %v995 = vpack.c.bf16 %v967, %v966
          %v996 = vpack.c.bf16 %v969, %v968
          %v997 = vpack.c.bf16 %v971, %v970
          %v998 = vpack.c.bf16 %v973, %v972
          %v999 = vpack.c.bf16 %v975, %v974
          %v1000 = vpack.c.bf16 %v977, %v976
          %v1001 = vpack.c.bf16 %v979, %v978
          %v1002 = vpack.c.bf16 %v981, %v980
          %v1003 = vpack.c.bf16 %v983, %v982
          %v1004 = vpack.c.bf16 %v985, %v984
          %v1005 = vpack.c.bf16 %v987, %v986
          %v1006 = vpack.c.bf16 %v989, %v988
          %v1007 = vpack.c.bf16 %v991, %v990
          %v1009 = vshrl.u32 %v992, 16
          %v1011 = vrot.slane %v1009, 7
          %v1012 = vshll.u32 %v992, 16
          %v1014 = vor.u32 %v1011, %v1012
          %v1016 = vshrl.u32 %v993, 16
          %v1018 = vrot.slane %v1016, 7
          %v1019 = vshll.u32 %v993, 16
          %v1021 = vor.u32 %v1018, %v1019
          %v1023 = vshrl.u32 %v994, 16
          %v1025 = vrot.slane %v1023, 7
          %v1026 = vshll.u32 %v994, 16
          %v1028 = vor.u32 %v1025, %v1026
          %v1030 = vshrl.u32 %v995, 16
          %v1032 = vrot.slane %v1030, 7
          %v1033 = vshll.u32 %v995, 16
          %v1035 = vor.u32 %v1032, %v1033
          %v1037 = vshrl.u32 %v996, 16
          %v1039 = vrot.slane %v1037, 7
          %v1040 = vshll.u32 %v996, 16
          %v1042 = vor.u32 %v1039, %v1040
          %v1044 = vshrl.u32 %v997, 16
          %v1046 = vrot.slane %v1044, 7
          %v1047 = vshll.u32 %v997, 16
          %v1049 = vor.u32 %v1046, %v1047
          %v1051 = vshrl.u32 %v998, 16
          %v1053 = vrot.slane %v1051, 7
          %v1054 = vshll.u32 %v998, 16
          %v1056 = vor.u32 %v1053, %v1054
          %v1058 = vshrl.u32 %v999, 16
          %v1060 = vrot.slane %v1058, 7
          %v1061 = vshll.u32 %v999, 16
          %v1063 = vor.u32 %v1060, %v1061
          %v1065 = vshrl.u32 %v1000, 16
          %v1067 = vrot.slane %v1065, 7
          %v1068 = vshll.u32 %v1000, 16
          %v1070 = vor.u32 %v1067, %v1068
          %v1072 = vshrl.u32 %v1001, 16
          %v1074 = vrot.slane %v1072, 7
          %v1075 = vshll.u32 %v1001, 16
          %v1077 = vor.u32 %v1074, %v1075
          %v1079 = vshrl.u32 %v1002, 16
          %v1081 = vrot.slane %v1079, 7
          %v1082 = vshll.u32 %v1002, 16
          %v1084 = vor.u32 %v1081, %v1082
          %v1086 = vshrl.u32 %v1003, 16
          %v1088 = vrot.slane %v1086, 7
          %v1089 = vshll.u32 %v1003, 16
          %v1091 = vor.u32 %v1088, %v1089
          %v1093 = vshrl.u32 %v1004, 16
          %v1095 = vrot.slane %v1093, 7
          %v1096 = vshll.u32 %v1004, 16
          %v1098 = vor.u32 %v1095, %v1096
          %v1100 = vshrl.u32 %v1005, 16
          %v1102 = vrot.slane %v1100, 7
          %v1103 = vshll.u32 %v1005, 16
          %v1105 = vor.u32 %v1102, %v1103
          %v1107 = vshrl.u32 %v1006, 16
          %v1109 = vrot.slane %v1107, 7
          %v1110 = vshll.u32 %v1006, 16
          %v1112 = vor.u32 %v1109, %v1110
          %v1114 = vshrl.u32 %v1007, 16
          %v1116 = vrot.slane %v1114, 7
          %v1117 = vshll.u32 %v1007, 16
          %v1119 = vor.u32 %v1116, %v1117
          %1120 = vrot.lane.b32.xlu0 %v1014, 12
          %v1121 = vpop.permute.xlu0 %1120
          %1122 = vrot.lane.b32.xlu0 %v1021, 12
          %v1123 = vpop.permute.xlu0 %1122
          %1124 = vrot.lane.b32.xlu0 %v1028, 12
          %v1125 = vpop.permute.xlu0 %1124
          %1126 = vrot.lane.b32.xlu0 %v1035, 12
          %v1127 = vpop.permute.xlu0 %1126
          %1128 = vrot.lane.b32.xlu0 %v1042, 12
          %v1129 = vpop.permute.xlu0 %1128
          %1130 = vrot.lane.b32.xlu0 %v1049, 12
          %v1131 = vpop.permute.xlu0 %1130
          %1132 = vrot.lane.b32.xlu0 %v1056, 12
          %v1133 = vpop.permute.xlu0 %1132
          %1134 = vrot.lane.b32.xlu0 %v1063, 12
          %v1135 = vpop.permute.xlu0 %1134
          %1136 = vrot.lane.b32.xlu0 %v1070, 12
          %v1137 = vpop.permute.xlu0 %1136
          %1138 = vrot.lane.b32.xlu0 %v1077, 12
          %v1139 = vpop.permute.xlu0 %1138
          %1140 = vrot.lane.b32.xlu0 %v1084, 12
          %v1141 = vpop.permute.xlu0 %1140
          %1142 = vrot.lane.b32.xlu0 %v1091, 12
          %v1143 = vpop.permute.xlu0 %1142
          %1144 = vrot.lane.b32.xlu0 %v1098, 12
          %v1145 = vpop.permute.xlu0 %1144
          %1146 = vrot.lane.b32.xlu0 %v1105, 12
          %v1147 = vpop.permute.xlu0 %1146
          %1148 = vrot.lane.b32.xlu0 %v1112, 12
          %v1149 = vpop.permute.xlu0 %1148
          %1150 = vrot.lane.b32.xlu0 %v1119, 12
          %v1151 = vpop.permute.xlu0 %1150
          %vm1168 = vcmask 130144
          %vm1169 = vmand %vm1168, %vm538
          %v1170 = vld [vmem:[#allocation5] sm:$0xff]
          %v1171 = vsel %vm1169, %v1121, %v1170
          %1172 = vst [vmem:[#allocation5] sm:$0xff] %v1171
          %v1173 = vld [vmem:[#allocation5 + $0x8] sm:$0xff]
          %v1174 = vsel %vm1169, %v1123, %v1173
          %1175 = vst [vmem:[#allocation5 + $0x8] sm:$0xff] %v1174
          %v1176 = vld [vmem:[#allocation5 + $0x10] sm:$0xff]
          %v1177 = vsel %vm1169, %v1125, %v1176
          %1178 = vst [vmem:[#allocation5 + $0x10] sm:$0xff] %v1177
          %v1179 = vld [vmem:[#allocation5 + $0x18] sm:$0xff]
          %v1180 = vsel %vm1169, %v1127, %v1179
          %1181 = vst [vmem:[#allocation5 + $0x18] sm:$0xff] %v1180
          %v1182 = vld [vmem:[#allocation5 + $0x20] sm:$0xff]
          %v1183 = vsel %vm1169, %v1129, %v1182
          %1184 = vst [vmem:[#allocation5 + $0x20] sm:$0xff] %v1183
          %v1185 = vld [vmem:[#allocation5 + $0x28] sm:$0xff]
          %v1186 = vsel %vm1169, %v1131, %v1185
          %1187 = vst [vmem:[#allocation5 + $0x28] sm:$0xff] %v1186
          %v1188 = vld [vmem:[#allocation5 + $0x30] sm:$0xff]
          %v1189 = vsel %vm1169, %v1133, %v1188
          %1190 = vst [vmem:[#allocation5 + $0x30] sm:$0xff] %v1189
          %v1191 = vld [vmem:[#allocation5 + $0x38] sm:$0xff]
          %v1192 = vsel %vm1169, %v1135, %v1191
          %1193 = vst [vmem:[#allocation5 + $0x38] sm:$0xff] %v1192
          %v1194 = vld [vmem:[#allocation5 + $0x40] sm:$0xff]
          %v1195 = vsel %vm1169, %v1137, %v1194
          %1196 = vst [vmem:[#allocation5 + $0x40] sm:$0xff] %v1195
          %v1197 = vld [vmem:[#allocation5 + $0x48] sm:$0xff]
          %v1198 = vsel %vm1169, %v1139, %v1197
          %1199 = vst [vmem:[#allocation5 + $0x48] sm:$0xff] %v1198
          %v1200 = vld [vmem:[#allocation5 + $0x50] sm:$0xff]
          %v1201 = vsel %vm1169, %v1141, %v1200
          %1202 = vst [vmem:[#allocation5 + $0x50] sm:$0xff] %v1201
          %v1203 = vld [vmem:[#allocation5 + $0x58] sm:$0xff]
          %v1204 = vsel %vm1169, %v1143, %v1203
          %1205 = vst [vmem:[#allocation5 + $0x58] sm:$0xff] %v1204
          %v1206 = vld [vmem:[#allocation5 + $0x60] sm:$0xff]
          %v1207 = vsel %vm1169, %v1145, %v1206
          %1208 = vst [vmem:[#allocation5 + $0x60] sm:$0xff] %v1207
          %v1209 = vld [vmem:[#allocation5 + $0x68] sm:$0xff]
          %v1210 = vsel %vm1169, %v1147, %v1209
          %1211 = vst [vmem:[#allocation5 + $0x68] sm:$0xff] %v1210
          %v1212 = vld [vmem:[#allocation5 + $0x70] sm:$0xff]
          %v1213 = vsel %vm1169, %v1149, %v1212
          %1214 = vst [vmem:[#allocation5 + $0x70] sm:$0xff] %v1213
          %v1215 = vld [vmem:[#allocation5 + $0x78] sm:$0xff]
          %v1216 = vsel %vm1169, %v1151, %v1215
          %1217 = vst [vmem:[#allocation5 + $0x78] sm:$0xff] %v1216
          %v1218 = vld [vmem:[%s276] sm:$0xff]
          %v1219 = vld [vmem:[%s276 + $0x8] sm:$0xff]
          %v1220 = vld [vmem:[%s276 + $0x10] sm:$0xff]
          %v1221 = vld [vmem:[%s276 + $0x18] sm:$0xff]
          %v1222 = vld [vmem:[%s276 + $0x20] sm:$0xff]
          %v1223 = vld [vmem:[%s276 + $0x28] sm:$0xff]
          %v1224 = vld [vmem:[%s276 + $0x30] sm:$0xff]
          %v1225 = vld [vmem:[%s276 + $0x38] sm:$0xff]
          %v1226 = vld [vmem:[%s276 + $0x40] sm:$0xff]
          %v1227 = vld [vmem:[%s276 + $0x48] sm:$0xff]
          %v1228 = vld [vmem:[%s276 + $0x50] sm:$0xff]
          %v1229 = vld [vmem:[%s276 + $0x58] sm:$0xff]
          %v1230 = vld [vmem:[%s276 + $0x60] sm:$0xff]
          %v1231 = vld [vmem:[%s276 + $0x68] sm:$0xff]
          %v1232 = vld [vmem:[%s276 + $0x70] sm:$0xff]
          %v1233 = vld [vmem:[%s276 + $0x78] sm:$0xff]
          %v1234 = vld [vmem:[%s276 + $0x80] sm:$0xff]
          %v1235 = vld [vmem:[%s276 + $0x88] sm:$0xff]
          %v1236 = vld [vmem:[%s276 + $0x90] sm:$0xff]
          %v1237 = vld [vmem:[%s276 + $0x98] sm:$0xff]
          %v1238 = vld [vmem:[%s276 + $0xa0] sm:$0xff]
          %v1239 = vld [vmem:[%s276 + $0xa8] sm:$0xff]
          %v1240 = vld [vmem:[%s276 + $0xb0] sm:$0xff]
          %v1241 = vld [vmem:[%s276 + $0xb8] sm:$0xff]
          %v1242 = vld [vmem:[%s276 + $0xc0] sm:$0xff]
          %v1243 = vld [vmem:[%s276 + $0xc8] sm:$0xff]
          %v1244 = vld [vmem:[%s276 + $0xd0] sm:$0xff]
          %v1245 = vld [vmem:[%s276 + $0xd8] sm:$0xff]
          %v1246 = vld [vmem:[%s276 + $0xe0] sm:$0xff]
          %v1247 = vld [vmem:[%s276 + $0xe8] sm:$0xff]
          %v1248 = vld [vmem:[%s276 + $0xf0] sm:$0xff]
          %v1249 = vld [vmem:[%s276 + $0xf8] sm:$0xff]
          %v1250 = vpack.c.bf16 %v1219, %v1218
          %v1251 = vpack.c.bf16 %v1221, %v1220
          %v1252 = vpack.c.bf16 %v1223, %v1222
          %v1253 = vpack.c.bf16 %v1225, %v1224
          %v1254 = vpack.c.bf16 %v1227, %v1226
          %v1255 = vpack.c.bf16 %v1229, %v1228
          %v1256 = vpack.c.bf16 %v1231, %v1230
          %v1257 = vpack.c.bf16 %v1233, %v1232
          %v1258 = vpack.c.bf16 %v1235, %v1234
          %v1259 = vpack.c.bf16 %v1237, %v1236
          %v1260 = vpack.c.bf16 %v1239, %v1238
          %v1261 = vpack.c.bf16 %v1241, %v1240
          %v1262 = vpack.c.bf16 %v1243, %v1242
          %v1263 = vpack.c.bf16 %v1245, %v1244
          %v1264 = vpack.c.bf16 %v1247, %v1246
          %v1265 = vpack.c.bf16 %v1249, %v1248
          %1282 = vrot.lane.b32.xlu0 %v1250, 16
          %v1283 = vpop.permute.xlu0 %1282
          %1284 = vrot.lane.b32.xlu0 %v1251, 16
          %v1285 = vpop.permute.xlu0 %1284
          %1286 = vrot.lane.b32.xlu0 %v1252, 16
          %v1287 = vpop.permute.xlu0 %1286
          %1288 = vrot.lane.b32.xlu0 %v1253, 16
          %v1289 = vpop.permute.xlu0 %1288
          %1290 = vrot.lane.b32.xlu0 %v1254, 16
          %v1291 = vpop.permute.xlu0 %1290
          %1292 = vrot.lane.b32.xlu0 %v1255, 16
          %v1293 = vpop.permute.xlu0 %1292
          %1294 = vrot.lane.b32.xlu0 %v1256, 16
          %v1295 = vpop.permute.xlu0 %1294
          %1296 = vrot.lane.b32.xlu0 %v1257, 16
          %v1297 = vpop.permute.xlu0 %1296
          %1298 = vrot.lane.b32.xlu0 %v1258, 16
          %v1299 = vpop.permute.xlu0 %1298
          %1300 = vrot.lane.b32.xlu0 %v1259, 16
          %v1301 = vpop.permute.xlu0 %1300
          %1302 = vrot.lane.b32.xlu0 %v1260, 16
          %v1303 = vpop.permute.xlu0 %1302
          %1304 = vrot.lane.b32.xlu0 %v1261, 16
          %v1305 = vpop.permute.xlu0 %1304
          %1306 = vrot.lane.b32.xlu0 %v1262, 16
          %v1307 = vpop.permute.xlu0 %1306
          %1308 = vrot.lane.b32.xlu0 %v1263, 16
          %v1309 = vpop.permute.xlu0 %1308
          %1310 = vrot.lane.b32.xlu0 %v1264, 16
          %v1311 = vpop.permute.xlu0 %1310
          %1312 = vrot.lane.b32.xlu0 %v1265, 16
          %v1313 = vpop.permute.xlu0 %1312
          %vm1330 = vcmask 162944
          %1331 = vst.msk [vmem:[#allocation5] sm:$0xff] %vm1330, %v1283
          %1332 = vst.msk [vmem:[#allocation5 + $0x8] sm:$0xff] %vm1330, %v1285
          %1333 = vst.msk [vmem:[#allocation5 + $0x10] sm:$0xff] %vm1330, %v1287
          %1334 = vst.msk [vmem:[#allocation5 + $0x18] sm:$0xff] %vm1330, %v1289
          %1335 = vst.msk [vmem:[#allocation5 + $0x20] sm:$0xff] %vm1330, %v1291
          %1336 = vst.msk [vmem:[#allocation5 + $0x28] sm:$0xff] %vm1330, %v1293
          %1337 = vst.msk [vmem:[#allocation5 + $0x30] sm:$0xff] %vm1330, %v1295
          %1338 = vst.msk [vmem:[#allocation5 + $0x38] sm:$0xff] %vm1330, %v1297
          %1339 = vst.msk [vmem:[#allocation5 + $0x40] sm:$0xff] %vm1330, %v1299
          %1340 = vst.msk [vmem:[#allocation5 + $0x48] sm:$0xff] %vm1330, %v1301
          %1341 = vst.msk [vmem:[#allocation5 + $0x50] sm:$0xff] %vm1330, %v1303
          %1342 = vst.msk [vmem:[#allocation5 + $0x58] sm:$0xff] %vm1330, %v1305
          %1343 = vst.msk [vmem:[#allocation5 + $0x60] sm:$0xff] %vm1330, %v1307
          %1344 = vst.msk [vmem:[#allocation5 + $0x68] sm:$0xff] %vm1330, %v1309
          %1345 = vst.msk [vmem:[#allocation5 + $0x70] sm:$0xff] %vm1330, %v1311
          %1346 = vst.msk [vmem:[#allocation5 + $0x78] sm:$0xff] %vm1330, %v1313
          %vm1347 = vcmask 195751
          %vm1348 = vmand %vm1347, %vm710
          %v1349 = vld [vmem:[#allocation5] sm:$0x80]
          %v1350 = vsel %vm1348, 0, %v1349
          %1351 = vst [vmem:[#allocation5] sm:$0x80] %v1350
          %v1352 = vld [vmem:[#allocation5 + $0x8] sm:$0x80]
          %v1353 = vsel %vm1348, 0, %v1352
          %1354 = vst [vmem:[#allocation5 + $0x8] sm:$0x80] %v1353
          %v1355 = vld [vmem:[#allocation5 + $0x10] sm:$0x80]
          %v1356 = vsel %vm1348, 0, %v1355
          %1357 = vst [vmem:[#allocation5 + $0x10] sm:$0x80] %v1356
          %v1358 = vld [vmem:[#allocation5 + $0x18] sm:$0x80]
          %v1359 = vsel %vm1348, 0, %v1358
          %1360 = vst [vmem:[#allocation5 + $0x18] sm:$0x80] %v1359
          %v1361 = vld [vmem:[#allocation5 + $0x20] sm:$0x80]
          %v1362 = vsel %vm1348, 0, %v1361
          %1363 = vst [vmem:[#allocation5 + $0x20] sm:$0x80] %v1362
          %v1364 = vld [vmem:[#allocation5 + $0x28] sm:$0x80]
          %v1365 = vsel %vm1348, 0, %v1364
          %1366 = vst [vmem:[#allocation5 + $0x28] sm:$0x80] %v1365
          %v1367 = vld [vmem:[#allocation5 + $0x30] sm:$0x80]
          %v1368 = vsel %vm1348, 0, %v1367
          %1369 = vst [vmem:[#allocation5 + $0x30] sm:$0x80] %v1368
          %v1370 = vld [vmem:[#allocation5 + $0x38] sm:$0x80]
          %v1371 = vsel %vm1348, 0, %v1370
          %1372 = vst [vmem:[#allocation5 + $0x38] sm:$0x80] %v1371
          %v1373 = vld [vmem:[#allocation5 + $0x40] sm:$0x80]
          %v1374 = vsel %vm1348, 0, %v1373
          %1375 = vst [vmem:[#allocation5 + $0x40] sm:$0x80] %v1374
          %v1376 = vld [vmem:[#allocation5 + $0x48] sm:$0x80]
          %v1377 = vsel %vm1348, 0, %v1376
          %1378 = vst [vmem:[#allocation5 + $0x48] sm:$0x80] %v1377
          %v1379 = vld [vmem:[#allocation5 + $0x50] sm:$0x80]
          %v1380 = vsel %vm1348, 0, %v1379
          %1381 = vst [vmem:[#allocation5 + $0x50] sm:$0x80] %v1380
          %v1382 = vld [vmem:[#allocation5 + $0x58] sm:$0x80]
          %v1383 = vsel %vm1348, 0, %v1382
          %1384 = vst [vmem:[#allocation5 + $0x58] sm:$0x80] %v1383
          %v1385 = vld [vmem:[#allocation5 + $0x60] sm:$0x80]
          %v1386 = vsel %vm1348, 0, %v1385
          %1387 = vst [vmem:[#allocation5 + $0x60] sm:$0x80] %v1386
          %v1388 = vld [vmem:[#allocation5 + $0x68] sm:$0x80]
          %v1389 = vsel %vm1348, 0, %v1388
          %1390 = vst [vmem:[#allocation5 + $0x68] sm:$0x80] %v1389
          %v1391 = vld [vmem:[#allocation5 + $0x70] sm:$0x80]
          %v1392 = vsel %vm1348, 0, %v1391
          %1393 = vst [vmem:[#allocation5 + $0x70] sm:$0x80] %v1392
          %v1394 = vld [vmem:[#allocation5 + $0x78] sm:$0x80]
          %v1395 = vsel %vm1348, 0, %v1394
          %1396 = vst [vmem:[#allocation5 + $0x78] sm:$0x80] %v1395
          %v1397 = vld [vmem:[%s276 + $0x1] sm:$0xff]
          %v1398 = vld [vmem:[%s276 + $0x9] sm:$0x7f]
          %v1399 = vld [vmem:[%s276 + $0x11] sm:$0xff]
          %v1400 = vld [vmem:[%s276 + $0x19] sm:$0x7f]
          %v1401 = vld [vmem:[%s276 + $0x21] sm:$0xff]
          %v1402 = vld [vmem:[%s276 + $0x29] sm:$0x7f]
          %v1403 = vld [vmem:[%s276 + $0x31] sm:$0xff]
          %v1404 = vld [vmem:[%s276 + $0x39] sm:$0x7f]
          %v1405 = vld [vmem:[%s276 + $0x41] sm:$0xff]
          %v1406 = vld [vmem:[%s276 + $0x49] sm:$0x7f]
          %v1407 = vld [vmem:[%s276 + $0x51] sm:$0xff]
          %v1408 = vld [vmem:[%s276 + $0x59] sm:$0x7f]
          %v1409 = vld [vmem:[%s276 + $0x61] sm:$0xff]
          %v1410 = vld [vmem:[%s276 + $0x69] sm:$0x7f]
          %v1411 = vld [vmem:[%s276 + $0x71] sm:$0xff]
          %v1412 = vld [vmem:[%s276 + $0x79] sm:$0x7f]
          %v1413 = vld [vmem:[%s276 + $0x81] sm:$0xff]
          %v1414 = vld [vmem:[%s276 + $0x89] sm:$0x7f]
          %v1415 = vld [vmem:[%s276 + $0x91] sm:$0xff]
          %v1416 = vld [vmem:[%s276 + $0x99] sm:$0x7f]
          %v1417 = vld [vmem:[%s276 + $0xa1] sm:$0xff]
          %v1418 = vld [vmem:[%s276 + $0xa9] sm:$0x7f]
          %v1419 = vld [vmem:[%s276 + $0xb1] sm:$0xff]
          %v1420 = vld [vmem:[%s276 + $0xb9] sm:$0x7f]
          %v1421 = vld [vmem:[%s276 + $0xc1] sm:$0xff]
          %v1422 = vld [vmem:[%s276 + $0xc9] sm:$0x7f]
          %v1423 = vld [vmem:[%s276 + $0xd1] sm:$0xff]
          %v1424 = vld [vmem:[%s276 + $0xd9] sm:$0x7f]
          %v1425 = vld [vmem:[%s276 + $0xe1] sm:$0xff]
          %v1426 = vld [vmem:[%s276 + $0xe9] sm:$0x7f]
          %v1427 = vld [vmem:[%s276 + $0xf1] sm:$0xff]
          %v1428 = vld [vmem:[%s276 + $0xf9] sm:$0x7f]
          %v1429 = vpack.c.bf16 %v1398, %v1397
          %v1430 = vpack.c.bf16 %v1400, %v1399
          %v1431 = vpack.c.bf16 %v1402, %v1401
          %v1432 = vpack.c.bf16 %v1404, %v1403
          %v1433 = vpack.c.bf16 %v1406, %v1405
          %v1434 = vpack.c.bf16 %v1408, %v1407
          %v1435 = vpack.c.bf16 %v1410, %v1409
          %v1436 = vpack.c.bf16 %v1412, %v1411
          %v1437 = vpack.c.bf16 %v1414, %v1413
          %v1438 = vpack.c.bf16 %v1416, %v1415
          %v1439 = vpack.c.bf16 %v1418, %v1417
          %v1440 = vpack.c.bf16 %v1420, %v1419
          %v1441 = vpack.c.bf16 %v1422, %v1421
          %v1442 = vpack.c.bf16 %v1424, %v1423
          %v1443 = vpack.c.bf16 %v1426, %v1425
          %v1444 = vpack.c.bf16 %v1428, %v1427
          %1461 = vrot.lane.b32.xlu0 %v1429, 20
          %v1462 = vpop.permute.xlu0 %1461
          %1463 = vrot.lane.b32.xlu0 %v1430, 20
          %v1464 = vpop.permute.xlu0 %1463
          %1465 = vrot.lane.b32.xlu0 %v1431, 20
          %v1466 = vpop.permute.xlu0 %1465
          %1467 = vrot.lane.b32.xlu0 %v1432, 20
          %v1468 = vpop.permute.xlu0 %1467
          %1469 = vrot.lane.b32.xlu0 %v1433, 20
          %v1470 = vpop.permute.xlu0 %1469
          %1471 = vrot.lane.b32.xlu0 %v1434, 20
          %v1472 = vpop.permute.xlu0 %1471
          %1473 = vrot.lane.b32.xlu0 %v1435, 20
          %v1474 = vpop.permute.xlu0 %1473
          %1475 = vrot.lane.b32.xlu0 %v1436, 20
          %v1476 = vpop.permute.xlu0 %1475
          %1477 = vrot.lane.b32.xlu0 %v1437, 20
          %v1478 = vpop.permute.xlu0 %1477
          %1479 = vrot.lane.b32.xlu0 %v1438, 20
          %v1480 = vpop.permute.xlu0 %1479
          %1481 = vrot.lane.b32.xlu0 %v1439, 20
          %v1482 = vpop.permute.xlu0 %1481
          %1483 = vrot.lane.b32.xlu0 %v1440, 20
          %v1484 = vpop.permute.xlu0 %1483
          %1485 = vrot.lane.b32.xlu0 %v1441, 20
          %v1486 = vpop.permute.xlu0 %1485
          %1487 = vrot.lane.b32.xlu0 %v1442, 20
          %v1488 = vpop.permute.xlu0 %1487
          %1489 = vrot.lane.b32.xlu0 %v1443, 20
          %v1490 = vpop.permute.xlu0 %1489
          %1491 = vrot.lane.b32.xlu0 %v1444, 20
          %v1492 = vpop.permute.xlu0 %1491
          %vm1509 = vcmask 195744
          %vm1510 = vmand %vm1509, %vm863
          %v1511 = vld [vmem:[#allocation5] sm:$0xff]
          %v1512 = vsel %vm1510, %v1462, %v1511
          %1513 = vst [vmem:[#allocation5] sm:$0xff] %v1512
          %v1514 = vld [vmem:[#allocation5 + $0x8] sm:$0xff]
          %v1515 = vsel %vm1510, %v1464, %v1514
          %1516 = vst [vmem:[#allocation5 + $0x8] sm:$0xff] %v1515
          %v1517 = vld [vmem:[#allocation5 + $0x10] sm:$0xff]
          %v1518 = vsel %vm1510, %v1466, %v1517
          %1519 = vst [vmem:[#allocation5 + $0x10] sm:$0xff] %v1518
          %v1520 = vld [vmem:[#allocation5 + $0x18] sm:$0xff]
          %v1521 = vsel %vm1510, %v1468, %v1520
          %1522 = vst [vmem:[#allocation5 + $0x18] sm:$0xff] %v1521
          %v1523 = vld [vmem:[#allocation5 + $0x20] sm:$0xff]
          %v1524 = vsel %vm1510, %v1470, %v1523
          %1525 = vst [vmem:[#allocation5 + $0x20] sm:$0xff] %v1524
          %v1526 = vld [vmem:[#allocation5 + $0x28] sm:$0xff]
          %v1527 = vsel %vm1510, %v1472, %v1526
          %1528 = vst [vmem:[#allocation5 + $0x28] sm:$0xff] %v1527
          %v1529 = vld [vmem:[#allocation5 + $0x30] sm:$0xff]
          %v1530 = vsel %vm1510, %v1474, %v1529
          %1531 = vst [vmem:[#allocation5 + $0x30] sm:$0xff] %v1530
          %v1532 = vld [vmem:[#allocation5 + $0x38] sm:$0xff]
          %v1533 = vsel %vm1510, %v1476, %v1532
          %1534 = vst [vmem:[#allocation5 + $0x38] sm:$0xff] %v1533
          %v1535 = vld [vmem:[#allocation5 + $0x40] sm:$0xff]
          %v1536 = vsel %vm1510, %v1478, %v1535
          %1537 = vst [vmem:[#allocation5 + $0x40] sm:$0xff] %v1536
          %v1538 = vld [vmem:[#allocation5 + $0x48] sm:$0xff]
          %v1539 = vsel %vm1510, %v1480, %v1538
          %1540 = vst [vmem:[#allocation5 + $0x48] sm:$0xff] %v1539
          %v1541 = vld [vmem:[#allocation5 + $0x50] sm:$0xff]
          %v1542 = vsel %vm1510, %v1482, %v1541
          %1543 = vst [vmem:[#allocation5 + $0x50] sm:$0xff] %v1542
          %v1544 = vld [vmem:[#allocation5 + $0x58] sm:$0xff]
          %v1545 = vsel %vm1510, %v1484, %v1544
          %1546 = vst [vmem:[#allocation5 + $0x58] sm:$0xff] %v1545
          %v1547 = vld [vmem:[#allocation5 + $0x60] sm:$0xff]
          %v1548 = vsel %vm1510, %v1486, %v1547
          %1549 = vst [vmem:[#allocation5 + $0x60] sm:$0xff] %v1548
          %v1550 = vld [vmem:[#allocation5 + $0x68] sm:$0xff]
          %v1551 = vsel %vm1510, %v1488, %v1550
          %1552 = vst [vmem:[#allocation5 + $0x68] sm:$0xff] %v1551
          %v1553 = vld [vmem:[#allocation5 + $0x70] sm:$0xff]
          %v1554 = vsel %vm1510, %v1490, %v1553
          %1555 = vst [vmem:[#allocation5 + $0x70] sm:$0xff] %v1554
          %v1556 = vld [vmem:[#allocation5 + $0x78] sm:$0xff]
          %v1557 = vsel %vm1510, %v1492, %v1556
          %1558 = vst [vmem:[#allocation5 + $0x78] sm:$0xff] %v1557
          %s1559 = scalar_lea.vmem [#allocation5], 120
          %vm1560 = vcmask 228544
          %1561 = vst.msk [vmem:[%s1559] sm:$0xff] %vm1560, 0
          %vm1562 = vcmask 221376
          %vm1563 = vmand %vm1562, %vm325
          %v1564 = vld [vmem:[#allocation5] sm:$0x1]
          %v1565 = vsel %vm1563, 0, %v1564
          %1566 = vst [vmem:[#allocation5] sm:$0x1] %v1565
          %v1567 = vld [vmem:[#allocation5 + $0x8] sm:$0x1]
          %v1568 = vsel %vm1563, 0, %v1567
          %1569 = vst [vmem:[#allocation5 + $0x8] sm:$0x1] %v1568
          %v1570 = vld [vmem:[#allocation5 + $0x10] sm:$0x1]
          %v1571 = vsel %vm1563, 0, %v1570
          %1572 = vst [vmem:[#allocation5 + $0x10] sm:$0x1] %v1571
          %v1573 = vld [vmem:[#allocation5 + $0x18] sm:$0x1]
          %v1574 = vsel %vm1563, 0, %v1573
          %1575 = vst [vmem:[#allocation5 + $0x18] sm:$0x1] %v1574
          %v1576 = vld [vmem:[#allocation5 + $0x20] sm:$0x1]
          %v1577 = vsel %vm1563, 0, %v1576
          %1578 = vst [vmem:[#allocation5 + $0x20] sm:$0x1] %v1577
          %v1579 = vld [vmem:[#allocation5 + $0x28] sm:$0x1]
          %v1580 = vsel %vm1563, 0, %v1579
          %1581 = vst [vmem:[#allocation5 + $0x28] sm:$0x1] %v1580
          %v1582 = vld [vmem:[#allocation5 + $0x30] sm:$0x1]
          %v1583 = vsel %vm1563, 0, %v1582
          %1584 = vst [vmem:[#allocation5 + $0x30] sm:$0x1] %v1583
          %v1585 = vld [vmem:[#allocation5 + $0x38] sm:$0x1]
          %v1586 = vsel %vm1563, 0, %v1585
          %1587 = vst [vmem:[#allocation5 + $0x38] sm:$0x1] %v1586
          %v1588 = vld [vmem:[#allocation5 + $0x40] sm:$0x1]
          %v1589 = vsel %vm1563, 0, %v1588
          %1590 = vst [vmem:[#allocation5 + $0x40] sm:$0x1] %v1589
          %v1591 = vld [vmem:[#allocation5 + $0x48] sm:$0x1]
          %v1592 = vsel %vm1563, 0, %v1591
          %1593 = vst [vmem:[#allocation5 + $0x48] sm:$0x1] %v1592
          %v1594 = vld [vmem:[#allocation5 + $0x50] sm:$0x1]
          %v1595 = vsel %vm1563, 0, %v1594
          %1596 = vst [vmem:[#allocation5 + $0x50] sm:$0x1] %v1595
          %v1597 = vld [vmem:[#allocation5 + $0x58] sm:$0x1]
          %v1598 = vsel %vm1563, 0, %v1597
          %1599 = vst [vmem:[#allocation5 + $0x58] sm:$0x1] %v1598
          %v1600 = vld [vmem:[#allocation5 + $0x60] sm:$0x1]
          %v1601 = vsel %vm1563, 0, %v1600
          %1602 = vst [vmem:[#allocation5 + $0x60] sm:$0x1] %v1601
          %v1603 = vld [vmem:[#allocation5 + $0x68] sm:$0x1]
          %v1604 = vsel %vm1563, 0, %v1603
          %1605 = vst [vmem:[#allocation5 + $0x68] sm:$0x1] %v1604
          %v1606 = vld [vmem:[#allocation5 + $0x70] sm:$0x1]
          %v1607 = vsel %vm1563, 0, %v1606
          %1608 = vst [vmem:[#allocation5 + $0x70] sm:$0x1] %v1607
          %s1609 = scalar_lea.vmem %s276, 16
          %v1610 = vld [vmem:[%s1609] sm:$0xff]
          %v1611 = vld [vmem:[%s1609 + $0x8] sm:$0x7f]
          %v1612 = vld [vmem:[%s1609 + $0x10] sm:$0xff]
          %v1613 = vld [vmem:[%s1609 + $0x18] sm:$0x7f]
          %v1614 = vld [vmem:[%s1609 + $0x20] sm:$0xff]
          %v1615 = vld [vmem:[%s1609 + $0x28] sm:$0x7f]
          %v1616 = vld [vmem:[%s1609 + $0x30] sm:$0xff]
          %v1617 = vld [vmem:[%s1609 + $0x38] sm:$0x7f]
          %v1618 = vld [vmem:[%s1609 + $0x40] sm:$0xff]
          %v1619 = vld [vmem:[%s1609 + $0x48] sm:$0x7f]
          %v1620 = vld [vmem:[%s1609 + $0x50] sm:$0xff]
          %v1621 = vld [vmem:[%s1609 + $0x58] sm:$0x7f]
          %v1622 = vld [vmem:[%s1609 + $0x60] sm:$0xff]
          %v1623 = vld [vmem:[%s1609 + $0x68] sm:$0x7f]
          %v1624 = vld [vmem:[%s1609 + $0x70] sm:$0xff]
          %v1625 = vld [vmem:[%s1609 + $0x78] sm:$0x7f]
          %v1626 = vld [vmem:[%s1609 + $0x80] sm:$0xff]
          %v1627 = vld [vmem:[%s1609 + $0x88] sm:$0x7f]
          %v1628 = vld [vmem:[%s1609 + $0x90] sm:$0xff]
          %v1629 = vld [vmem:[%s1609 + $0x98] sm:$0x7f]
          %v1630 = vld [vmem:[%s1609 + $0xa0] sm:$0xff]
          %v1631 = vld [vmem:[%s1609 + $0xa8] sm:$0x7f]
          %v1632 = vld [vmem:[%s1609 + $0xb0] sm:$0xff]
          %v1633 = vld [vmem:[%s1609 + $0xb8] sm:$0x7f]
          %v1634 = vld [vmem:[%s1609 + $0xc0] sm:$0xff]
          %v1635 = vld [vmem:[%s1609 + $0xc8] sm:$0x7f]
          %v1636 = vld [vmem:[%s1609 + $0xd0] sm:$0xff]
          %v1637 = vld [vmem:[%s1609 + $0xd8] sm:$0x7f]
          %v1638 = vld [vmem:[%s1609 + $0xe0] sm:$0xff]
          %v1639 = vld [vmem:[%s1609 + $0xe8] sm:$0x7f]
          %v1640 = vpack.c.bf16 %v1611, %v1610
          %v1641 = vpack.c.bf16 %v1613, %v1612
          %v1642 = vpack.c.bf16 %v1615, %v1614
          %v1643 = vpack.c.bf16 %v1617, %v1616
          %v1644 = vpack.c.bf16 %v1619, %v1618
          %v1645 = vpack.c.bf16 %v1621, %v1620
          %v1646 = vpack.c.bf16 %v1623, %v1622
          %v1647 = vpack.c.bf16 %v1625, %v1624
          %v1648 = vpack.c.bf16 %v1627, %v1626
          %v1649 = vpack.c.bf16 %v1629, %v1628
          %v1650 = vpack.c.bf16 %v1631, %v1630
          %v1651 = vpack.c.bf16 %v1633, %v1632
          %v1652 = vpack.c.bf16 %v1635, %v1634
          %v1653 = vpack.c.bf16 %v1637, %v1636
          %v1654 = vpack.c.bf16 %v1639, %v1638
          %v1656 = vshrl.u32 %v1640, 16
          %v1658 = vrot.slane %v1656, 7
          %v1659 = vshll.u32 %v1640, 16
          %v1661 = vor.u32 %v1658, %v1659
          %v1663 = vshrl.u32 %v1641, 16
          %v1665 = vrot.slane %v1663, 7
          %v1666 = vshll.u32 %v1641, 16
          %v1668 = vor.u32 %v1665, %v1666
          %v1670 = vshrl.u32 %v1642, 16
          %v1672 = vrot.slane %v1670, 7
          %v1673 = vshll.u32 %v1642, 16
          %v1675 = vor.u32 %v1672, %v1673
          %v1677 = vshrl.u32 %v1643, 16
          %v1679 = vrot.slane %v1677, 7
          %v1680 = vshll.u32 %v1643, 16
          %v1682 = vor.u32 %v1679, %v1680
          %v1684 = vshrl.u32 %v1644, 16
          %v1686 = vrot.slane %v1684, 7
          %v1687 = vshll.u32 %v1644, 16
          %v1689 = vor.u32 %v1686, %v1687
          %v1691 = vshrl.u32 %v1645, 16
          %v1693 = vrot.slane %v1691, 7
          %v1694 = vshll.u32 %v1645, 16
          %v1696 = vor.u32 %v1693, %v1694
          %v1698 = vshrl.u32 %v1646, 16
          %v1700 = vrot.slane %v1698, 7
          %v1701 = vshll.u32 %v1646, 16
          %v1703 = vor.u32 %v1700, %v1701
          %v1705 = vshrl.u32 %v1647, 16
          %v1707 = vrot.slane %v1705, 7
          %v1708 = vshll.u32 %v1647, 16
          %v1710 = vor.u32 %v1707, %v1708
          %v1712 = vshrl.u32 %v1648, 16
          %v1714 = vrot.slane %v1712, 7
          %v1715 = vshll.u32 %v1648, 16
          %v1717 = vor.u32 %v1714, %v1715
          %v1719 = vshrl.u32 %v1649, 16
          %v1721 = vrot.slane %v1719, 7
          %v1722 = vshll.u32 %v1649, 16
          %v1724 = vor.u32 %v1721, %v1722
          %v1726 = vshrl.u32 %v1650, 16
          %v1728 = vrot.slane %v1726, 7
          %v1729 = vshll.u32 %v1650, 16
          %v1731 = vor.u32 %v1728, %v1729
          %v1733 = vshrl.u32 %v1651, 16
          %v1735 = vrot.slane %v1733, 7
          %v1736 = vshll.u32 %v1651, 16
          %v1738 = vor.u32 %v1735, %v1736
          %v1740 = vshrl.u32 %v1652, 16
          %v1742 = vrot.slane %v1740, 7
          %v1743 = vshll.u32 %v1652, 16
          %v1745 = vor.u32 %v1742, %v1743
          %v1747 = vshrl.u32 %v1653, 16
          %v1749 = vrot.slane %v1747, 7
          %v1750 = vshll.u32 %v1653, 16
          %v1752 = vor.u32 %v1749, %v1750
          %v1754 = vshrl.u32 %v1654, 16
          %v1756 = vrot.slane %v1754, 7
          %v1757 = vshll.u32 %v1654, 16
          %v1759 = vor.u32 %v1756, %v1757
          %1760 = vrot.lane.b32.xlu0 %v1661, 24
          %v1761 = vpop.permute.xlu0 %1760
          %1762 = vrot.lane.b32.xlu0 %v1668, 24
          %v1763 = vpop.permute.xlu0 %1762
          %1764 = vrot.lane.b32.xlu0 %v1675, 24
          %v1765 = vpop.permute.xlu0 %1764
          %1766 = vrot.lane.b32.xlu0 %v1682, 24
          %v1767 = vpop.permute.xlu0 %1766
          %1768 = vrot.lane.b32.xlu0 %v1689, 24
          %v1769 = vpop.permute.xlu0 %1768
          %1770 = vrot.lane.b32.xlu0 %v1696, 24
          %v1771 = vpop.permute.xlu0 %1770
          %1772 = vrot.lane.b32.xlu0 %v1703, 24
          %v1773 = vpop.permute.xlu0 %1772
          %1774 = vrot.lane.b32.xlu0 %v1710, 24
          %v1775 = vpop.permute.xlu0 %1774
          %1776 = vrot.lane.b32.xlu0 %v1717, 24
          %v1777 = vpop.permute.xlu0 %1776
          %1778 = vrot.lane.b32.xlu0 %v1724, 24
          %v1779 = vpop.permute.xlu0 %1778
          %1780 = vrot.lane.b32.xlu0 %v1731, 24
          %v1781 = vpop.permute.xlu0 %1780
          %1782 = vrot.lane.b32.xlu0 %v1738, 24
          %v1783 = vpop.permute.xlu0 %1782
          %1784 = vrot.lane.b32.xlu0 %v1745, 24
          %v1785 = vpop.permute.xlu0 %1784
          %1786 = vrot.lane.b32.xlu0 %v1752, 24
          %v1787 = vpop.permute.xlu0 %1786
          %1788 = vrot.lane.b32.xlu0 %v1759, 24
          %v1789 = vpop.permute.xlu0 %1788
          %vm1805 = vcmask 228544
          %vm1806 = vmand %vm1805, %vm538
          %v1807 = vld [vmem:[#allocation5] sm:$0xff]
          %v1808 = vsel %vm1806, %v1761, %v1807
          %1809 = vst [vmem:[#allocation5] sm:$0xff] %v1808
          %v1810 = vld [vmem:[#allocation5 + $0x8] sm:$0xff]
          %v1811 = vsel %vm1806, %v1763, %v1810
          %1812 = vst [vmem:[#allocation5 + $0x8] sm:$0xff] %v1811
          %v1813 = vld [vmem:[#allocation5 + $0x10] sm:$0xff]
          %v1814 = vsel %vm1806, %v1765, %v1813
          %1815 = vst [vmem:[#allocation5 + $0x10] sm:$0xff] %v1814
          %v1816 = vld [vmem:[#allocation5 + $0x18] sm:$0xff]
          %v1817 = vsel %vm1806, %v1767, %v1816
          %1818 = vst [vmem:[#allocation5 + $0x18] sm:$0xff] %v1817
          %v1819 = vld [vmem:[#allocation5 + $0x20] sm:$0xff]
          %v1820 = vsel %vm1806, %v1769, %v1819
          %1821 = vst [vmem:[#allocation5 + $0x20] sm:$0xff] %v1820
          %v1822 = vld [vmem:[#allocation5 + $0x28] sm:$0xff]
          %v1823 = vsel %vm1806, %v1771, %v1822
          %1824 = vst [vmem:[#allocation5 + $0x28] sm:$0xff] %v1823
          %v1825 = vld [vmem:[#allocation5 + $0x30] sm:$0xff]
          %v1826 = vsel %vm1806, %v1773, %v1825
          %1827 = vst [vmem:[#allocation5 + $0x30] sm:$0xff] %v1826
          %v1828 = vld [vmem:[#allocation5 + $0x38] sm:$0xff]
          %v1829 = vsel %vm1806, %v1775, %v1828
          %1830 = vst [vmem:[#allocation5 + $0x38] sm:$0xff] %v1829
          %v1831 = vld [vmem:[#allocation5 + $0x40] sm:$0xff]
          %v1832 = vsel %vm1806, %v1777, %v1831
          %1833 = vst [vmem:[#allocation5 + $0x40] sm:$0xff] %v1832
          %v1834 = vld [vmem:[#allocation5 + $0x48] sm:$0xff]
          %v1835 = vsel %vm1806, %v1779, %v1834
          %1836 = vst [vmem:[#allocation5 + $0x48] sm:$0xff] %v1835
          %v1837 = vld [vmem:[#allocation5 + $0x50] sm:$0xff]
          %v1838 = vsel %vm1806, %v1781, %v1837
          %1839 = vst [vmem:[#allocation5 + $0x50] sm:$0xff] %v1838
          %v1840 = vld [vmem:[#allocation5 + $0x58] sm:$0xff]
          %v1841 = vsel %vm1806, %v1783, %v1840
          %1842 = vst [vmem:[#allocation5 + $0x58] sm:$0xff] %v1841
          %v1843 = vld [vmem:[#allocation5 + $0x60] sm:$0xff]
          %v1844 = vsel %vm1806, %v1785, %v1843
          %1845 = vst [vmem:[#allocation5 + $0x60] sm:$0xff] %v1844
          %v1846 = vld [vmem:[#allocation5 + $0x68] sm:$0xff]
          %v1847 = vsel %vm1806, %v1787, %v1846
          %1848 = vst [vmem:[#allocation5 + $0x68] sm:$0xff] %v1847
          %v1849 = vld [vmem:[#allocation5 + $0x70] sm:$0xff]
          %v1850 = vsel %vm1806, %v1789, %v1849
          %1851 = vst [vmem:[#allocation5 + $0x70] sm:$0xff] %v1850
          %vm1852 = vcmask 261344
          %1853 = vst.msk [vmem:[%s1559] sm:$0xff] %vm1852, 0
          %v1854 = vld [vmem:[%s1609] sm:$0xff]
          %v1855 = vld [vmem:[%s1609 + $0x8] sm:$0xff]
          %v1856 = vld [vmem:[%s1609 + $0x10] sm:$0xff]
          %v1857 = vld [vmem:[%s1609 + $0x18] sm:$0xff]
          %v1858 = vld [vmem:[%s1609 + $0x20] sm:$0xff]
          %v1859 = vld [vmem:[%s1609 + $0x28] sm:$0xff]
          %v1860 = vld [vmem:[%s1609 + $0x30] sm:$0xff]
          %v1861 = vld [vmem:[%s1609 + $0x38] sm:$0xff]
          %v1862 = vld [vmem:[%s1609 + $0x40] sm:$0xff]
          %v1863 = vld [vmem:[%s1609 + $0x48] sm:$0xff]
          %v1864 = vld [vmem:[%s1609 + $0x50] sm:$0xff]
          %v1865 = vld [vmem:[%s1609 + $0x58] sm:$0xff]
          %v1866 = vld [vmem:[%s1609 + $0x60] sm:$0xff]
          %v1867 = vld [vmem:[%s1609 + $0x68] sm:$0xff]
          %v1868 = vld [vmem:[%s1609 + $0x70] sm:$0xff]
          %v1869 = vld [vmem:[%s1609 + $0x78] sm:$0xff]
          %v1870 = vld [vmem:[%s1609 + $0x80] sm:$0xff]
          %v1871 = vld [vmem:[%s1609 + $0x88] sm:$0xff]
          %v1872 = vld [vmem:[%s1609 + $0x90] sm:$0xff]
          %v1873 = vld [vmem:[%s1609 + $0x98] sm:$0xff]
          %v1874 = vld [vmem:[%s1609 + $0xa0] sm:$0xff]
          %v1875 = vld [vmem:[%s1609 + $0xa8] sm:$0xff]
          %v1876 = vld [vmem:[%s1609 + $0xb0] sm:$0xff]
          %v1877 = vld [vmem:[%s1609 + $0xb8] sm:$0xff]
          %v1878 = vld [vmem:[%s1609 + $0xc0] sm:$0xff]
          %v1879 = vld [vmem:[%s1609 + $0xc8] sm:$0xff]
          %v1880 = vld [vmem:[%s1609 + $0xd0] sm:$0xff]
          %v1881 = vld [vmem:[%s1609 + $0xd8] sm:$0xff]
          %v1882 = vld [vmem:[%s1609 + $0xe0] sm:$0xff]
          %v1883 = vld [vmem:[%s1609 + $0xe8] sm:$0xff]
          %v1884 = vpack.c.bf16 %v1855, %v1854
          %v1885 = vpack.c.bf16 %v1857, %v1856
          %v1886 = vpack.c.bf16 %v1859, %v1858
          %v1887 = vpack.c.bf16 %v1861, %v1860
          %v1888 = vpack.c.bf16 %v1863, %v1862
          %v1889 = vpack.c.bf16 %v1865, %v1864
          %v1890 = vpack.c.bf16 %v1867, %v1866
          %v1891 = vpack.c.bf16 %v1869, %v1868
          %v1892 = vpack.c.bf16 %v1871, %v1870
          %v1893 = vpack.c.bf16 %v1873, %v1872
          %v1894 = vpack.c.bf16 %v1875, %v1874
          %v1895 = vpack.c.bf16 %v1877, %v1876
          %v1896 = vpack.c.bf16 %v1879, %v1878
          %v1897 = vpack.c.bf16 %v1881, %v1880
          %v1898 = vpack.c.bf16 %v1883, %v1882
          %1914 = vrot.lane.b32.xlu0 %v1884, 28
          %v1915 = vpop.permute.xlu0 %1914
          %1916 = vrot.lane.b32.xlu0 %v1885, 28
          %v1917 = vpop.permute.xlu0 %1916
          %1918 = vrot.lane.b32.xlu0 %v1886, 28
          %v1919 = vpop.permute.xlu0 %1918
          %1920 = vrot.lane.b32.xlu0 %v1887, 28
          %v1921 = vpop.permute.xlu0 %1920
          %1922 = vrot.lane.b32.xlu0 %v1888, 28
          %v1923 = vpop.permute.xlu0 %1922
          %1924 = vrot.lane.b32.xlu0 %v1889, 28
          %v1925 = vpop.permute.xlu0 %1924
          %1926 = vrot.lane.b32.xlu0 %v1890, 28
          %v1927 = vpop.permute.xlu0 %1926
          %1928 = vrot.lane.b32.xlu0 %v1891, 28
          %v1929 = vpop.permute.xlu0 %1928
          %1930 = vrot.lane.b32.xlu0 %v1892, 28
          %v1931 = vpop.permute.xlu0 %1930
          %1932 = vrot.lane.b32.xlu0 %v1893, 28
          %v1933 = vpop.permute.xlu0 %1932
          %1934 = vrot.lane.b32.xlu0 %v1894, 28
          %v1935 = vpop.permute.xlu0 %1934
          %1936 = vrot.lane.b32.xlu0 %v1895, 28
          %v1937 = vpop.permute.xlu0 %1936
          %1938 = vrot.lane.b32.xlu0 %v1896, 28
          %v1939 = vpop.permute.xlu0 %1938
          %1940 = vrot.lane.b32.xlu0 %v1897, 28
          %v1941 = vpop.permute.xlu0 %1940
          %1942 = vrot.lane.b32.xlu0 %v1898, 28
          %v1943 = vpop.permute.xlu0 %1942
          %1959 = vst.msk [vmem:[#allocation5] sm:$0xff] %vm1852, %v1915
          %1960 = vst.msk [vmem:[#allocation5 + $0x8] sm:$0xff] %vm1852, %v1917
          %1961 = vst.msk [vmem:[#allocation5 + $0x10] sm:$0xff] %vm1852, %v1919
          %1962 = vst.msk [vmem:[#allocation5 + $0x18] sm:$0xff] %vm1852, %v1921
          %1963 = vst.msk [vmem:[#allocation5 + $0x20] sm:$0xff] %vm1852, %v1923
          %1964 = vst.msk [vmem:[#allocation5 + $0x28] sm:$0xff] %vm1852, %v1925
          %1965 = vst.msk [vmem:[#allocation5 + $0x30] sm:$0xff] %vm1852, %v1927
          %1966 = vst.msk [vmem:[#allocation5 + $0x38] sm:$0xff] %vm1852, %v1929
          %1967 = vst.msk [vmem:[#allocation5 + $0x40] sm:$0xff] %vm1852, %v1931
          %1968 = vst.msk [vmem:[#allocation5 + $0x48] sm:$0xff] %vm1852, %v1933
          %1969 = vst.msk [vmem:[#allocation5 + $0x50] sm:$0xff] %vm1852, %v1935
          %1970 = vst.msk [vmem:[#allocation5 + $0x58] sm:$0xff] %vm1852, %v1937
          %1971 = vst.msk [vmem:[#allocation5 + $0x60] sm:$0xff] %vm1852, %v1939
          %1972 = vst.msk [vmem:[#allocation5 + $0x68] sm:$0xff] %vm1852, %v1941
          %1973 = vst.msk [vmem:[#allocation5 + $0x70] sm:$0xff] %vm1852, %v1943
          %vm1974 = vcmask 294144
          %1975 = vst.msk [vmem:[%s1559] sm:$0xff] %vm1974, 0
          %vm1976 = vcmask 294151
          %vm1977 = vmand %vm1976, %vm710
          %v1978 = vld [vmem:[#allocation5] sm:$0x80]
          %v1979 = vsel %vm1977, 0, %v1978
          %1980 = vst [vmem:[#allocation5] sm:$0x80] %v1979
          %v1981 = vld [vmem:[#allocation5 + $0x8] sm:$0x80]
          %v1982 = vsel %vm1977, 0, %v1981
          %1983 = vst [vmem:[#allocation5 + $0x8] sm:$0x80] %v1982
          %v1984 = vld [vmem:[#allocation5 + $0x10] sm:$0x80]
          %v1985 = vsel %vm1977, 0, %v1984
          %1986 = vst [vmem:[#allocation5 + $0x10] sm:$0x80] %v1985
          %v1987 = vld [vmem:[#allocation5 + $0x18] sm:$0x80]
          %v1988 = vsel %vm1977, 0, %v1987
          %1989 = vst [vmem:[#allocation5 + $0x18] sm:$0x80] %v1988
          %v1990 = vld [vmem:[#allocation5 + $0x20] sm:$0x80]
          %v1991 = vsel %vm1977, 0, %v1990
          %1992 = vst [vmem:[#allocation5 + $0x20] sm:$0x80] %v1991
          %v1993 = vld [vmem:[#allocation5 + $0x28] sm:$0x80]
          %v1994 = vsel %vm1977, 0, %v1993
          %1995 = vst [vmem:[#allocation5 + $0x28] sm:$0x80] %v1994
          %v1996 = vld [vmem:[#allocation5 + $0x30] sm:$0x80]
          %v1997 = vsel %vm1977, 0, %v1996
          %1998 = vst [vmem:[#allocation5 + $0x30] sm:$0x80] %v1997
          %v1999 = vld [vmem:[#allocation5 + $0x38] sm:$0x80]
          %v2000 = vsel %vm1977, 0, %v1999
          %2001 = vst [vmem:[#allocation5 + $0x38] sm:$0x80] %v2000
          %v2002 = vld [vmem:[#allocation5 + $0x40] sm:$0x80]
          %v2003 = vsel %vm1977, 0, %v2002
          %2004 = vst [vmem:[#allocation5 + $0x40] sm:$0x80] %v2003
          %v2005 = vld [vmem:[#allocation5 + $0x48] sm:$0x80]
          %v2006 = vsel %vm1977, 0, %v2005
          %2007 = vst [vmem:[#allocation5 + $0x48] sm:$0x80] %v2006
          %v2008 = vld [vmem:[#allocation5 + $0x50] sm:$0x80]
          %v2009 = vsel %vm1977, 0, %v2008
          %2010 = vst [vmem:[#allocation5 + $0x50] sm:$0x80] %v2009
          %v2011 = vld [vmem:[#allocation5 + $0x58] sm:$0x80]
          %v2012 = vsel %vm1977, 0, %v2011
          %2013 = vst [vmem:[#allocation5 + $0x58] sm:$0x80] %v2012
          %v2014 = vld [vmem:[#allocation5 + $0x60] sm:$0x80]
          %v2015 = vsel %vm1977, 0, %v2014
          %2016 = vst [vmem:[#allocation5 + $0x60] sm:$0x80] %v2015
          %v2017 = vld [vmem:[#allocation5 + $0x68] sm:$0x80]
          %v2018 = vsel %vm1977, 0, %v2017
          %2019 = vst [vmem:[#allocation5 + $0x68] sm:$0x80] %v2018
          %v2020 = vld [vmem:[#allocation5 + $0x70] sm:$0x80]
          %v2021 = vsel %vm1977, 0, %v2020
          %2022 = vst [vmem:[#allocation5 + $0x70] sm:$0x80] %v2021
          %v2023 = vld [vmem:[%s1609 + $0x1] sm:$0xff]
          %v2024 = vld [vmem:[%s1609 + $0x9] sm:$0x7f]
          %v2025 = vld [vmem:[%s1609 + $0x11] sm:$0xff]
          %v2026 = vld [vmem:[%s1609 + $0x19] sm:$0x7f]
          %v2027 = vld [vmem:[%s1609 + $0x21] sm:$0xff]
          %v2028 = vld [vmem:[%s1609 + $0x29] sm:$0x7f]
          %v2029 = vld [vmem:[%s1609 + $0x31] sm:$0xff]
          %v2030 = vld [vmem:[%s1609 + $0x39] sm:$0x7f]
          %v2031 = vld [vmem:[%s1609 + $0x41] sm:$0xff]
          %v2032 = vld [vmem:[%s1609 + $0x49] sm:$0x7f]
          %v2033 = vld [vmem:[%s1609 + $0x51] sm:$0xff]
          %v2034 = vld [vmem:[%s1609 + $0x59] sm:$0x7f]
          %v2035 = vld [vmem:[%s1609 + $0x61] sm:$0xff]
          %v2036 = vld [vmem:[%s1609 + $0x69] sm:$0x7f]
          %v2037 = vld [vmem:[%s1609 + $0x71] sm:$0xff]
          %v2038 = vld [vmem:[%s1609 + $0x79] sm:$0x7f]
          %v2039 = vld [vmem:[%s1609 + $0x81] sm:$0xff]
          %v2040 = vld [vmem:[%s1609 + $0x89] sm:$0x7f]
          %v2041 = vld [vmem:[%s1609 + $0x91] sm:$0xff]
          %v2042 = vld [vmem:[%s1609 + $0x99] sm:$0x7f]
          %v2043 = vld [vmem:[%s1609 + $0xa1] sm:$0xff]
          %v2044 = vld [vmem:[%s1609 + $0xa9] sm:$0x7f]
          %v2045 = vld [vmem:[%s1609 + $0xb1] sm:$0xff]
          %v2046 = vld [vmem:[%s1609 + $0xb9] sm:$0x7f]
          %v2047 = vld [vmem:[%s1609 + $0xc1] sm:$0xff]
          %v2048 = vld [vmem:[%s1609 + $0xc9] sm:$0x7f]
          %v2049 = vld [vmem:[%s1609 + $0xd1] sm:$0xff]
          %v2050 = vld [vmem:[%s1609 + $0xd9] sm:$0x7f]
          %v2051 = vld [vmem:[%s1609 + $0xe1] sm:$0xff]
          %v2052 = vld [vmem:[%s1609 + $0xe9] sm:$0x7f]
          %v2053 = vpack.c.bf16 %v2024, %v2023
          %v2054 = vpack.c.bf16 %v2026, %v2025
          %v2055 = vpack.c.bf16 %v2028, %v2027
          %v2056 = vpack.c.bf16 %v2030, %v2029
          %v2057 = vpack.c.bf16 %v2032, %v2031
          %v2058 = vpack.c.bf16 %v2034, %v2033
          %v2059 = vpack.c.bf16 %v2036, %v2035
          %v2060 = vpack.c.bf16 %v2038, %v2037
          %v2061 = vpack.c.bf16 %v2040, %v2039
          %v2062 = vpack.c.bf16 %v2042, %v2041
          %v2063 = vpack.c.bf16 %v2044, %v2043
          %v2064 = vpack.c.bf16 %v2046, %v2045
          %v2065 = vpack.c.bf16 %v2048, %v2047
          %v2066 = vpack.c.bf16 %v2050, %v2049
          %v2067 = vpack.c.bf16 %v2052, %v2051
          %2083 = vrot.lane.b32.xlu0 %v2053, 32
          %v2084 = vpop.permute.xlu0 %2083
          %2085 = vrot.lane.b32.xlu0 %v2054, 32
          %v2086 = vpop.permute.xlu0 %2085
          %2087 = vrot.lane.b32.xlu0 %v2055, 32
          %v2088 = vpop.permute.xlu0 %2087
          %2089 = vrot.lane.b32.xlu0 %v2056, 32
          %v2090 = vpop.permute.xlu0 %2089
          %2091 = vrot.lane.b32.xlu0 %v2057, 32
          %v2092 = vpop.permute.xlu0 %2091
          %2093 = vrot.lane.b32.xlu0 %v2058, 32
          %v2094 = vpop.permute.xlu0 %2093
          %2095 = vrot.lane.b32.xlu0 %v2059, 32
          %v2096 = vpop.permute.xlu0 %2095
          %2097 = vrot.lane.b32.xlu0 %v2060, 32
          %v2098 = vpop.permute.xlu0 %2097
          %2099 = vrot.lane.b32.xlu0 %v2061, 32
          %v2100 = vpop.permute.xlu0 %2099
          %2101 = vrot.lane.b32.xlu0 %v2062, 32
          %v2102 = vpop.permute.xlu0 %2101
          %2103 = vrot.lane.b32.xlu0 %v2063, 32
          %v2104 = vpop.permute.xlu0 %2103
          %2105 = vrot.lane.b32.xlu0 %v2064, 32
          %v2106 = vpop.permute.xlu0 %2105
          %2107 = vrot.lane.b32.xlu0 %v2065, 32
          %v2108 = vpop.permute.xlu0 %2107
          %2109 = vrot.lane.b32.xlu0 %v2066, 32
          %v2110 = vpop.permute.xlu0 %2109
          %2111 = vrot.lane.b32.xlu0 %v2067, 32
          %v2112 = vpop.permute.xlu0 %2111
          %vm2128 = vcmask 294144
          %vm2129 = vmand %vm2128, %vm863
          %v2130 = vld [vmem:[#allocation5] sm:$0xff]
          %v2131 = vsel %vm2129, %v2084, %v2130
          %2132 = vst [vmem:[#allocation5] sm:$0xff] %v2131
          %v2133 = vld [vmem:[#allocation5 + $0x8] sm:$0xff]
          %v2134 = vsel %vm2129, %v2086, %v2133
          %2135 = vst [vmem:[#allocation5 + $0x8] sm:$0xff] %v2134
          %v2136 = vld [vmem:[#allocation5 + $0x10] sm:$0xff]
          %v2137 = vsel %vm2129, %v2088, %v2136
          %2138 = vst [vmem:[#allocation5 + $0x10] sm:$0xff] %v2137
          %v2139 = vld [vmem:[#allocation5 + $0x18] sm:$0xff]
          %v2140 = vsel %vm2129, %v2090, %v2139
          %2141 = vst [vmem:[#allocation5 + $0x18] sm:$0xff] %v2140
          %v2142 = vld [vmem:[#allocation5 + $0x20] sm:$0xff]
          %v2143 = vsel %vm2129, %v2092, %v2142
          %2144 = vst [vmem:[#allocation5 + $0x20] sm:$0xff] %v2143
          %v2145 = vld [vmem:[#allocation5 + $0x28] sm:$0xff]
          %v2146 = vsel %vm2129, %v2094, %v2145
          %2147 = vst [vmem:[#allocation5 + $0x28] sm:$0xff] %v2146
          %v2148 = vld [vmem:[#allocation5 + $0x30] sm:$0xff]
          %v2149 = vsel %vm2129, %v2096, %v2148
          %2150 = vst [vmem:[#allocation5 + $0x30] sm:$0xff] %v2149
          %v2151 = vld [vmem:[#allocation5 + $0x38] sm:$0xff]
          %v2152 = vsel %vm2129, %v2098, %v2151
          %2153 = vst [vmem:[#allocation5 + $0x38] sm:$0xff] %v2152
          %v2154 = vld [vmem:[#allocation5 + $0x40] sm:$0xff]
          %v2155 = vsel %vm2129, %v2100, %v2154
          %2156 = vst [vmem:[#allocation5 + $0x40] sm:$0xff] %v2155
          %v2157 = vld [vmem:[#allocation5 + $0x48] sm:$0xff]
          %v2158 = vsel %vm2129, %v2102, %v2157
          %2159 = vst [vmem:[#allocation5 + $0x48] sm:$0xff] %v2158
          %v2160 = vld [vmem:[#allocation5 + $0x50] sm:$0xff]
          %v2161 = vsel %vm2129, %v2104, %v2160
          %2162 = vst [vmem:[#allocation5 + $0x50] sm:$0xff] %v2161
          %v2163 = vld [vmem:[#allocation5 + $0x58] sm:$0xff]
          %v2164 = vsel %vm2129, %v2106, %v2163
          %2165 = vst [vmem:[#allocation5 + $0x58] sm:$0xff] %v2164
          %v2166 = vld [vmem:[#allocation5 + $0x60] sm:$0xff]
          %v2167 = vsel %vm2129, %v2108, %v2166
          %2168 = vst [vmem:[#allocation5 + $0x60] sm:$0xff] %v2167
          %v2169 = vld [vmem:[#allocation5 + $0x68] sm:$0xff]
          %v2170 = vsel %vm2129, %v2110, %v2169
          %2171 = vst [vmem:[#allocation5 + $0x68] sm:$0xff] %v2170
          %v2172 = vld [vmem:[#allocation5 + $0x70] sm:$0xff]
          %v2173 = vsel %vm2129, %v2112, %v2172
          %2174 = vst [vmem:[#allocation5 + $0x70] sm:$0xff] %v2173
          %v2175 = vld [vmem:[#allocation5] sm:$0xff]
          %v2176 = vld [vmem:[#allocation5 + $0x8] sm:$0xff]
          %v2177 = vld [vmem:[#allocation5 + $0x10] sm:$0xff]
          %v2178 = vld [vmem:[#allocation5 + $0x18] sm:$0xff]
          %v2179 = vld [vmem:[#allocation5 + $0x20] sm:$0xff]
          %v2180 = vld [vmem:[#allocation5 + $0x28] sm:$0xff]
          %v2181 = vld [vmem:[#allocation5 + $0x30] sm:$0xff]
          %v2182 = vld [vmem:[#allocation5 + $0x38] sm:$0xff]
          %v2183 = vld [vmem:[#allocation5 + $0x40] sm:$0xff]
          %v2184 = vld [vmem:[#allocation5 + $0x48] sm:$0xff]
          %v2185 = vld [vmem:[#allocation5 + $0x50] sm:$0xff]
          %v2186 = vld [vmem:[#allocation5 + $0x58] sm:$0xff]
          %v2187 = vld [vmem:[#allocation5 + $0x60] sm:$0xff]
          %v2188 = vld [vmem:[#allocation5 + $0x68] sm:$0xff]
          %v2189 = vld [vmem:[#allocation5 + $0x70] sm:$0xff]
          %v2190 = vld [vmem:[#allocation5 + $0x78] sm:$0xff]
          %v2191 = vld [vmem:[%s1] sm:$0xf]
          %v2192 = vld [vmem:[%s1 + $0x4] sm:$0xf]
          %v2193 = vld [vmem:[%s1 + $0x8] sm:$0xf]
          %v2194 = vld [vmem:[%s1 + $0xc] sm:$0xf]
          %v2195 = vld [vmem:[%s1 + $0x10] sm:$0x3]
          %v2196 = vld [vmem:[%s2] sm:$0x1]
          %v2198 = vlaneseq
          %v2199 = vshrl.u32 %v2198, 7
          %v2200 = vsub.s32 0, %v2199
          %v2201 = vrot.slane %v2196, %v2200
          %v2208 = vunpack.c.l.b16 %v2191
          %v2209 = vunpack.c.l.b16 %v2192
          %v2210 = vunpack.c.l.b16 %v2193
          %v2211 = vunpack.c.l.b16 %v2194
          %v2212 = vunpack.c.l.b16 %v2195
          %v2213 = vpack.c.b16 %v2209, %v2208
          %v2214 = vpack.c.b16 %v2211, %v2210
          %v2215 = vpack.c.b16 %v2212, %v2212
          %vm2218 = vcmask 293888
          %v2220 = vsel %vm2218, %v2175, 0
          %v2223 = vsel %vm2218, %v2176, 0
          %v2226 = vsel %vm2218, %v2177, 0
          %v2229 = vsel %vm2218, %v2178, 0
          %v2232 = vsel %vm2218, %v2179, 0
          %v2235 = vsel %vm2218, %v2180, 0
          %v2238 = vsel %vm2218, %v2181, 0
          %v2241 = vsel %vm2218, %v2182, 0
          %v2244 = vsel %vm2218, %v2183, 0
          %v2247 = vsel %vm2218, %v2184, 0
          %v2250 = vsel %vm2218, %v2185, 0
          %v2253 = vsel %vm2218, %v2186, 0
          %v2256 = vsel %vm2218, %v2187, 0
          %v2259 = vsel %vm2218, %v2188, 0
          %v2262 = vsel %vm2218, %v2189, 0
          %v2265 = vsel %vm2218, %v2190, 0
          %vm2267 = vcmask 1041408
          %v2269 = vsel %vm2267, %v2215, 0
          %2271 = vmatprep.subr.bf16.mxu0 0
          %2272 = vmatpush1.bf16.msra.mxu0 %v2213
          %2273 = vmatprep.subr.bf16.mxu0 0
          %2274 = vmatpush1.bf16.msra.mxu0 %v2214
          %2275 = vmatprep.subr.bf16.mxu0 0
          %2276 = vmatpush1.bf16.msra.mxu0 %v2269
          %2277 = vmatprep.subr.bf16.mxu0 0
          %2278 = vmatpush1.bf16.msra.mxu0 0
          %2279 = vmatprep.subr.bf16.mxu0 0
          %2280 = vmatpush1.bf16.msra.mxu0 0
          %2281 = vmatprep.subr.bf16.mxu0 0
          %2282 = vmatpush1.bf16.msra.mxu0 0
          %2283 = vmatprep.subr.bf16.mxu0 0
          %2284 = vmatpush1.bf16.msra.mxu0 0
          %2285 = vmatprep.subr.bf16.mxu0 0
          %2286 = vmatpush1.bf16.msra.mxu0 0
          %2287 = vmatprep.subr.bf16.mxu0 0
          %2288 = vmatpush1.bf16.msra.mxu0 0
          %2289 = vmatprep.subr.bf16.mxu0 0
          %2290 = vmatpush1.bf16.msra.mxu0 0
          %2291 = vmatprep.subr.bf16.mxu0 0
          %2292 = vmatpush1.bf16.msra.mxu0 0
          %2293 = vmatprep.subr.bf16.mxu0 0
          %2294 = vmatpush1.bf16.msra.mxu0 0
          %2295 = vmatprep.subr.bf16.mxu0 0
          %2296 = vmatpush1.bf16.msra.mxu0 0
          %2297 = vmatprep.subr.bf16.mxu0 0
          %2298 = vmatpush1.bf16.msra.mxu0 0
          %2299 = vmatprep.subr.bf16.mxu0 0
          %2300 = vmatpush1.bf16.msra.mxu0 0
          %2301 = vmatprep.subr.bf16.mxu0 0
          %2302 = vmatpush1.bf16.msra.mxu0 0
          %2303 = vmatprep.mubr.bf16.mxu0 0
          %2304 = vmatmul.mubr.bf16.gmra.mrb[0].mxu0 %v2220
          %v2305 = vpop.f32.mrb[0].mxu0
          %v2306 = vadd.f32 %v2201, %v2305
          %v2307 = vpop.f32.mrb[0].mxu0
          %v2308 = vpop.f32.mrb[0].mxu0
          %v2309 = vadd.f32 %v2201, %v2308
          %v2310 = vpop.f32.mrb[0].mxu0
          %2311 = vmatprep.mubr.bf16.mxu0 0
          %2312 = vmatmul.mubr.bf16.gmra.mrb[0].mxu0 %v2223
          %v2313 = vpop.f32.mrb[0].mxu0
          %v2314 = vadd.f32 %v2201, %v2313
          %v2315 = vpop.f32.mrb[0].mxu0
          %v2316 = vpop.f32.mrb[0].mxu0
          %v2317 = vadd.f32 %v2201, %v2316
          %v2318 = vpop.f32.mrb[0].mxu0
          %2319 = vmatprep.mubr.bf16.mxu0 0
          %2320 = vmatmul.mubr.bf16.gmra.mrb[0].mxu0 %v2226
          %v2321 = vpop.f32.mrb[0].mxu0
          %v2322 = vadd.f32 %v2201, %v2321
          %v2323 = vpop.f32.mrb[0].mxu0
          %v2324 = vpop.f32.mrb[0].mxu0
          %v2325 = vadd.f32 %v2201, %v2324
          %v2326 = vpop.f32.mrb[0].mxu0
          %2327 = vmatprep.mubr.bf16.mxu0 0
          %2328 = vmatmul.mubr.bf16.gmra.mrb[0].mxu0 %v2229
          %v2329 = vpop.f32.mrb[0].mxu0
          %v2330 = vadd.f32 %v2201, %v2329
          %v2331 = vpop.f32.mrb[0].mxu0
          %v2332 = vpop.f32.mrb[0].mxu0
          %v2333 = vadd.f32 %v2201, %v2332
          %v2334 = vpop.f32.mrb[0].mxu0
          %2335 = vmatprep.mubr.bf16.mxu0 0
          %2336 = vmatmul.mubr.bf16.gmra.mrb[0].mxu0 %v2232
          %v2337 = vpop.f32.mrb[0].mxu0
          %v2338 = vadd.f32 %v2201, %v2337
          %v2339 = vpop.f32.mrb[0].mxu0
          %v2340 = vpop.f32.mrb[0].mxu0
          %v2341 = vadd.f32 %v2201, %v2340
          %v2342 = vpop.f32.mrb[0].mxu0
          %2343 = vmatprep.mubr.bf16.mxu0 0
          %2344 = vmatmul.mubr.bf16.gmra.mrb[0].mxu0 %v2235
          %v2345 = vpop.f32.mrb[0].mxu0
          %v2346 = vadd.f32 %v2201, %v2345
          %v2347 = vpop.f32.mrb[0].mxu0
          %v2348 = vpop.f32.mrb[0].mxu0
          %v2349 = vadd.f32 %v2201, %v2348
          %v2350 = vpop.f32.mrb[0].mxu0
          %2351 = vmatprep.mubr.bf16.mxu0 0
          %2352 = vmatmul.mubr.bf16.gmra.mrb[0].mxu0 %v2238
          %v2353 = vpop.f32.mrb[0].mxu0
          %v2354 = vadd.f32 %v2201, %v2353
          %v2355 = vpop.f32.mrb[0].mxu0
          %v2356 = vpop.f32.mrb[0].mxu0
          %v2357 = vadd.f32 %v2201, %v2356
          %v2358 = vpop.f32.mrb[0].mxu0
          %2359 = vmatprep.mubr.bf16.mxu0 0
          %2360 = vmatmul.mubr.bf16.gmra.mrb[0].mxu0 %v2241
          %v2361 = vpop.f32.mrb[0].mxu0
          %v2362 = vadd.f32 %v2201, %v2361
          %v2363 = vpop.f32.mrb[0].mxu0
          %v2364 = vpop.f32.mrb[0].mxu0
          %v2365 = vadd.f32 %v2201, %v2364
          %v2366 = vpop.f32.mrb[0].mxu0
          %2367 = vmatprep.mubr.bf16.mxu0 0
          %2368 = vmatmul.mubr.bf16.gmra.mrb[0].mxu0 %v2244
          %v2369 = vpop.f32.mrb[0].mxu0
          %v2370 = vadd.f32 %v2201, %v2369
          %v2371 = vpop.f32.mrb[0].mxu0
          %v2372 = vpop.f32.mrb[0].mxu0
          %v2373 = vadd.f32 %v2201, %v2372
          %v2374 = vpop.f32.mrb[0].mxu0
          %2375 = vmatprep.mubr.bf16.mxu0 0
          %2376 = vmatmul.mubr.bf16.gmra.mrb[0].mxu0 %v2247
          %v2377 = vpop.f32.mrb[0].mxu0
          %v2378 = vadd.f32 %v2201, %v2377
          %v2379 = vpop.f32.mrb[0].mxu0
          %v2380 = vpop.f32.mrb[0].mxu0
          %v2381 = vadd.f32 %v2201, %v2380
          %v2382 = vpop.f32.mrb[0].mxu0
          %2383 = vmatprep.mubr.bf16.mxu0 0
          %2384 = vmatmul.mubr.bf16.gmra.mrb[0].mxu0 %v2250
          %v2385 = vpop.f32.mrb[0].mxu0
          %v2386 = vadd.f32 %v2201, %v2385
          %v2387 = vpop.f32.mrb[0].mxu0
          %v2388 = vpop.f32.mrb[0].mxu0
          %v2389 = vadd.f32 %v2201, %v2388
          %v2390 = vpop.f32.mrb[0].mxu0
          %2391 = vmatprep.mubr.bf16.mxu0 0
          %2392 = vmatmul.mubr.bf16.gmra.mrb[0].mxu0 %v2253
          %v2393 = vpop.f32.mrb[0].mxu0
          %v2394 = vadd.f32 %v2201, %v2393
          %v2395 = vpop.f32.mrb[0].mxu0
          %v2396 = vpop.f32.mrb[0].mxu0
          %v2397 = vadd.f32 %v2201, %v2396
          %v2398 = vpop.f32.mrb[0].mxu0
          %2399 = vmatprep.mubr.bf16.mxu0 0
          %2400 = vmatmul.mubr.bf16.gmra.mrb[0].mxu0 %v2256
          %v2401 = vpop.f32.mrb[0].mxu0
          %v2402 = vadd.f32 %v2201, %v2401
          %v2403 = vpop.f32.mrb[0].mxu0
          %v2404 = vpop.f32.mrb[0].mxu0
          %v2405 = vadd.f32 %v2201, %v2404
          %v2406 = vpop.f32.mrb[0].mxu0
          %2407 = vmatprep.mubr.bf16.mxu0 0
          %2408 = vmatmul.mubr.bf16.gmra.mrb[0].mxu0 %v2259
          %v2409 = vpop.f32.mrb[0].mxu0
          %v2410 = vadd.f32 %v2201, %v2409
          %v2411 = vpop.f32.mrb[0].mxu0
          %v2412 = vpop.f32.mrb[0].mxu0
          %v2413 = vadd.f32 %v2201, %v2412
          %v2414 = vpop.f32.mrb[0].mxu0
          %2415 = vmatprep.mubr.bf16.mxu0 0
          %2416 = vmatmul.mubr.bf16.gmra.mrb[0].mxu0 %v2262
          %v2417 = vpop.f32.mrb[0].mxu0
          %v2418 = vadd.f32 %v2201, %v2417
          %v2419 = vpop.f32.mrb[0].mxu0
          %v2420 = vpop.f32.mrb[0].mxu0
          %v2421 = vadd.f32 %v2201, %v2420
          %v2422 = vpop.f32.mrb[0].mxu0
          %2423 = vmatprep.mubr.bf16.mxu0 0
          %2424 = vmatmul.mubr.bf16.gmra.mrb[0].mxu0 %v2265
          %v2425 = vpop.f32.mrb[0].mxu0
          %v2426 = vadd.f32 %v2201, %v2425
          %v2427 = vpop.f32.mrb[0].mxu0
          %v2428 = vpop.f32.mrb[0].mxu0
          %v2429 = vadd.f32 %v2201, %v2428
          %v2430 = vpop.f32.mrb[0].mxu0
          %2431 = vdwg.mxu0
          %v2432 = vmax.f32 %v2306, 0.0
          %v2433 = vmax.f32 %v2309, 0.0
          %v2434 = vmax.f32 %v2314, 0.0
          %v2435 = vmax.f32 %v2317, 0.0
          %v2436 = vmax.f32 %v2322, 0.0
          %v2437 = vmax.f32 %v2325, 0.0
          %v2438 = vmax.f32 %v2330, 0.0
          %v2439 = vmax.f32 %v2333, 0.0
          %v2440 = vmax.f32 %v2338, 0.0
          %v2441 = vmax.f32 %v2341, 0.0
          %v2442 = vmax.f32 %v2346, 0.0
          %v2443 = vmax.f32 %v2349, 0.0
          %v2444 = vmax.f32 %v2354, 0.0
          %v2445 = vmax.f32 %v2357, 0.0
          %v2446 = vmax.f32 %v2362, 0.0
          %v2447 = vmax.f32 %v2365, 0.0
          %v2448 = vmax.f32 %v2370, 0.0
          %v2449 = vmax.f32 %v2373, 0.0
          %v2450 = vmax.f32 %v2378, 0.0
          %v2451 = vmax.f32 %v2381, 0.0
          %v2452 = vmax.f32 %v2386, 0.0
          %v2453 = vmax.f32 %v2389, 0.0
          %v2454 = vmax.f32 %v2394, 0.0
          %v2455 = vmax.f32 %v2397, 0.0
          %v2456 = vmax.f32 %v2402, 0.0
          %v2457 = vmax.f32 %v2405, 0.0
          %v2458 = vmax.f32 %v2410, 0.0
          %v2459 = vmax.f32 %v2413, 0.0
          %v2460 = vmax.f32 %v2418, 0.0
          %v2461 = vmax.f32 %v2421, 0.0
          %v2462 = vmax.f32 %v2426, 0.0
          %v2463 = vmax.f32 %v2429, 0.0
          %2464 = vst.msk [vmem:[%s287 + $0x1] sm:$0xff] %vm278, %v2432
          %2465 = vst.msk [vmem:[%s287 + $0x9] sm:$0xff] %vm278, %v2433
          %2466 = vst.msk [vmem:[%s287 + $0x19] sm:$0xff] %vm278, %v2434
          %2467 = vst.msk [vmem:[%s287 + $0x21] sm:$0xff] %vm278, %v2435
          %2468 = vst.msk [vmem:[%s287 + $0x31] sm:$0xff] %vm278, %v2436
          %2469 = vst.msk [vmem:[%s287 + $0x39] sm:$0xff] %vm278, %v2437
          %2470 = vst.msk [vmem:[%s287 + $0x49] sm:$0xff] %vm278, %v2438
          %2471 = vst.msk [vmem:[%s287 + $0x51] sm:$0xff] %vm278, %v2439
          %2472 = vst.msk [vmem:[%s287 + $0x61] sm:$0xff] %vm278, %v2440
          %2473 = vst.msk [vmem:[%s287 + $0x69] sm:$0xff] %vm278, %v2441
          %2474 = vst.msk [vmem:[%s287 + $0x79] sm:$0xff] %vm278, %v2442
          %2475 = vst.msk [vmem:[%s287 + $0x81] sm:$0xff] %vm278, %v2443
          %2476 = vst.msk [vmem:[%s287 + $0x91] sm:$0xff] %vm278, %v2444
          %2477 = vst.msk [vmem:[%s287 + $0x99] sm:$0xff] %vm278, %v2445
          %2478 = vst.msk [vmem:[%s287 + $0xa9] sm:$0xff] %vm278, %v2446
          %2479 = vst.msk [vmem:[%s287 + $0xb1] sm:$0xff] %vm278, %v2447
          %2480 = vst.msk [vmem:[%s287 + $0xc1] sm:$0xff] %vm278, %v2448
          %2481 = vst.msk [vmem:[%s287 + $0xc9] sm:$0xff] %vm278, %v2449
          %2482 = vst.msk [vmem:[%s287 + $0xd9] sm:$0xff] %vm278, %v2450
          %2483 = vst.msk [vmem:[%s287 + $0xe1] sm:$0xff] %vm278, %v2451
          %2484 = vst.msk [vmem:[%s287 + $0xf1] sm:$0xff] %vm278, %v2452
          %2485 = vst.msk [vmem:[%s287 + $0xf9] sm:$0xff] %vm278, %v2453
          %2486 = vst.msk [vmem:[%s287 + $0x109] sm:$0xff] %vm278, %v2454
          %2487 = vst.msk [vmem:[%s287 + $0x111] sm:$0xff] %vm278, %v2455
          %2488 = vst.msk [vmem:[%s287 + $0x121] sm:$0xff] %vm278, %v2456
          %2489 = vst.msk [vmem:[%s287 + $0x129] sm:$0xff] %vm278, %v2457
          %2490 = vst.msk [vmem:[%s287 + $0x139] sm:$0xff] %vm278, %v2458
          %2491 = vst.msk [vmem:[%s287 + $0x141] sm:$0xff] %vm278, %v2459
          %2492 = vst.msk [vmem:[%s287 + $0x151] sm:$0xff] %vm278, %v2460
          %2493 = vst.msk [vmem:[%s287 + $0x159] sm:$0xff] %vm278, %v2461
          %2494 = vst.msk [vmem:[%s287 + $0x169] sm:$0xff] %vm278, %v2462
          %2495 = vst.msk [vmem:[%s287 + $0x171] sm:$0xff] %vm278, %v2463
        $region50: #{tpu_custom_call.1} parent=47
          #allocation6 [shape = 'u8[16384]{0}', space=vmem, size = 0x4000, scoped, tag = 'scoped memory for tpu_custom_call.1']
          %v2496 = vld [vmem:[#allocation2] ss:$2 sm:$0xff]
          %s2497 = scalar_lea.vmem [#allocation2], 24
          %v2498 = vld [vmem:[%s2497] ss:$2 sm:$0xff]
          %s2499 = scalar_lea.vmem [#allocation2], 48
          %v2500 = vld [vmem:[%s2499] ss:$2 sm:$0xff]
          %s2501 = scalar_lea.vmem [#allocation2], 72
          %v2502 = vld [vmem:[%s2501] ss:$2 sm:$0xff]
          %s2503 = scalar_lea.vmem [#allocation2], 96
          %v2504 = vld [vmem:[%s2503] ss:$2 sm:$0xff]
          %s2505 = scalar_lea.vmem [#allocation2], 120
          %v2506 = vld [vmem:[%s2505] ss:$2 sm:$0xff]
          %s2507 = scalar_lea.vmem [#allocation2], 144
          %v2508 = vld [vmem:[%s2507] ss:$2 sm:$0xff]
          %s2509 = scalar_lea.vmem [#allocation2], 168
          %v2510 = vld [vmem:[%s2509] ss:$2 sm:$0xff]
          %s2511 = scalar_lea.vmem [#allocation2], 192
          %v2512 = vld [vmem:[%s2511] ss:$2 sm:$0xff]
          %s2513 = scalar_lea.vmem [#allocation2], 216
          %v2514 = vld [vmem:[%s2513] ss:$2 sm:$0xff]
          %s2515 = scalar_lea.vmem [#allocation2], 240
          %v2516 = vld [vmem:[%s2515] ss:$2 sm:$0xff]
          %s2517 = scalar_lea.vmem [#allocation2], 264
          %v2518 = vld [vmem:[%s2517] ss:$2 sm:$0xff]
          %s2519 = scalar_lea.vmem [#allocation2], 288
          %v2520 = vld [vmem:[%s2519] ss:$2 sm:$0xff]
          %s2521 = scalar_lea.vmem [#allocation2], 312
          %v2522 = vld [vmem:[%s2521] ss:$2 sm:$0xff]
          %s2523 = scalar_lea.vmem [#allocation2], 336
          %v2524 = vld [vmem:[%s2523] ss:$2 sm:$0xff]
          %s2525 = scalar_lea.vmem [#allocation2], 360
          %v2526 = vld [vmem:[%s2525] ss:$2 sm:$0xff]
          %s2527 = scalar_lea.vmem [#allocation2], 384
          %v2528 = vld [vmem:[%s2527] ss:$2 sm:$0xff]
          %s2529 = scalar_lea.vmem [#allocation2], 408
          %v2530 = vld [vmem:[%s2529] ss:$2 sm:$0xff]
          %s2531 = scalar_lea.vmem [#allocation2], 1
          %v2532 = vld [vmem:[%s2531] ss:$2 sm:$0xff]
          %s2533 = scalar_lea.vmem [#allocation2], 25
          %v2534 = vld [vmem:[%s2533] ss:$2 sm:$0xff]
          %s2535 = scalar_lea.vmem [#allocation2], 49
          %v2536 = vld [vmem:[%s2535] ss:$2 sm:$0xff]
          %s2537 = scalar_lea.vmem [#allocation2], 73
          %v2538 = vld [vmem:[%s2537] ss:$2 sm:$0xff]
          %s2539 = scalar_lea.vmem [#allocation2], 97
          %v2540 = vld [vmem:[%s2539] ss:$2 sm:$0xff]
          %s2541 = scalar_lea.vmem [#allocation2], 121
          %v2542 = vld [vmem:[%s2541] ss:$2 sm:$0xff]
          %s2543 = scalar_lea.vmem [#allocation2], 145
          %v2544 = vld [vmem:[%s2543] ss:$2 sm:$0xff]
          %s2545 = scalar_lea.vmem [#allocation2], 169
          %v2546 = vld [vmem:[%s2545] ss:$2 sm:$0xff]
          %s2547 = scalar_lea.vmem [#allocation2], 193
          %v2548 = vld [vmem:[%s2547] ss:$2 sm:$0xff]
          %s2549 = scalar_lea.vmem [#allocation2], 217
          %v2550 = vld [vmem:[%s2549] ss:$2 sm:$0xff]
          %s2551 = scalar_lea.vmem [#allocation2], 241
          %v2552 = vld [vmem:[%s2551] ss:$2 sm:$0xff]
          %s2553 = scalar_lea.vmem [#allocation2], 265
          %v2554 = vld [vmem:[%s2553] ss:$2 sm:$0xff]
          %s2555 = scalar_lea.vmem [#allocation2], 289
          %v2556 = vld [vmem:[%s2555] ss:$2 sm:$0xff]
          %s2557 = scalar_lea.vmem [#allocation2], 313
          %v2558 = vld [vmem:[%s2557] ss:$2 sm:$0xff]
          %s2559 = scalar_lea.vmem [#allocation2], 337
          %v2560 = vld [vmem:[%s2559] ss:$2 sm:$0xff]
          %s2561 = scalar_lea.vmem [#allocation2], 361
          %v2562 = vld [vmem:[%s2561] ss:$2 sm:$0xff]
          %s2563 = scalar_lea.vmem [#allocation2], 385
          %v2564 = vld [vmem:[%s2563] ss:$2 sm:$0xff]
          %s2565 = scalar_lea.vmem [#allocation2], 409
          %v2566 = vld [vmem:[%s2565] ss:$2 sm:$0xff]
          %v2567 = vadd.f32 %v2496, %v2532
          %v2568 = vadd.f32 %v2498, %v2534
          %v2569 = vadd.f32 %v2500, %v2536
          %v2570 = vadd.f32 %v2502, %v2538
          %v2571 = vadd.f32 %v2504, %v2540
          %v2572 = vadd.f32 %v2506, %v2542
          %v2573 = vadd.f32 %v2508, %v2544
          %v2574 = vadd.f32 %v2510, %v2546
          %v2575 = vadd.f32 %v2512, %v2548
          %v2576 = vadd.f32 %v2514, %v2550
          %v2577 = vadd.f32 %v2516, %v2552
          %v2578 = vadd.f32 %v2518, %v2554
          %v2579 = vadd.f32 %v2520, %v2556
          %v2580 = vadd.f32 %v2522, %v2558
          %v2581 = vadd.f32 %v2524, %v2560
          %v2582 = vadd.f32 %v2526, %v2562
          %v2583 = vadd.f32 %v2528, %v2564
          %v2584 = vadd.f32 %v2530, %v2566
          %v2585 = vadd.f32 %v2567, %v2568
          %v2586 = vadd.f32 %v2569, %v2570
          %v2587 = vadd.f32 %v2571, %v2572
          %v2588 = vadd.f32 %v2573, %v2574
          %v2589 = vadd.f32 %v2575, %v2576
          %v2590 = vadd.f32 %v2577, %v2578
          %v2591 = vadd.f32 %v2579, %v2580
          %v2592 = vadd.f32 %v2581, %v2582
          %v2593 = vadd.f32 %v2583, %v2584
          %v2594 = vadd.f32 %v2568, %v2569
          %v2595 = vadd.f32 %v2570, %v2571
          %v2596 = vadd.f32 %v2572, %v2573
          %v2597 = vadd.f32 %v2574, %v2575
          %v2598 = vadd.f32 %v2576, %v2577
          %v2599 = vadd.f32 %v2578, %v2579
          %v2600 = vadd.f32 %v2580, %v2581
          %v2601 = vadd.f32 %v2582, %v2583
          %v2602 = vpack.c.bf16 %v2585, %v2585
          %v2603 = vpack.c.bf16 %v2586, %v2586
          %v2604 = vpack.c.bf16 %v2587, %v2587
          %v2605 = vpack.c.bf16 %v2588, %v2588
          %v2606 = vpack.c.bf16 %v2589, %v2589
          %v2607 = vpack.c.bf16 %v2590, %v2590
          %v2608 = vpack.c.bf16 %v2591, %v2591
          %v2609 = vpack.c.bf16 %v2592, %v2592
          %vm2610 = vcmask 60416
          %2611 = vst.msk [vmem:[#allocation6] sm:$0xf] %vm2610, %v2602
          %2612 = vst.msk [vmem:[#allocation6 + $0x4] sm:$0xf] %vm2610, %v2603
          %2613 = vst.msk [vmem:[#allocation6 + $0x8] sm:$0xf] %vm2610, %v2604
          %2614 = vst.msk [vmem:[#allocation6 + $0xc] sm:$0xf] %vm2610, %v2605
          %2615 = vst.msk [vmem:[#allocation6 + $0x10] sm:$0xf] %vm2610, %v2606
          %2616 = vst.msk [vmem:[#allocation6 + $0x14] sm:$0xf] %vm2610, %v2607
          %2617 = vst.msk [vmem:[#allocation6 + $0x18] sm:$0xf] %vm2610, %v2608
          %2618 = vst.msk [vmem:[#allocation6 + $0x1c] sm:$0xf] %vm2610, %v2609
          %v2619 = vpack.c.bf16 %v2594, %v2594
          %v2620 = vpack.c.bf16 %v2595, %v2595
          %v2621 = vpack.c.bf16 %v2596, %v2596
          %v2622 = vpack.c.bf16 %v2597, %v2597
          %v2623 = vpack.c.bf16 %v2598, %v2598
          %v2624 = vpack.c.bf16 %v2599, %v2599
          %v2625 = vpack.c.bf16 %v2600, %v2600
          %v2626 = vpack.c.bf16 %v2601, %v2601
          %v2635 = vunpack.c.l.b16 %v2619
          %v2636 = vunpack.c.l.b16 %v2620
          %v2637 = vunpack.c.l.b16 %v2621
          %v2638 = vunpack.c.l.b16 %v2622
          %v2639 = vunpack.c.l.b16 %v2623
          %v2640 = vunpack.c.l.b16 %v2624
          %v2641 = vunpack.c.l.b16 %v2625
          %v2642 = vunpack.c.l.b16 %v2626
          %v2643 = vpack.c.b16 %v2635, %v2635
          %v2644 = vpack.c.b16 %v2636, %v2636
          %v2645 = vpack.c.b16 %v2637, %v2637
          %v2646 = vpack.c.b16 %v2638, %v2638
          %v2647 = vpack.c.b16 %v2639, %v2639
          %v2648 = vpack.c.b16 %v2640, %v2640
          %v2649 = vpack.c.b16 %v2641, %v2641
          %v2650 = vpack.c.b16 %v2642, %v2642
          %2651 = vrot.lane.b32.xlu0 %v2643, 24
          %v2652 = vpop.permute.xlu0 %2651
          %2653 = vrot.lane.b32.xlu0 %v2644, 24
          %v2654 = vpop.permute.xlu0 %2653
          %2655 = vrot.lane.b32.xlu0 %v2645, 24
          %v2656 = vpop.permute.xlu0 %2655
          %2657 = vrot.lane.b32.xlu0 %v2646, 24
          %v2658 = vpop.permute.xlu0 %2657
          %2659 = vrot.lane.b32.xlu0 %v2647, 24
          %v2660 = vpop.permute.xlu0 %2659
          %2661 = vrot.lane.b32.xlu0 %v2648, 24
          %v2662 = vpop.permute.xlu0 %2661
          %2663 = vrot.lane.b32.xlu0 %v2649, 24
          %v2664 = vpop.permute.xlu0 %2663
          %2665 = vrot.lane.b32.xlu0 %v2650, 24
          %v2666 = vpop.permute.xlu0 %2665
          %vm2675 = vcmask 257216
          %2676 = vst.msk [vmem:[#allocation6] sm:$0xf] %vm2675, %v2652
          %2677 = vst.msk [vmem:[#allocation6 + $0x4] sm:$0xf] %vm2675, %v2654
          %2678 = vst.msk [vmem:[#allocation6 + $0x8] sm:$0xf] %vm2675, %v2656
          %2679 = vst.msk [vmem:[#allocation6 + $0xc] sm:$0xf] %vm2675, %v2658
          %2680 = vst.msk [vmem:[#allocation6 + $0x10] sm:$0xf] %vm2675, %v2660
          %2681 = vst.msk [vmem:[#allocation6 + $0x14] sm:$0xf] %vm2675, %v2662
          %2682 = vst.msk [vmem:[#allocation6 + $0x18] sm:$0xf] %vm2675, %v2664
          %2683 = vst.msk [vmem:[#allocation6 + $0x1c] sm:$0xf] %vm2675, %v2666
          %v2684 = vpack.c.bf16 %v2593, %v2593
          %v2693 = vunpack.c.l.b16 %v2603
          %v2694 = vunpack.c.l.b16 %v2604
          %v2695 = vunpack.c.l.b16 %v2605
          %v2696 = vunpack.c.l.b16 %v2606
          %v2697 = vunpack.c.l.b16 %v2607
          %v2698 = vunpack.c.l.b16 %v2608
          %v2699 = vunpack.c.l.b16 %v2609
          %v2700 = vunpack.c.l.b16 %v2684
          %v2701 = vpack.c.b16 %v2693, %v2693
          %v2702 = vpack.c.b16 %v2694, %v2694
          %v2703 = vpack.c.b16 %v2695, %v2695
          %v2704 = vpack.c.b16 %v2696, %v2696
          %v2705 = vpack.c.b16 %v2697, %v2697
          %v2706 = vpack.c.b16 %v2698, %v2698
          %v2707 = vpack.c.b16 %v2699, %v2699
          %v2708 = vpack.c.b16 %v2700, %v2700
          %2709 = vrot.lane.b32.xlu0 %v2701, 48
          %v2710 = vpop.permute.xlu0 %2709
          %2711 = vrot.lane.b32.xlu0 %v2702, 48
          %v2712 = vpop.permute.xlu0 %2711
          %2713 = vrot.lane.b32.xlu0 %v2703, 48
          %v2714 = vpop.permute.xlu0 %2713
          %2715 = vrot.lane.b32.xlu0 %v2704, 48
          %v2716 = vpop.permute.xlu0 %2715
          %2717 = vrot.lane.b32.xlu0 %v2705, 48
          %v2718 = vpop.permute.xlu0 %2717
          %2719 = vrot.lane.b32.xlu0 %v2706, 48
          %v2720 = vpop.permute.xlu0 %2719
          %2721 = vrot.lane.b32.xlu0 %v2707, 48
          %v2722 = vpop.permute.xlu0 %2721
          %2723 = vrot.lane.b32.xlu0 %v2708, 48
          %v2724 = vpop.permute.xlu0 %2723
          %vm2733 = vcmask 454016
          %2734 = vst.msk [vmem:[#allocation6] sm:$0xf] %vm2733, %v2710
          %2735 = vst.msk [vmem:[#allocation6 + $0x4] sm:$0xf] %vm2733, %v2712
          %2736 = vst.msk [vmem:[#allocation6 + $0x8] sm:$0xf] %vm2733, %v2714
          %2737 = vst.msk [vmem:[#allocation6 + $0xc] sm:$0xf] %vm2733, %v2716
          %2738 = vst.msk [vmem:[#allocation6 + $0x10] sm:$0xf] %vm2733, %v2718
          %2739 = vst.msk [vmem:[#allocation6 + $0x14] sm:$0xf] %vm2733, %v2720
          %2740 = vst.msk [vmem:[#allocation6 + $0x18] sm:$0xf] %vm2733, %v2722
          %2741 = vst.msk [vmem:[#allocation6 + $0x1c] sm:$0xf] %vm2733, %v2724
          %v2742 = vld [vmem:[%s2531] ss:$2 sm:$0xff]
          %v2743 = vld [vmem:[%s2533] ss:$2 sm:$0xff]
          %v2744 = vld [vmem:[%s2535] ss:$2 sm:$0xff]
          %v2745 = vld [vmem:[%s2537] ss:$2 sm:$0xff]
          %v2746 = vld [vmem:[%s2539] ss:$2 sm:$0xff]
          %v2747 = vld [vmem:[%s2541] ss:$2 sm:$0xff]
          %v2748 = vld [vmem:[%s2543] ss:$2 sm:$0xff]
          %v2749 = vld [vmem:[%s2545] ss:$2 sm:$0xff]
          %v2750 = vld [vmem:[%s2547] ss:$2 sm:$0xff]
          %v2751 = vld [vmem:[%s2549] ss:$2 sm:$0xff]
          %v2752 = vld [vmem:[%s2551] ss:$2 sm:$0xff]
          %v2753 = vld [vmem:[%s2553] ss:$2 sm:$0xff]
          %v2754 = vld [vmem:[%s2555] ss:$2 sm:$0xff]
          %v2755 = vld [vmem:[%s2557] ss:$2 sm:$0xff]
          %v2756 = vld [vmem:[%s2559] ss:$2 sm:$0xff]
          %v2757 = vld [vmem:[%s2561] ss:$2 sm:$0xff]
          %v2758 = vld [vmem:[%s2563] ss:$2 sm:$0xff]
          %v2759 = vld [vmem:[%s2565] ss:$2 sm:$0xff]
          %s2760 = scalar_lea.vmem [#allocation2], 2
          %v2761 = vld [vmem:[%s2760] ss:$2 sm:$0xff]
          %s2762 = scalar_lea.vmem [#allocation2], 26
          %v2763 = vld [vmem:[%s2762] ss:$2 sm:$0xff]
          %s2764 = scalar_lea.vmem [#allocation2], 50
          %v2765 = vld [vmem:[%s2764] ss:$2 sm:$0xff]
          %s2766 = scalar_lea.vmem [#allocation2], 74
          %v2767 = vld [vmem:[%s2766] ss:$2 sm:$0xff]
          %s2768 = scalar_lea.vmem [#allocation2], 98
          %v2769 = vld [vmem:[%s2768] ss:$2 sm:$0xff]
          %s2770 = scalar_lea.vmem [#allocation2], 122
          %v2771 = vld [vmem:[%s2770] ss:$2 sm:$0xff]
          %s2772 = scalar_lea.vmem [#allocation2], 146
          %v2773 = vld [vmem:[%s2772] ss:$2 sm:$0xff]
          %s2774 = scalar_lea.vmem [#allocation2], 170
          %v2775 = vld [vmem:[%s2774] ss:$2 sm:$0xff]
          %s2776 = scalar_lea.vmem [#allocation2], 194
          %v2777 = vld [vmem:[%s2776] ss:$2 sm:$0xff]
          %s2778 = scalar_lea.vmem [#allocation2], 218
          %v2779 = vld [vmem:[%s2778] ss:$2 sm:$0xff]
          %s2780 = scalar_lea.vmem [#allocation2], 242
          %v2781 = vld [vmem:[%s2780] ss:$2 sm:$0xff]
          %s2782 = scalar_lea.vmem [#allocation2], 266
          %v2783 = vld [vmem:[%s2782] ss:$2 sm:$0xff]
          %s2784 = scalar_lea.vmem [#allocation2], 290
          %v2785 = vld [vmem:[%s2784] ss:$2 sm:$0xff]
          %s2786 = scalar_lea.vmem [#allocation2], 314
          %v2787 = vld [vmem:[%s2786] ss:$2 sm:$0xff]
          %s2788 = scalar_lea.vmem [#allocation2], 338
          %v2789 = vld [vmem:[%s2788] ss:$2 sm:$0xff]
          %s2790 = scalar_lea.vmem [#allocation2], 362
          %v2791 = vld [vmem:[%s2790] ss:$2 sm:$0xff]
          %s2792 = scalar_lea.vmem [#allocation2], 386
          %v2793 = vld [vmem:[%s2792] ss:$2 sm:$0xff]
          %s2794 = scalar_lea.vmem [#allocation2], 410
          %v2795 = vld [vmem:[%s2794] ss:$2 sm:$0xff]
          %v2796 = vadd.f32 %v2742, %v2761
          %v2797 = vadd.f32 %v2743, %v2763
          %v2798 = vadd.f32 %v2744, %v2765
          %v2799 = vadd.f32 %v2745, %v2767
          %v2800 = vadd.f32 %v2746, %v2769
          %v2801 = vadd.f32 %v2747, %v2771
          %v2802 = vadd.f32 %v2748, %v2773
          %v2803 = vadd.f32 %v2749, %v2775
          %v2804 = vadd.f32 %v2750, %v2777
          %v2805 = vadd.f32 %v2751, %v2779
          %v2806 = vadd.f32 %v2752, %v2781
          %v2807 = vadd.f32 %v2753, %v2783
          %v2808 = vadd.f32 %v2754, %v2785
          %v2809 = vadd.f32 %v2755, %v2787
          %v2810 = vadd.f32 %v2756, %v2789
          %v2811 = vadd.f32 %v2757, %v2791
          %v2812 = vadd.f32 %v2758, %v2793
          %v2813 = vadd.f32 %v2759, %v2795
          %v2814 = vadd.f32 %v2796, %v2797
          %v2815 = vadd.f32 %v2798, %v2799
          %v2816 = vadd.f32 %v2800, %v2801
          %v2817 = vadd.f32 %v2802, %v2803
          %v2818 = vadd.f32 %v2804, %v2805
          %v2819 = vadd.f32 %v2806, %v2807
          %v2820 = vadd.f32 %v2808, %v2809
          %v2821 = vadd.f32 %v2810, %v2811
          %v2822 = vadd.f32 %v2812, %v2813
          %v2823 = vadd.f32 %v2797, %v2798
          %v2824 = vadd.f32 %v2799, %v2800
          %v2825 = vadd.f32 %v2801, %v2802
          %v2826 = vadd.f32 %v2803, %v2804
          %v2827 = vadd.f32 %v2805, %v2806
          %v2828 = vadd.f32 %v2807, %v2808
          %v2829 = vadd.f32 %v2809, %v2810
          %v2830 = vadd.f32 %v2811, %v2812
          %v2831 = vpack.c.bf16 %v2814, %v2814
          %v2832 = vpack.c.bf16 %v2815, %v2815
          %v2833 = vpack.c.bf16 %v2816, %v2816
          %v2834 = vpack.c.bf16 %v2817, %v2817
          %v2835 = vpack.c.bf16 %v2818, %v2818
          %v2836 = vpack.c.bf16 %v2819, %v2819
          %v2837 = vpack.c.bf16 %v2820, %v2820
          %v2838 = vpack.c.bf16 %v2821, %v2821
          %v2847 = vunpack.c.l.b16 %v2831
          %v2848 = vunpack.c.l.b16 %v2832
          %v2849 = vunpack.c.l.b16 %v2833
          %v2850 = vunpack.c.l.b16 %v2834
          %v2851 = vunpack.c.l.b16 %v2835
          %v2852 = vunpack.c.l.b16 %v2836
          %v2853 = vunpack.c.l.b16 %v2837
          %v2854 = vunpack.c.l.b16 %v2838
          %v2855 = vpack.c.b16 %v2847, %v2847
          %v2856 = vpack.c.b16 %v2848, %v2848
          %v2857 = vpack.c.b16 %v2849, %v2849
          %v2858 = vpack.c.b16 %v2850, %v2850
          %v2859 = vpack.c.b16 %v2851, %v2851
          %v2860 = vpack.c.b16 %v2852, %v2852
          %v2861 = vpack.c.b16 %v2853, %v2853
          %v2862 = vpack.c.b16 %v2854, %v2854
          %2863 = vrot.lane.b32.xlu0 %v2855, 8
          %v2864 = vpop.permute.xlu0 %2863
          %2865 = vrot.lane.b32.xlu0 %v2856, 8
          %v2866 = vpop.permute.xlu0 %2865
          %2867 = vrot.lane.b32.xlu0 %v2857, 8
          %v2868 = vpop.permute.xlu0 %2867
          %2869 = vrot.lane.b32.xlu0 %v2858, 8
          %v2870 = vpop.permute.xlu0 %2869
          %2871 = vrot.lane.b32.xlu0 %v2859, 8
          %v2872 = vpop.permute.xlu0 %2871
          %2873 = vrot.lane.b32.xlu0 %v2860, 8
          %v2874 = vpop.permute.xlu0 %2873
          %2875 = vrot.lane.b32.xlu0 %v2861, 8
          %v2876 = vpop.permute.xlu0 %2875
          %2877 = vrot.lane.b32.xlu0 %v2862, 8
          %v2878 = vpop.permute.xlu0 %2877
          %vm2887 = vcmask 126016
          %2888 = vst.msk [vmem:[#allocation6] sm:$0xf] %vm2887, %v2864
          %2889 = vst.msk [vmem:[#allocation6 + $0x4] sm:$0xf] %vm2887, %v2866
          %2890 = vst.msk [vmem:[#allocation6 + $0x8] sm:$0xf] %vm2887, %v2868
          %2891 = vst.msk [vmem:[#allocation6 + $0xc] sm:$0xf] %vm2887, %v2870
          %2892 = vst.msk [vmem:[#allocation6 + $0x10] sm:$0xf] %vm2887, %v2872
          %2893 = vst.msk [vmem:[#allocation6 + $0x14] sm:$0xf] %vm2887, %v2874
          %2894 = vst.msk [vmem:[#allocation6 + $0x18] sm:$0xf] %vm2887, %v2876
          %2895 = vst.msk [vmem:[#allocation6 + $0x1c] sm:$0xf] %vm2887, %v2878
          %v2896 = vpack.c.bf16 %v2823, %v2823
          %v2897 = vpack.c.bf16 %v2824, %v2824
          %v2898 = vpack.c.bf16 %v2825, %v2825
          %v2899 = vpack.c.bf16 %v2826, %v2826
          %v2900 = vpack.c.bf16 %v2827, %v2827
          %v2901 = vpack.c.bf16 %v2828, %v2828
          %v2902 = vpack.c.bf16 %v2829, %v2829
          %v2903 = vpack.c.bf16 %v2830, %v2830
          %v2912 = vunpack.c.l.b16 %v2896
          %v2913 = vunpack.c.l.b16 %v2897
          %v2914 = vunpack.c.l.b16 %v2898
          %v2915 = vunpack.c.l.b16 %v2899
          %v2916 = vunpack.c.l.b16 %v2900
          %v2917 = vunpack.c.l.b16 %v2901
          %v2918 = vunpack.c.l.b16 %v2902
          %v2919 = vunpack.c.l.b16 %v2903
          %v2920 = vpack.c.b16 %v2912, %v2912
          %v2921 = vpack.c.b16 %v2913, %v2913
          %v2922 = vpack.c.b16 %v2914, %v2914
          %v2923 = vpack.c.b16 %v2915, %v2915
          %v2924 = vpack.c.b16 %v2916, %v2916
          %v2925 = vpack.c.b16 %v2917, %v2917
          %v2926 = vpack.c.b16 %v2918, %v2918
          %v2927 = vpack.c.b16 %v2919, %v2919
          %2928 = vrot.lane.b32.xlu0 %v2920, 32
          %v2929 = vpop.permute.xlu0 %2928
          %2930 = vrot.lane.b32.xlu0 %v2921, 32
          %v2931 = vpop.permute.xlu0 %2930
          %2932 = vrot.lane.b32.xlu0 %v2922, 32
          %v2933 = vpop.permute.xlu0 %2932
          %2934 = vrot.lane.b32.xlu0 %v2923, 32
          %v2935 = vpop.permute.xlu0 %2934
          %2936 = vrot.lane.b32.xlu0 %v2924, 32
          %v2937 = vpop.permute.xlu0 %2936
          %2938 = vrot.lane.b32.xlu0 %v2925, 32
          %v2939 = vpop.permute.xlu0 %2938
          %2940 = vrot.lane.b32.xlu0 %v2926, 32
          %v2941 = vpop.permute.xlu0 %2940
          %2942 = vrot.lane.b32.xlu0 %v2927, 32
          %v2943 = vpop.permute.xlu0 %2942
          %vm2952 = vcmask 322816
          %2953 = vst.msk [vmem:[#allocation6] sm:$0xf] %vm2952, %v2929
          %2954 = vst.msk [vmem:[#allocation6 + $0x4] sm:$0xf] %vm2952, %v2931
          %2955 = vst.msk [vmem:[#allocation6 + $0x8] sm:$0xf] %vm2952, %v2933
          %2956 = vst.msk [vmem:[#allocation6 + $0xc] sm:$0xf] %vm2952, %v2935
          %2957 = vst.msk [vmem:[#allocation6 + $0x10] sm:$0xf] %vm2952, %v2937
          %2958 = vst.msk [vmem:[#allocation6 + $0x14] sm:$0xf] %vm2952, %v2939
          %2959 = vst.msk [vmem:[#allocation6 + $0x18] sm:$0xf] %vm2952, %v2941
          %2960 = vst.msk [vmem:[#allocation6 + $0x1c] sm:$0xf] %vm2952, %v2943
          %v2961 = vpack.c.bf16 %v2822, %v2822
          %v2963 = vunpack.c.l.b16 %v2961
          %v2964 = vpack.c.b16 %v2963, %v2963
          %2965 = vrot.lane.b32.xlu0 %v2856, 56
          %v2966 = vpop.permute.xlu0 %2965
          %2967 = vrot.lane.b32.xlu0 %v2857, 56
          %v2968 = vpop.permute.xlu0 %2967
          %2969 = vrot.lane.b32.xlu0 %v2858, 56
          %v2970 = vpop.permute.xlu0 %2969
          %2971 = vrot.lane.b32.xlu0 %v2859, 56
          %v2972 = vpop.permute.xlu0 %2971
          %2973 = vrot.lane.b32.xlu0 %v2860, 56
          %v2974 = vpop.permute.xlu0 %2973
          %2975 = vrot.lane.b32.xlu0 %v2861, 56
          %v2976 = vpop.permute.xlu0 %2975
          %2977 = vrot.lane.b32.xlu0 %v2862, 56
          %v2978 = vpop.permute.xlu0 %2977
          %2979 = vrot.lane.b32.xlu0 %v2964, 56
          %v2980 = vpop.permute.xlu0 %2979
          %vm2989 = vcmask 519616
          %2990 = vst.msk [vmem:[#allocation6] sm:$0xf] %vm2989, %v2966
          %2991 = vst.msk [vmem:[#allocation6 + $0x4] sm:$0xf] %vm2989, %v2968
          %2992 = vst.msk [vmem:[#allocation6 + $0x8] sm:$0xf] %vm2989, %v2970
          %2993 = vst.msk [vmem:[#allocation6 + $0xc] sm:$0xf] %vm2989, %v2972
          %2994 = vst.msk [vmem:[#allocation6 + $0x10] sm:$0xf] %vm2989, %v2974
          %2995 = vst.msk [vmem:[#allocation6 + $0x14] sm:$0xf] %vm2989, %v2976
          %2996 = vst.msk [vmem:[#allocation6 + $0x18] sm:$0xf] %vm2989, %v2978
          %2997 = vst.msk [vmem:[#allocation6 + $0x1c] sm:$0xf] %vm2989, %v2980
          %v2998 = vld [vmem:[%s2760] ss:$2 sm:$0xff]
          %v2999 = vld [vmem:[%s2762] ss:$2 sm:$0xff]
          %v3000 = vld [vmem:[%s2764] ss:$2 sm:$0xff]
          %v3001 = vld [vmem:[%s2766] ss:$2 sm:$0xff]
          %v3002 = vld [vmem:[%s2768] ss:$2 sm:$0xff]
          %v3003 = vld [vmem:[%s2770] ss:$2 sm:$0xff]
          %v3004 = vld [vmem:[%s2772] ss:$2 sm:$0xff]
          %v3005 = vld [vmem:[%s2774] ss:$2 sm:$0xff]
          %v3006 = vld [vmem:[%s2776] ss:$2 sm:$0xff]
          %v3007 = vld [vmem:[%s2778] ss:$2 sm:$0xff]
          %v3008 = vld [vmem:[%s2780] ss:$2 sm:$0xff]
          %v3009 = vld [vmem:[%s2782] ss:$2 sm:$0xff]
          %v3010 = vld [vmem:[%s2784] ss:$2 sm:$0xff]
          %v3011 = vld [vmem:[%s2786] ss:$2 sm:$0xff]
          %v3012 = vld [vmem:[%s2788] ss:$2 sm:$0xff]
          %v3013 = vld [vmem:[%s2790] ss:$2 sm:$0xff]
          %v3014 = vld [vmem:[%s2792] ss:$2 sm:$0xff]
          %v3015 = vld [vmem:[%s2794] ss:$2 sm:$0xff]
          %s3016 = scalar_lea.vmem [#allocation2], 3
          %v3017 = vld [vmem:[%s3016] ss:$2 sm:$0xff]
          %s3018 = scalar_lea.vmem [#allocation2], 27
          %v3019 = vld [vmem:[%s3018] ss:$2 sm:$0xff]
          %s3020 = scalar_lea.vmem [#allocation2], 51
          %v3021 = vld [vmem:[%s3020] ss:$2 sm:$0xff]
          %s3022 = scalar_lea.vmem [#allocation2], 75
          %v3023 = vld [vmem:[%s3022] ss:$2 sm:$0xff]
          %s3024 = scalar_lea.vmem [#allocation2], 99
          %v3025 = vld [vmem:[%s3024] ss:$2 sm:$0xff]
          %s3026 = scalar_lea.vmem [#allocation2], 123
          %v3027 = vld [vmem:[%s3026] ss:$2 sm:$0xff]
          %s3028 = scalar_lea.vmem [#allocation2], 147
          %v3029 = vld [vmem:[%s3028] ss:$2 sm:$0xff]
          %s3030 = scalar_lea.vmem [#allocation2], 171
          %v3031 = vld [vmem:[%s3030] ss:$2 sm:$0xff]
          %s3032 = scalar_lea.vmem [#allocation2], 195
          %v3033 = vld [vmem:[%s3032] ss:$2 sm:$0xff]
          %s3034 = scalar_lea.vmem [#allocation2], 219
          %v3035 = vld [vmem:[%s3034] ss:$2 sm:$0xff]
          %s3036 = scalar_lea.vmem [#allocation2], 243
          %v3037 = vld [vmem:[%s3036] ss:$2 sm:$0xff]
          %s3038 = scalar_lea.vmem [#allocation2], 267
          %v3039 = vld [vmem:[%s3038] ss:$2 sm:$0xff]
          %s3040 = scalar_lea.vmem [#allocation2], 291
          %v3041 = vld [vmem:[%s3040] ss:$2 sm:$0xff]
          %s3042 = scalar_lea.vmem [#allocation2], 315
          %v3043 = vld [vmem:[%s3042] ss:$2 sm:$0xff]
          %s3044 = scalar_lea.vmem [#allocation2], 339
          %v3045 = vld [vmem:[%s3044] ss:$2 sm:$0xff]
          %s3046 = scalar_lea.vmem [#allocation2], 363
          %v3047 = vld [vmem:[%s3046] ss:$2 sm:$0xff]
          %s3048 = scalar_lea.vmem [#allocation2], 387
          %v3049 = vld [vmem:[%s3048] ss:$2 sm:$0xff]
          %s3050 = scalar_lea.vmem [#allocation2], 411
          %v3051 = vld [vmem:[%s3050] ss:$2 sm:$0xff]
          %v3052 = vadd.f32 %v2998, %v3017
          %v3053 = vadd.f32 %v2999, %v3019
          %v3054 = vadd.f32 %v3000, %v3021
          %v3055 = vadd.f32 %v3001, %v3023
          %v3056 = vadd.f32 %v3002, %v3025
          %v3057 = vadd.f32 %v3003, %v3027
          %v3058 = vadd.f32 %v3004, %v3029
          %v3059 = vadd.f32 %v3005, %v3031
          %v3060 = vadd.f32 %v3006, %v3033
          %v3061 = vadd.f32 %v3007, %v3035
          %v3062 = vadd.f32 %v3008, %v3037
          %v3063 = vadd.f32 %v3009, %v3039
          %v3064 = vadd.f32 %v3010, %v3041
          %v3065 = vadd.f32 %v3011, %v3043
          %v3066 = vadd.f32 %v3012, %v3045
          %v3067 = vadd.f32 %v3013, %v3047
          %v3068 = vadd.f32 %v3014, %v3049
          %v3069 = vadd.f32 %v3015, %v3051
          %v3070 = vadd.f32 %v3052, %v3053
          %v3071 = vadd.f32 %v3054, %v3055
          %v3072 = vadd.f32 %v3056, %v3057
          %v3073 = vadd.f32 %v3058, %v3059
          %v3074 = vadd.f32 %v3060, %v3061
          %v3075 = vadd.f32 %v3062, %v3063
          %v3076 = vadd.f32 %v3064, %v3065
          %v3077 = vadd.f32 %v3066, %v3067
          %v3078 = vadd.f32 %v3068, %v3069
          %v3079 = vadd.f32 %v3053, %v3054
          %v3080 = vadd.f32 %v3055, %v3056
          %v3081 = vadd.f32 %v3057, %v3058
          %v3082 = vadd.f32 %v3059, %v3060
          %v3083 = vadd.f32 %v3061, %v3062
          %v3084 = vadd.f32 %v3063, %v3064
          %v3085 = vadd.f32 %v3065, %v3066
          %v3086 = vadd.f32 %v3067, %v3068
          %v3087 = vpack.c.bf16 %v3070, %v3070
          %v3088 = vpack.c.bf16 %v3071, %v3071
          %v3089 = vpack.c.bf16 %v3072, %v3072
          %v3090 = vpack.c.bf16 %v3073, %v3073
          %v3091 = vpack.c.bf16 %v3074, %v3074
          %v3092 = vpack.c.bf16 %v3075, %v3075
          %v3093 = vpack.c.bf16 %v3076, %v3076
          %v3094 = vpack.c.bf16 %v3077, %v3077
          %v3103 = vunpack.c.l.b16 %v3087
          %v3104 = vunpack.c.l.b16 %v3088
          %v3105 = vunpack.c.l.b16 %v3089
          %v3106 = vunpack.c.l.b16 %v3090
          %v3107 = vunpack.c.l.b16 %v3091
          %v3108 = vunpack.c.l.b16 %v3092
          %v3109 = vunpack.c.l.b16 %v3093
          %v3110 = vunpack.c.l.b16 %v3094
          %v3111 = vpack.c.b16 %v3103, %v3103
          %v3112 = vpack.c.b16 %v3104, %v3104
          %v3113 = vpack.c.b16 %v3105, %v3105
          %v3114 = vpack.c.b16 %v3106, %v3106
          %v3115 = vpack.c.b16 %v3107, %v3107
          %v3116 = vpack.c.b16 %v3108, %v3108
          %v3117 = vpack.c.b16 %v3109, %v3109
          %v3118 = vpack.c.b16 %v3110, %v3110
          %3119 = vrot.lane.b32.xlu0 %v3111, 16
          %v3120 = vpop.permute.xlu0 %3119
          %3121 = vrot.lane.b32.xlu0 %v3112, 16
          %v3122 = vpop.permute.xlu0 %3121
          %3123 = vrot.lane.b32.xlu0 %v3113, 16
          %v3124 = vpop.permute.xlu0 %3123
          %3125 = vrot.lane.b32.xlu0 %v3114, 16
          %v3126 = vpop.permute.xlu0 %3125
          %3127 = vrot.lane.b32.xlu0 %v3115, 16
          %v3128 = vpop.permute.xlu0 %3127
          %3129 = vrot.lane.b32.xlu0 %v3116, 16
          %v3130 = vpop.permute.xlu0 %3129
          %3131 = vrot.lane.b32.xlu0 %v3117, 16
          %v3132 = vpop.permute.xlu0 %3131
          %3133 = vrot.lane.b32.xlu0 %v3118, 16
          %v3134 = vpop.permute.xlu0 %3133
          %vm3143 = vcmask 191616
          %3144 = vst.msk [vmem:[#allocation6] sm:$0xf] %vm3143, %v3120
          %3145 = vst.msk [vmem:[#allocation6 + $0x4] sm:$0xf] %vm3143, %v3122
          %3146 = vst.msk [vmem:[#allocation6 + $0x8] sm:$0xf] %vm3143, %v3124
          %3147 = vst.msk [vmem:[#allocation6 + $0xc] sm:$0xf] %vm3143, %v3126
          %3148 = vst.msk [vmem:[#allocation6 + $0x10] sm:$0xf] %vm3143, %v3128
          %3149 = vst.msk [vmem:[#allocation6 + $0x14] sm:$0xf] %vm3143, %v3130
          %3150 = vst.msk [vmem:[#allocation6 + $0x18] sm:$0xf] %vm3143, %v3132
          %3151 = vst.msk [vmem:[#allocation6 + $0x1c] sm:$0xf] %vm3143, %v3134
          %v3152 = vpack.c.bf16 %v3079, %v3079
          %v3153 = vpack.c.bf16 %v3080, %v3080
          %v3154 = vpack.c.bf16 %v3081, %v3081
          %v3155 = vpack.c.bf16 %v3082, %v3082
          %v3156 = vpack.c.bf16 %v3083, %v3083
          %v3157 = vpack.c.bf16 %v3084, %v3084
          %v3158 = vpack.c.bf16 %v3085, %v3085
          %v3159 = vpack.c.bf16 %v3086, %v3086
          %v3168 = vunpack.c.l.b16 %v3152
          %v3169 = vunpack.c.l.b16 %v3153
          %v3170 = vunpack.c.l.b16 %v3154
          %v3171 = vunpack.c.l.b16 %v3155
          %v3172 = vunpack.c.l.b16 %v3156
          %v3173 = vunpack.c.l.b16 %v3157
          %v3174 = vunpack.c.l.b16 %v3158
          %v3175 = vunpack.c.l.b16 %v3159
          %v3176 = vpack.c.b16 %v3168, %v3168
          %v3177 = vpack.c.b16 %v3169, %v3169
          %v3178 = vpack.c.b16 %v3170, %v3170
          %v3179 = vpack.c.b16 %v3171, %v3171
          %v3180 = vpack.c.b16 %v3172, %v3172
          %v3181 = vpack.c.b16 %v3173, %v3173
          %v3182 = vpack.c.b16 %v3174, %v3174
          %v3183 = vpack.c.b16 %v3175, %v3175
          %3184 = vrot.lane.b32.xlu0 %v3176, 40
          %v3185 = vpop.permute.xlu0 %3184
          %3186 = vrot.lane.b32.xlu0 %v3177, 40
          %v3187 = vpop.permute.xlu0 %3186
          %3188 = vrot.lane.b32.xlu0 %v3178, 40
          %v3189 = vpop.permute.xlu0 %3188
          %3190 = vrot.lane.b32.xlu0 %v3179, 40
          %v3191 = vpop.permute.xlu0 %3190
          %3192 = vrot.lane.b32.xlu0 %v3180, 40
          %v3193 = vpop.permute.xlu0 %3192
          %3194 = vrot.lane.b32.xlu0 %v3181, 40
          %v3195 = vpop.permute.xlu0 %3194
          %3196 = vrot.lane.b32.xlu0 %v3182, 40
          %v3197 = vpop.permute.xlu0 %3196
          %3198 = vrot.lane.b32.xlu0 %v3183, 40
          %v3199 = vpop.permute.xlu0 %3198
          %vm3208 = vcmask 388416
          %3209 = vst.msk [vmem:[#allocation6] sm:$0xf] %vm3208, %v3185
          %3210 = vst.msk [vmem:[#allocation6 + $0x4] sm:$0xf] %vm3208, %v3187
          %3211 = vst.msk [vmem:[#allocation6 + $0x8] sm:$0xf] %vm3208, %v3189
          %3212 = vst.msk [vmem:[#allocation6 + $0xc] sm:$0xf] %vm3208, %v3191
          %3213 = vst.msk [vmem:[#allocation6 + $0x10] sm:$0xf] %vm3208, %v3193
          %3214 = vst.msk [vmem:[#allocation6 + $0x14] sm:$0xf] %vm3208, %v3195
          %3215 = vst.msk [vmem:[#allocation6 + $0x18] sm:$0xf] %vm3208, %v3197
          %3216 = vst.msk [vmem:[#allocation6 + $0x1c] sm:$0xf] %vm3208, %v3199
          %v3217 = vpack.c.bf16 %v3078, %v3078
          %v3219 = vunpack.c.l.b16 %v3217
          %v3220 = vpack.c.b16 %v3219, %v3219
          %3221 = vrot.lane.b32.xlu0 %v3112, 64
          %v3222 = vpop.permute.xlu0 %3221
          %3223 = vrot.lane.b32.xlu0 %v3113, 64
          %v3224 = vpop.permute.xlu0 %3223
          %3225 = vrot.lane.b32.xlu0 %v3114, 64
          %v3226 = vpop.permute.xlu0 %3225
          %3227 = vrot.lane.b32.xlu0 %v3115, 64
          %v3228 = vpop.permute.xlu0 %3227
          %3229 = vrot.lane.b32.xlu0 %v3116, 64
          %v3230 = vpop.permute.xlu0 %3229
          %3231 = vrot.lane.b32.xlu0 %v3117, 64
          %v3232 = vpop.permute.xlu0 %3231
          %3233 = vrot.lane.b32.xlu0 %v3118, 64
          %v3234 = vpop.permute.xlu0 %3233
          %3235 = vrot.lane.b32.xlu0 %v3220, 64
          %v3236 = vpop.permute.xlu0 %3235
          %vm3245 = vcmask 585216
          %3246 = vst.msk [vmem:[#allocation6] sm:$0xf] %vm3245, %v3222
          %3247 = vst.msk [vmem:[#allocation6 + $0x4] sm:$0xf] %vm3245, %v3224
          %3248 = vst.msk [vmem:[#allocation6 + $0x8] sm:$0xf] %vm3245, %v3226
          %3249 = vst.msk [vmem:[#allocation6 + $0xc] sm:$0xf] %vm3245, %v3228
          %3250 = vst.msk [vmem:[#allocation6 + $0x10] sm:$0xf] %vm3245, %v3230
          %3251 = vst.msk [vmem:[#allocation6 + $0x14] sm:$0xf] %vm3245, %v3232
          %3252 = vst.msk [vmem:[#allocation6 + $0x18] sm:$0xf] %vm3245, %v3234
          %3253 = vst.msk [vmem:[#allocation6 + $0x1c] sm:$0xf] %vm3245, %v3236
          %v3254 = vld [vmem:[#allocation6] sm:$0xf]
          %v3255 = vld [vmem:[#allocation6 + $0x4] sm:$0xf]
          %v3256 = vld [vmem:[#allocation6 + $0x8] sm:$0xf]
          %v3257 = vld [vmem:[#allocation6 + $0xc] sm:$0xf]
          %v3258 = vld [vmem:[#allocation6 + $0x10] sm:$0xf]
          %v3259 = vld [vmem:[#allocation6 + $0x14] sm:$0xf]
          %v3260 = vld [vmem:[#allocation6 + $0x18] sm:$0xf]
          %v3261 = vld [vmem:[#allocation6 + $0x1c] sm:$0xf]
          %v3262 = vld [vmem:[%s3] sm:$0xf]
          %v3263 = vld [vmem:[%s3 + $0x4] sm:$0xf]
          %v3264 = vld [vmem:[%s3 + $0x8] sm:$0xf]
          %v3265 = vld [vmem:[%s3 + $0xc] sm:$0xf]
          %v3266 = vld [vmem:[%s3 + $0x10] sm:$0xf]
          %v3267 = vld [vmem:[%s3 + $0x14] sm:$0xf]
          %v3268 = vld [vmem:[%s3 + $0x18] sm:$0xf]
          %v3269 = vld [vmem:[%s3 + $0x1c] sm:$0xf]
          %v3270 = vld [vmem:[%s3 + $0x20] sm:$0xf]
          %v3271 = vld [vmem:[%s4] sm:$0x1]
          %v3273 = vlaneseq
          %v3274 = vshrl.u32 %v3273, 7
          %v3275 = vsub.s32 0, %v3274
          %v3276 = vrot.slane %v3271, %v3275
          %v3286 = vunpack.c.l.b16 %v3254
          %v3287 = vunpack.c.l.b16 %v3255
          %v3288 = vunpack.c.l.b16 %v3256
          %v3289 = vunpack.c.l.b16 %v3257
          %v3290 = vunpack.c.l.b16 %v3258
          %v3291 = vunpack.c.l.b16 %v3259
          %v3292 = vunpack.c.l.b16 %v3260
          %v3293 = vunpack.c.l.b16 %v3261
          %v3294 = vpack.c.b16 %v3287, %v3286
          %v3295 = vpack.c.b16 %v3289, %v3288
          %v3296 = vpack.c.b16 %v3291, %v3290
          %v3297 = vpack.c.b16 %v3293, %v3292
          %v3307 = vunpack.c.l.b16 %v3262
          %v3308 = vunpack.c.l.b16 %v3263
          %v3309 = vunpack.c.l.b16 %v3264
          %v3310 = vunpack.c.l.b16 %v3265
          %v3311 = vunpack.c.l.b16 %v3266
          %v3312 = vunpack.c.l.b16 %v3267
          %v3313 = vunpack.c.l.b16 %v3268
          %v3314 = vunpack.c.l.b16 %v3269
          %v3315 = vunpack.c.l.b16 %v3270
          %v3316 = vpack.c.b16 %v3308, %v3307
          %v3317 = vpack.c.b16 %v3310, %v3309
          %v3318 = vpack.c.b16 %v3312, %v3311
          %v3319 = vpack.c.b16 %v3314, %v3313
          %v3320 = vpack.c.b16 %v3315, %v3315
          %vm3325 = vcmask 588800
          %v3327 = vsel %vm3325, %v3294, 0
          %v3330 = vsel %vm3325, %v3295, 0
          %v3333 = vsel %vm3325, %v3296, 0
          %v3336 = vsel %vm3325, %v3297, 0
          %vm3338 = vcmask 1043456
          %v3340 = vsel %vm3338, %v3320, 0
          %3342 = vmatprep.subr.bf16.mxu0 0
          %3343 = vmatpush1.bf16.msra.mxu0 %v3316
          %3344 = vmatprep.subr.bf16.mxu0 0
          %3345 = vmatpush1.bf16.msra.mxu0 %v3317
          %3346 = vmatprep.subr.bf16.mxu0 0
          %3347 = vmatpush1.bf16.msra.mxu0 %v3318
          %3348 = vmatprep.subr.bf16.mxu0 0
          %3349 = vmatpush1.bf16.msra.mxu0 %v3319
          %3350 = vmatprep.subr.bf16.mxu0 0
          %3351 = vmatpush1.bf16.msra.mxu0 %v3340
          %3352 = vmatprep.subr.bf16.mxu0 0
          %3353 = vmatpush1.bf16.msra.mxu0 0
          %3354 = vmatprep.subr.bf16.mxu0 0
          %3355 = vmatpush1.bf16.msra.mxu0 0
          %3356 = vmatprep.subr.bf16.mxu0 0
          %3357 = vmatpush1.bf16.msra.mxu0 0
          %3358 = vmatprep.subr.bf16.mxu0 0
          %3359 = vmatpush1.bf16.msra.mxu0 0
          %3360 = vmatprep.subr.bf16.mxu0 0
          %3361 = vmatpush1.bf16.msra.mxu0 0
          %3362 = vmatprep.subr.bf16.mxu0 0
          %3363 = vmatpush1.bf16.msra.mxu0 0
          %3364 = vmatprep.subr.bf16.mxu0 0
          %3365 = vmatpush1.bf16.msra.mxu0 0
          %3366 = vmatprep.subr.bf16.mxu0 0
          %3367 = vmatpush1.bf16.msra.mxu0 0
          %3368 = vmatprep.subr.bf16.mxu0 0
          %3369 = vmatpush1.bf16.msra.mxu0 0
          %3370 = vmatprep.subr.bf16.mxu0 0
          %3371 = vmatpush1.bf16.msra.mxu0 0
          %3372 = vmatprep.subr.bf16.mxu0 0
          %3373 = vmatpush1.bf16.msra.mxu0 0
          %3374 = vmatprep.mubr.bf16.mxu0 0
          %3375 = vmatmul.mubr.bf16.gmra.mrb[0].mxu0 %v3327
          %v3376 = vpop.f32.mrb[0].mxu0
          %v3377 = vadd.f32 %v3276, %v3376
          %v3378 = vpop.f32.mrb[0].mxu0
          %v3379 = vpop.f32.mrb[0].mxu0
          %v3380 = vadd.f32 %v3276, %v3379
          %v3381 = vpop.f32.mrb[0].mxu0
          %3382 = vmatprep.mubr.bf16.mxu0 0
          %3383 = vmatmul.mubr.bf16.gmra.mrb[0].mxu0 %v3330
          %v3384 = vpop.f32.mrb[0].mxu0
          %v3385 = vadd.f32 %v3276, %v3384
          %v3386 = vpop.f32.mrb[0].mxu0
          %v3387 = vpop.f32.mrb[0].mxu0
          %v3388 = vadd.f32 %v3276, %v3387
          %v3389 = vpop.f32.mrb[0].mxu0
          %3390 = vmatprep.mubr.bf16.mxu0 0
          %3391 = vmatmul.mubr.bf16.gmra.mrb[0].mxu0 %v3333
          %v3392 = vpop.f32.mrb[0].mxu0
          %v3393 = vadd.f32 %v3276, %v3392
          %v3394 = vpop.f32.mrb[0].mxu0
          %v3395 = vpop.f32.mrb[0].mxu0
          %v3396 = vadd.f32 %v3276, %v3395
          %v3397 = vpop.f32.mrb[0].mxu0
          %3398 = vmatprep.mubr.bf16.mxu0 0
          %3399 = vmatmul.mubr.bf16.gmra.mrb[0].mxu0 %v3336
          %v3400 = vpop.f32.mrb[0].mxu0
          %v3401 = vadd.f32 %v3276, %v3400
          %v3402 = vpop.f32.mrb[0].mxu0
          %v3403 = vpop.f32.mrb[0].mxu0
          %v3404 = vadd.f32 %v3276, %v3403
          %v3405 = vpop.f32.mrb[0].mxu0
          %3406 = vdwg.mxu0
          %v3407 = vld [vmem:[%s276] ss:$2 sm:$0xff]
          %s3408 = scalar_lea.vmem %s276, 16
          %v3409 = vld [vmem:[%s3408] ss:$2 sm:$0xff]
          %s3410 = scalar_lea.vmem %s276, 32
          %v3411 = vld [vmem:[%s3410] ss:$2 sm:$0xff]
          %s3412 = scalar_lea.vmem %s276, 48
          %v3413 = vld [vmem:[%s3412] ss:$2 sm:$0xff]
          %s3414 = scalar_lea.vmem %s276, 64
          %v3415 = vld [vmem:[%s3414] ss:$2 sm:$0xff]
          %s3416 = scalar_lea.vmem %s276, 80
          %v3417 = vld [vmem:[%s3416] ss:$2 sm:$0xff]
          %s3418 = scalar_lea.vmem %s276, 96
          %v3419 = vld [vmem:[%s3418] ss:$2 sm:$0xff]
          %s3420 = scalar_lea.vmem %s276, 112
          %v3421 = vld [vmem:[%s3420] ss:$2 sm:$0xff]
          %s3422 = scalar_lea.vmem %s276, 128
          %v3423 = vld [vmem:[%s3422] ss:$2 sm:$0xff]
          %s3424 = scalar_lea.vmem %s276, 144
          %v3425 = vld [vmem:[%s3424] ss:$2 sm:$0xff]
          %s3426 = scalar_lea.vmem %s276, 160
          %v3427 = vld [vmem:[%s3426] ss:$2 sm:$0xff]
          %s3428 = scalar_lea.vmem %s276, 176
          %v3429 = vld [vmem:[%s3428] ss:$2 sm:$0xff]
          %s3430 = scalar_lea.vmem %s276, 192
          %v3431 = vld [vmem:[%s3430] ss:$2 sm:$0xff]
          %s3432 = scalar_lea.vmem %s276, 208
          %v3433 = vld [vmem:[%s3432] ss:$2 sm:$0xff]
          %s3434 = scalar_lea.vmem %s276, 224
          %v3435 = vld [vmem:[%s3434] ss:$2 sm:$0xff]
          %s3436 = scalar_lea.vmem %s276, 240
          %v3437 = vld [vmem:[%s3436] ss:$2 sm:$0xff]
          %s3438 = scalar_lea.vmem %s276, 1
          %v3439 = vld [vmem:[%s3438] ss:$2 sm:$0xff]
          %s3440 = scalar_lea.vmem %s276, 17
          %v3441 = vld [vmem:[%s3440] ss:$2 sm:$0xff]
          %s3442 = scalar_lea.vmem %s276, 33
          %v3443 = vld [vmem:[%s3442] ss:$2 sm:$0xff]
          %s3444 = scalar_lea.vmem %s276, 49
          %v3445 = vld [vmem:[%s3444] ss:$2 sm:$0xff]
          %s3446 = scalar_lea.vmem %s276, 65
          %v3447 = vld [vmem:[%s3446] ss:$2 sm:$0xff]
          %s3448 = scalar_lea.vmem %s276, 81
          %v3449 = vld [vmem:[%s3448] ss:$2 sm:$0xff]
          %s3450 = scalar_lea.vmem %s276, 97
          %v3451 = vld [vmem:[%s3450] ss:$2 sm:$0xff]
          %s3452 = scalar_lea.vmem %s276, 113
          %v3453 = vld [vmem:[%s3452] ss:$2 sm:$0xff]
          %s3454 = scalar_lea.vmem %s276, 129
          %v3455 = vld [vmem:[%s3454] ss:$2 sm:$0xff]
          %s3456 = scalar_lea.vmem %s276, 145
          %v3457 = vld [vmem:[%s3456] ss:$2 sm:$0xff]
          %s3458 = scalar_lea.vmem %s276, 161
          %v3459 = vld [vmem:[%s3458] ss:$2 sm:$0xff]
          %s3460 = scalar_lea.vmem %s276, 177
          %v3461 = vld [vmem:[%s3460] ss:$2 sm:$0xff]
          %s3462 = scalar_lea.vmem %s276, 193
          %v3463 = vld [vmem:[%s3462] ss:$2 sm:$0xff]
          %s3464 = scalar_lea.vmem %s276, 209
          %v3465 = vld [vmem:[%s3464] ss:$2 sm:$0xff]
          %s3466 = scalar_lea.vmem %s276, 225
          %v3467 = vld [vmem:[%s3466] ss:$2 sm:$0xff]
          %s3468 = scalar_lea.vmem %s276, 241
          %v3469 = vld [vmem:[%s3468] ss:$2 sm:$0xff]
          %v3470 = vadd.f32 %v3407, %v3439
          %v3471 = vadd.f32 %v3409, %v3441
          %v3472 = vadd.f32 %v3411, %v3443
          %v3473 = vadd.f32 %v3413, %v3445
          %v3474 = vadd.f32 %v3415, %v3447
          %v3475 = vadd.f32 %v3417, %v3449
          %v3476 = vadd.f32 %v3419, %v3451
          %v3477 = vadd.f32 %v3421, %v3453
          %v3478 = vadd.f32 %v3423, %v3455
          %v3479 = vadd.f32 %v3425, %v3457
          %v3480 = vadd.f32 %v3427, %v3459
          %v3481 = vadd.f32 %v3429, %v3461
          %v3482 = vadd.f32 %v3431, %v3463
          %v3483 = vadd.f32 %v3433, %v3465
          %v3484 = vadd.f32 %v3435, %v3467
          %v3485 = vadd.f32 %v3437, %v3469
          %v3486 = vadd.f32 %v3470, %v3471
          %v3487 = vadd.f32 %v3472, %v3473
          %v3488 = vadd.f32 %v3474, %v3475
          %v3489 = vadd.f32 %v3476, %v3477
          %v3490 = vadd.f32 %v3478, %v3479
          %v3491 = vadd.f32 %v3480, %v3481
          %v3492 = vadd.f32 %v3482, %v3483
          %v3493 = vadd.f32 %v3484, %v3485
          %v3494 = vpack.c.bf16 %v3487, %v3486
          %v3495 = vpack.c.bf16 %v3489, %v3488
          %v3496 = vpack.c.bf16 %v3491, %v3490
          %v3497 = vpack.c.bf16 %v3493, %v3492
          %v3498 = vld [vmem:[%s5] sm:$0x3]
          %vm3499 = vcmask 31744
          %v3501 = vsel %vm3499, %v3494, 0
          %v3504 = vsel %vm3499, %v3495, 0
          %v3507 = vsel %vm3499, %v3496, 0
          %v3510 = vsel %vm3499, %v3497, 0
          %vm3512 = vcmask 1041408
          %v3514 = vsel %vm3512, %v3498, 0
          %3516 = vmatprep.subr.bf16.mxu0 0
          %3517 = vmatpush1.bf16.msra.mxu0 %v3514
          %3518 = vmatprep.subr.bf16.mxu0 0
          %3519 = vmatpush1.bf16.msra.mxu0 0
          %3520 = vmatprep.subr.bf16.mxu0 0
          %3521 = vmatpush1.bf16.msra.mxu0 0
          %3522 = vmatprep.subr.bf16.mxu0 0
          %3523 = vmatpush1.bf16.msra.mxu0 0
          %3524 = vmatprep.subr.bf16.mxu0 0
          %3525 = vmatpush1.bf16.msra.mxu0 0
          %3526 = vmatprep.subr.bf16.mxu0 0
          %3527 = vmatpush1.bf16.msra.mxu0 0
          %3528 = vmatprep.subr.bf16.mxu0 0
          %3529 = vmatpush1.bf16.msra.mxu0 0
          %3530 = vmatprep.subr.bf16.mxu0 0
          %3531 = vmatpush1.bf16.msra.mxu0 0
          %3532 = vmatprep.subr.bf16.mxu0 0
          %3533 = vmatpush1.bf16.msra.mxu0 0
          %3534 = vmatprep.subr.bf16.mxu0 0
          %3535 = vmatpush1.bf16.msra.mxu0 0
          %3536 = vmatprep.subr.bf16.mxu0 0
          %3537 = vmatpush1.bf16.msra.mxu0 0
          %3538 = vmatprep.subr.bf16.mxu0 0
          %3539 = vmatpush1.bf16.msra.mxu0 0
          %3540 = vmatprep.subr.bf16.mxu0 0
          %3541 = vmatpush1.bf16.msra.mxu0 0
          %3542 = vmatprep.subr.bf16.mxu0 0
          %3543 = vmatpush1.bf16.msra.mxu0 0
          %3544 = vmatprep.subr.bf16.mxu0 0
          %3545 = vmatpush1.bf16.msra.mxu0 0
          %3546 = vmatprep.subr.bf16.mxu0 0
          %3547 = vmatpush1.bf16.msra.mxu0 0
          %3548 = vmatprep.mubr.bf16.mxu0 0
          %3549 = vmatmul.mubr.bf16.gmra.mrb[0].mxu0 %v3501
          %v3550 = vpop.f32.mrb[0].mxu0
          %v3551 = vadd.f32 0.0, %v3550
          %v3552 = vpop.f32.mrb[0].mxu0
          %v3553 = vpop.f32.mrb[0].mxu0
          %v3554 = vadd.f32 0.0, %v3553
          %v3555 = vpop.f32.mrb[0].mxu0
          %3556 = vmatprep.mubr.bf16.mxu0 0
          %3557 = vmatmul.mubr.bf16.gmra.mrb[0].mxu0 %v3504
          %v3558 = vpop.f32.mrb[0].mxu0
          %v3559 = vadd.f32 0.0, %v3558
          %v3560 = vpop.f32.mrb[0].mxu0
          %v3561 = vpop.f32.mrb[0].mxu0
          %v3562 = vadd.f32 0.0, %v3561
          %v3563 = vpop.f32.mrb[0].mxu0
          %3564 = vmatprep.mubr.bf16.mxu0 0
          %3565 = vmatmul.mubr.bf16.gmra.mrb[0].mxu0 %v3507
          %v3566 = vpop.f32.mrb[0].mxu0
          %v3567 = vadd.f32 0.0, %v3566
          %v3568 = vpop.f32.mrb[0].mxu0
          %v3569 = vpop.f32.mrb[0].mxu0
          %v3570 = vadd.f32 0.0, %v3569
          %v3571 = vpop.f32.mrb[0].mxu0
          %3572 = vmatprep.mubr.bf16.mxu0 0
          %3573 = vmatmul.mubr.bf16.gmra.mrb[0].mxu0 %v3510
          %v3574 = vpop.f32.mrb[0].mxu0
          %v3575 = vadd.f32 0.0, %v3574
          %v3576 = vpop.f32.mrb[0].mxu0
          %v3577 = vpop.f32.mrb[0].mxu0
          %v3578 = vadd.f32 0.0, %v3577
          %v3579 = vpop.f32.mrb[0].mxu0
          %3580 = vdwg.mxu0
          %v3581 = vadd.f32 %v3377, %v3551
          %v3582 = vadd.f32 %v3380, %v3554
          %v3583 = vadd.f32 %v3385, %v3559
          %v3584 = vadd.f32 %v3388, %v3562
          %v3585 = vadd.f32 %v3393, %v3567
          %v3586 = vadd.f32 %v3396, %v3570
          %v3587 = vadd.f32 %v3401, %v3575
          %v3588 = vadd.f32 %v3404, %v3578
          %v3589 = vld [vmem:[%s6] sm:$0x1]
          %v3591 = vlaneseq
          %v3592 = vshrl.u32 %v3591, 7
          %v3593 = vsub.s32 0, %v3592
          %v3594 = vrot.slane %v3589, %v3593
          %v3596 = vadd.f32 %v3581, %v3594
          %v3597 = vadd.f32 %v3582, %v3594
          %v3598 = vadd.f32 %v3583, %v3594
          %v3599 = vadd.f32 %v3584, %v3594
          %v3600 = vadd.f32 %v3585, %v3594
          %v3601 = vadd.f32 %v3586, %v3594
          %v3602 = vadd.f32 %v3587, %v3594
          %v3603 = vadd.f32 %v3588, %v3594
          %3604 = vst.msk [vmem:[%s271] sm:$0xff] %vm278, %v3596
          %3605 = vst.msk [vmem:[%s271 + $0x8] sm:$0xff] %vm278, %v3597
          %3606 = vst.msk [vmem:[%s271 + $0x10] sm:$0xff] %vm278, %v3598
          %3607 = vst.msk [vmem:[%s271 + $0x18] sm:$0xff] %vm278, %v3599
          %3608 = vst.msk [vmem:[%s271 + $0x20] sm:$0xff] %vm278, %v3600
          %3609 = vst.msk [vmem:[%s271 + $0x28] sm:$0xff] %vm278, %v3601
          %3610 = vst.msk [vmem:[%s271 + $0x30] sm:$0xff] %vm278, %v3602
          %3611 = vst.msk [vmem:[%s271 + $0x38] sm:$0xff] %vm278, %v3603
        %s3612 = sand.u32 %s181, 1
        %s3613 = scalar_lea.sflag [#allocation4], %s3612
        %s3614 = sand.u32 %s181, 1
        %s3615 = smul.addr %s3614, 64
        %s3616 = scalar_lea.vmem [#allocation3], %s3615
        // Predicated region
        $region51: #{tpu_custom_call.1} parent=47 // pred_check
          %p3617 = pneg %p191
        $region52: #{tpu_custom_call.1} parent=47 // pred_check_branch
          %3619 = sbr.rel (%p3617) target = $region54
        $region53: #{tpu_custom_call.1} parent=47 // pred_region
          %s3621 = ssub.s32 1024, 1024
          %3622 = vsyncadd %s3613, %s3621
          %s3623 = smul.addr %s21, 8
          %s3624 = smul.addr %s3623, 128
          %s3625 = scalar_lea.hbm %s7, %s3624
          %s3626 = sshll.u32 %s3616, 4
          %s3627 = int_to_ptr.vmem [resolvable:$true] %s3626
          %3632 = dma.vmem_to_hbm [thread:$0]  %s3627, 1024, %s3625, %s3613, 128, 128, 8
        $region54: #{tpu_custom_call.1} parent=47 // pred_fallthru
          _
      $region48: #{tpu_custom_call.1} parent=5 // pred_fallthru
        _
      %p3633 = scmp.le.s32.totalorder 2, %s16
      // Predicated region
      $region55: #{tpu_custom_call.1} parent=5 // pred_check
        %p3634 = pneg %p3633
      $region56: #{tpu_custom_call.1} parent=5 // pred_check_branch
        %3636 = sbr.rel (%p3634) target = $region58
      $region57: #{tpu_custom_call.1} parent=5 // pred_region
        %s3637 = ssub.s32 %s16, 2
        // Predicated region
        $region59: #{tpu_custom_call.1} parent=57 // pred_check
          %p3638 = pneg %p197
        $region60: #{tpu_custom_call.1} parent=57 // pred_check_branch
          %3640 = sbr.rel (%p3638) target = $region62
        $region61: #{tpu_custom_call.1} parent=57 // pred_region
          %s3641 = sand.u32 %s182, 1
          %s3642 = scalar_lea.sflag [#allocation4], %s3641
          %s3643 = sand.u32 %s182, 1
          %s3644 = smul.addr %s3643, 64
          %s3645 = scalar_lea.vmem [#allocation3], %s3644
          %3646 = dma.done %s3642, 1024
        $region62: #{tpu_custom_call.1} parent=57 // pred_fallthru
          _
      $region58: #{tpu_custom_call.1} parent=5 // pred_fallthru
        _
    $region6: #{tpu_custom_call.1} parent=1 // loop_footer
      %s20 = sadd.s32 1, %s16
    $region7: #{tpu_custom_call.1} parent=1 // loop_footer_branch
      %15 = sbr.rel target = $region3
    $region8: #{tpu_custom_call.1} parent=1 // loop_exit
      _
    %3647 = vsyncpa [#allocation4], 1
    %s3648 = scalar_lea.sflag [#allocation4], 1
    %3649 = vsyncpa %s3648, 1

</llo_original>
